<compile_context>
chip_gen: v7x
topology: tpu7x:2x2x1
jax: 0.10.0
libtpu: 0.0.40
codegen_flags: <defaults>
</compile_context>

<pallas_src>
import functools

import jax
import jax.numpy as jnp
from jax.experimental import pallas as pl
from jax.experimental.pallas import tpu as pltpu

# MLPBase hidden sizes (modular-rl MLPBase) and lane-aligned padded sizes.
H1, H2 = 400, 300
H1P, H2P = 512, 384
REL_DIM = 12


def _round_up(v, m):
    return (v + m - 1) // m * m


# ---------------------------------------------------------------------------
# Kernel: full CriticDownAction forward for one batch tile.
# ---------------------------------------------------------------------------
def _critic_down_kernel(xin_ref, w1q_ref, w1m_ref, b1_ref,
                        w2_ref, b2_ref, w3q_ref, w3m_ref,
                        out_ref):
    f32 = jnp.float32
    bf16 = jnp.bfloat16
    TWO_H1 = 2 * H1P

    def mm(a, w):
        # bf16 x bf16 MXU matmul, f32 accumulation.
        return jnp.dot(a, w, preferred_element_type=f32)

    xin = xin_ref[...]                                  # (TB, KP) bf16
    # tanh in f32 (v5e EUP has no bf16 path); u / pad columns hit zero weight
    # rows in w1m, so tanh-ing the whole fused operand is exact.
    xin_t = jnp.tanh(xin.astype(f32)).astype(bf16)

    # ---- layer 1: one fused K=KP matmul per path ---------------------------
    hq = jnp.maximum(mm(xin, w1q_ref[...]) + b1_ref[0:1, :TWO_H1], 0.0)
    hq = hq.astype(bf16)                                # (TB, 2*H1P)
    hm = jnp.maximum(mm(xin_t, w1m_ref[...]) + b1_ref[0:1, TWO_H1:], 0.0)
    hm = hm.astype(bf16)                                # (TB, H1P)

    # ---- layer 2 ------------------------------------------------------------
    def layer2(h, head, off):
        z = mm(h, w2_ref[head]) + b2_ref[0:1, off:off + H2P]
        return jnp.maximum(z, 0.0)

    h2_q1 = layer2(hq[:, :H1P], 0, 0)                   # f32 (feeds VPU reduce)
    h2_q2 = layer2(hq[:, H1P:], 1, H2P)                 # f32
    h2_m = layer2(hm, 2, 2 * H2P).astype(bf16)          # bf16 (feeds MXU)

    # ---- layer 3 ------------------------------------------------------------
    # Q heads: output dim 1 -> VPU multiply + XLU lane-reduction (not MXU).
    # Layer-3 biases are folded in: b2 plants 1.0 at padded column H2 and
    # w3q / w3m carry the bias at that row/lane.
    w3q = w3q_ref[...]                                  # (2, H2P) f32
    x1 = jnp.sum(h2_q1 * w3q[0:1, :], axis=-1, keepdims=True)   # (TB, 1)
    x2 = jnp.sum(h2_q2 * w3q[1:2, :], axis=-1, keepdims=True)

    msg = mm(h2_m, w3m_ref[...])                        # (TB, OUT_PAD) f32
    # Lanes 0, 1 and trailing pad lanes of `msg` are exactly zero by
    # construction, so the row sum-of-squares equals the true ||msg||^2.
    sumsq = jnp.sum(msg * msg, axis=-1, keepdims=True)
    inv = jax.lax.rsqrt(jnp.maximum(sumsq, 1e-24))      # == 1/max(||v||, 1e-12)
    msg = msg * inv

    # Lane-dense output slab: lane0 = Q1, lane1 = Q2, lanes [2, 2+dout) = msg.
    col = jax.lax.broadcasted_iota(jnp.int32, msg.shape, 1)
    out = jnp.where(col == 0, x1, msg)
    out = jnp.where(col == 1, x2, out)
    out_ref[...] = out


# ---------------------------------------------------------------------------
# Parameter init (PyTorch-Linear-style uniform) and packing for the kernel.
# ---------------------------------------------------------------------------
def init_params(key, self_input_dim, action_dim, msg_dim, max_children):
    din_q = REL_DIM + self_input_dim + action_dim + msg_dim
    din_m = REL_DIM + self_input_dim + msg_dim
    dout_m = msg_dim * max_children

    def linear(key, fan_in, fan_out):
        kw, kb = jax.random.split(key)
        bound = 1.0 / jnp.sqrt(float(fan_in))
        w = jax.random.uniform(kw, (fan_in, fan_out), jnp.float32, -bound, bound)
        b = jax.random.uniform(kb, (1, fan_out), jnp.float32, -bound, bound)
        return w, b

    def mlp_params(key, din, dout):
        k1, k2, k3 = jax.random.split(key, 3)
        w1, b1 = linear(k1, din, H1)
        w2, b2 = linear(k2, H1, H2)
        w3, b3 = linear(k3, H2, dout)
        return (w1, b1, w2, b2, w3, b3)

    kq1, kq2, km = jax.random.split(key, 3)
    return {
        "q1": mlp_params(kq1, din_q, 1),
        "q2": mlp_params(kq2, din_q, 1),
        "msg": mlp_params(km, din_m, dout_m),
    }


def pack_params(params, self_input_dim, action_dim, msg_dim, max_children):
    """Pad / fuse params into the kernel's packed bf16 layout.

    NOTE: packing invariants (zero-padded w2 columns, 1.0 planted in b2's
    padded column, zeroed u/pad rows of w1_m, zero lanes 0,1 / pad lanes of
    w3m) are load-bearing for the in-kernel bias fold and msg norm.
    """
    si, ad, md = self_input_dim, action_dim, msg_dim
    dout_m = msg_dim * max_children
    din = REL_DIM + si + ad + md
    kp = _round_up(din, 128)
    out_pad = _round_up(dout_m + 2, 128)
    bf16 = jnp.bfloat16

    q1, q2, mg = params["q1"], params["q2"], params["msg"]

    # Row offsets of each segment inside the fused (B, kp) operand.
    off_rel = 0
    off_x = REL_DIM
    off_u = REL_DIM + si
    off_m = REL_DIM + si + ad

    def pad_h1(w):      # (rows, H1) -> (rows, H1P)
        return jnp.pad(w, ((0, 0), (0, H1P - H1)))

    # Layer 1, Q path: rows already laid out [rel|x|u|m]; pad K and N.
    def q_w1(w1):       # (din, H1) -> (kp, H1P)
        return jnp.pad(pad_h1(w1), ((0, kp - din), (0, 0)))

    w1_q = jnp.concatenate([q_w1(q1[0]), q_w1(q2[0])], 1)       # (kp, 2*H1P)

    # Layer 1, msg path: scatter [rel|x|m] rows to their fused-operand
    # positions; u rows and pad rows stay zero.
    mw1 = mg[0]                                                 # (12+si+md, H1)
    w1_m = jnp.zeros((kp, H1P), jnp.float32)
    w1_m = w1_m.at[off_rel:off_rel + REL_DIM].set(pad_h1(mw1[:REL_DIM]))
    w1_m = w1_m.at[off_x:off_x + si].set(pad_h1(mw1[REL_DIM:REL_DIM + si]))
    w1_m = w1_m.at[off_m:off_m + md].set(pad_h1(mw1[REL_DIM + si:]))

    b1 = jnp.concatenate([pad_h1(q1[1]), pad_h1(q2[1]), pad_h1(mg[1])], 1)

    def pad_w2(w):      # (H1, H2) -> (H1P, H2P)
        return jnp.pad(w, ((0, H1P - H1), (0, H2P - H2)))

    w2 = jnp.stack([pad_w2(q1[2]), pad_w2(q2[2]), pad_w2(mg[2])], 0)

    def pad_b2(b):      # (1, H2) -> (1, H2P) with a 1.0 planted at column H2
        b = jnp.pad(b, ((0, 0), (0, H2P - H2)))
        return b.at[0, H2].set(1.0)       # enables layer-3 bias fold

    b2 = jnp.concatenate([pad_b2(q1[3]), pad_b2(q2[3]), pad_b2(mg[3])], 1)

    def q_row(w3, b3):  # (H2,1),(1,1) -> (1, H2P), bias folded at col H2
        row = jnp.zeros((1, H2P), jnp.float32)
        row = row.at[0, :H2].set(w3[:, 0])
        return row.at[0, H2].set(b3[0, 0])

    w3q = jnp.concatenate([q_row(q1[4], q1[5]), q_row(q2[4], q2[5])], 0)

    # msg W3 shifted 2 lanes right (lanes 0,1 reserved for Q1/Q2), bias folded
    # into row H2 (matches the 1.0 planted in b2's msg segment).
    w3m = jnp.zeros((H2P, out_pad), jnp.float32)
    w3m = w3m.at[:H2, 2:2 + dout_m].set(mg[4])
    w3m = w3m.at[H2, 2:2 + dout_m].set(mg[5][0])

    return {
        "w1_q": w1_q.astype(bf16), "w1_m": w1_m.astype(bf16),
        "b1": b1.astype(jnp.float32),
        "w2": w2.astype(bf16), "b2": b2.astype(jnp.float32),
        "w3q": w3q.astype(jnp.float32), "w3m": w3m.astype(bf16),
    }


# ---------------------------------------------------------------------------
# Forward wrapper
# ---------------------------------------------------------------------------
@functools.partial(jax.jit, static_argnames=("dout_m", "tile_b"))
def critic_down_action(rel_pos, x, u, m, packed, *, dout_m, tile_b=512):
    B = rel_pos.shape[0]
    kp = packed["w1_q"].shape[0]
    out_pad = packed["w3m"].shape[1]

    # Fuse [rel|x|u|m] into one bf16 (B, kp) operand: one DMA stream per tile
    # and one K=kp layer-1 matmul per path inside the kernel.
    xin = jnp.concatenate([rel_pos, x, u, m], axis=-1).astype(jnp.float32)
    din = xin.shape[1]

    # Batch tile: minimize padded remainder and prefer >= 2 grid tiles on the
    # "parallel" axis (v7x has 2 TensorCores) whenever the batch allows.
    n_goal = max(2, -(-B // tile_b))
    n_goal = min(n_goal, max(1, -(-B // 8)))
    TB = _round_up(-(-B // n_goal), 8)
    Bp = _round_up(B, TB)
    num_tiles = Bp // TB

    xin = jnp.pad(xin, ((0, Bp - B), (0, kp - din))).astype(jnp.bfloat16)

    def const_spec(arr):
        nd = arr.ndim
        return pl.BlockSpec(arr.shape, lambda i, nd=nd: (0,) * nd)

    param_order = ("w1_q", "w1_m", "b1", "w2", "b2", "w3q", "w3m")
    param_arrays = [packed[k] for k in param_order]

    in_specs = ([pl.BlockSpec((TB, kp), lambda i: (i, 0))]
                + [const_spec(a) for a in param_arrays])

    flops = 2 * Bp * (kp * 3 * H1P            # fused layer 1 (both paths)
                      + 3 * H1P * H2P         # layer 2 (three heads)
                      + H2P * out_pad         # layer 3 msg matmul
                      + 2 * H2P)              # Q-head VPU reductions
    bytes_accessed = int(xin.size) * xin.dtype.itemsize
    bytes_accessed += sum(int(a.size) * a.dtype.itemsize for a in param_arrays)
    bytes_accessed += Bp * out_pad * 4
    cost = pl.CostEstimate(flops=int(flops),
                           transcendentals=int(Bp * kp + Bp),
                           bytes_accessed=int(bytes_accessed))

    out = pl.pallas_call(
        _critic_down_kernel,
        grid=(num_tiles,),
        in_specs=in_specs,
        out_specs=pl.BlockSpec((TB, out_pad), lambda i: (i, 0)),
        out_shape=jax.ShapeDtypeStruct((Bp, out_pad), jnp.float32),
        compiler_params=pltpu.CompilerParams(
            dimension_semantics=("parallel",),
            vmem_limit_bytes=32 * 1024 * 1024),
        cost_estimate=cost,
    )(xin, *param_arrays)

    x1 = out[:B, 0:1]
    x2 = out[:B, 1:2]
    msg_down = out[:B, 2:2 + dout_m]
    return x1, x2, msg_down


# ---------------------------------------------------------------------------
# Plain-JAX reference (mirrors the PyTorch forward, pure f32)
# ---------------------------------------------------------------------------
def _reference(rel_pos, x, u, m, params):
    def mlp(inp, p):
        w1, b1, w2, b2, w3, b3 = p
        h = jax.nn.relu(inp @ w1 + b1)
        h = jax.nn.relu(h @ w2 + b2)
        return h @ w3 + b3

    xum = jnp.concatenate([rel_pos, x, u, m], axis=-1)
    x1 = mlp(xum, params["q1"])
    x2 = mlp(xum, params["q2"])
    xm = jnp.tanh(jnp.concatenate([rel_pos, x, m], axis=-1))
    msg = mlp(xm, params["msg"])
    norm = jnp.sqrt(jnp.sum(msg * msg, axis=-1, keepdims=True))
    return x1, x2, msg / jnp.maximum(norm, 1e-12)


if __name__ == "__main__":
    batch = 8
    self_input_dim = 32
    action_dim = 8
    msg_dim = 16
    max_children = 2
    dout_m = msg_dim * max_children

    key = jax.random.PRNGKey(0)
    kp, k1, k2, k3, k4 = jax.random.split(key, 5)

    params = init_params(kp, self_input_dim, action_dim, msg_dim, max_children)
    packed = pack_params(params, self_input_dim, action_dim, msg_dim,
                         max_children)

    rel_pos = jax.random.normal(k1, (batch, REL_DIM), jnp.float32)
    x = jax.random.normal(k2, (batch, self_input_dim), jnp.float32)
    u = jax.random.normal(k3, (batch, action_dim), jnp.float32)
    m = jax.random.normal(k4, (batch, msg_dim), jnp.float32)

    x1, x2, msg_down = critic_down_action(rel_pos, x, u, m, packed,
                                          dout_m=dout_m)
    jax.block_until_ready((x1, x2, msg_down))

    r1, r2, rmsg = _reference(rel_pos, x, u, m, params)
    # bf16 inputs/weights (f32 accumulation) -> relaxed tolerance.
    assert jnp.allclose(x1, r1, atol=3e-2, rtol=3e-2)
    assert jnp.allclose(x2, r2, atol=3e-2, rtol=3e-2)
    assert jnp.allclose(msg_down, rmsg, atol=3e-2, rtol=3e-2)

    print("KERNEL_OK")
</pallas_src>

<mosaic_0001>
module attributes {stable_mosaic.version = 11 : i64} {
  func.func @_critic_down_kernel(%arg0: i32, %arg1: memref<8x128xbf16, #tpu.memory_space<vmem>>, %arg2: memref<128x1024xbf16, #tpu.memory_space<vmem>>, %arg3: memref<128x512xbf16, #tpu.memory_space<vmem>>, %arg4: memref<1x1536xf32, #tpu.memory_space<vmem>>, %arg5: memref<3x512x384xbf16, #tpu.memory_space<vmem>>, %arg6: memref<1x1152xf32, #tpu.memory_space<vmem>>, %arg7: memref<2x384xf32, #tpu.memory_space<vmem>>, %arg8: memref<384x128xbf16, #tpu.memory_space<vmem>>, %arg9: memref<8x128xf32, #tpu.memory_space<vmem>>) attributes {dimension_semantics = [#tpu.dimension_semantics<parallel>], iteration_bounds = array<i64: 1>, scalar_prefetch = 0 : i64, scratch_operands = 0 : i64, tpu.core_type = #tpu.core_type<tc>, window_params = [{transform_indices = @transform_0, window_bounds = array<i64: 8, 128>}, {pipeline_mode = #tpu.pipeline_mode<synchronous>, transform_indices = @transform_1, window_bounds = array<i64: 128, 1024>}, {pipeline_mode = #tpu.pipeline_mode<synchronous>, transform_indices = @transform_2, window_bounds = array<i64: 128, 512>}, {pipeline_mode = #tpu.pipeline_mode<synchronous>, transform_indices = @transform_3, window_bounds = array<i64: 1, 1536>}, {pipeline_mode = #tpu.pipeline_mode<synchronous>, transform_indices = @transform_4, window_bounds = array<i64: 3, 512, 384>}, {pipeline_mode = #tpu.pipeline_mode<synchronous>, transform_indices = @transform_5, window_bounds = array<i64: 1, 1152>}, {pipeline_mode = #tpu.pipeline_mode<synchronous>, transform_indices = @transform_6, window_bounds = array<i64: 2, 384>}, {pipeline_mode = #tpu.pipeline_mode<synchronous>, transform_indices = @transform_7, window_bounds = array<i64: 384, 128>}, {transform_indices = @transform_8, window_bounds = array<i64: 8, 128>}]} {
    %c0 = arith.constant 0 : index
    %c0_0 = arith.constant 0 : index
    %0 = vector.load %arg1[%c0, %c0_0] : memref<8x128xbf16, #tpu.memory_space<vmem>>, vector<8x128xbf16>
    %1 = arith.extf %0 : vector<8x128xbf16> to vector<8x128xf32>
    %2 = math.tanh %1 : vector<8x128xf32>
    %3 = arith.truncf %2 : vector<8x128xf32> to vector<8x128xbf16>
    %c0_1 = arith.constant 0 : index
    %c0_2 = arith.constant 0 : index
    %4 = vector.load %arg2[%c0_1, %c0_2] : memref<128x1024xbf16, #tpu.memory_space<vmem>>, vector<128x1024xbf16>
    %cst = arith.constant dense<0.000000e+00> : vector<8x1024xf32>
    %5 = tpu.matmul %0, %4, %cst {dimension_numbers = #tpu.dot_dimension_numbers<[1], [0], [0], [1], [0, 0, 1, 1], [], []>} : vector<8x128xbf16>, vector<128x1024xbf16>, vector<8x1024xf32> -> vector<8x1024xf32>
    %c0_3 = arith.constant 0 : index
    %c0_4 = arith.constant 0 : index
    %6 = vector.load %arg4[%c0_3, %c0_4] : memref<1x1536xf32, #tpu.memory_space<vmem>>, vector<1x1024xf32>
    %7 = vector.broadcast %6 : vector<1x1024xf32> to vector<8x1024xf32>
    %8 = arith.addf %5, %7 : vector<8x1024xf32>
    %cst_5 = arith.constant 0.000000e+00 : f32
    %9 = vector.broadcast %cst_5 : f32 to vector<8x1024xf32>
    %10 = arith.maximumf %8, %9 : vector<8x1024xf32>
    %11 = arith.truncf %10 : vector<8x1024xf32> to vector<8x1024xbf16>
    %c0_6 = arith.constant 0 : index
    %c0_7 = arith.constant 0 : index
    %12 = vector.load %arg3[%c0_6, %c0_7] : memref<128x512xbf16, #tpu.memory_space<vmem>>, vector<128x512xbf16>
    %cst_8 = arith.constant dense<0.000000e+00> : vector<8x512xf32>
    %13 = tpu.matmul %3, %12, %cst_8 {dimension_numbers = #tpu.dot_dimension_numbers<[1], [0], [0], [1], [0, 0, 1, 1], [], []>} : vector<8x128xbf16>, vector<128x512xbf16>, vector<8x512xf32> -> vector<8x512xf32>
    %c0_9 = arith.constant 0 : index
    %c1024 = arith.constant 1024 : index
    %14 = vector.load %arg4[%c0_9, %c1024] : memref<1x1536xf32, #tpu.memory_space<vmem>>, vector<1x512xf32>
    %15 = vector.broadcast %14 : vector<1x512xf32> to vector<8x512xf32>
    %16 = arith.addf %13, %15 : vector<8x512xf32>
    %cst_10 = arith.constant 0.000000e+00 : f32
    %17 = vector.broadcast %cst_10 : f32 to vector<8x512xf32>
    %18 = arith.maximumf %16, %17 : vector<8x512xf32>
    %19 = arith.truncf %18 : vector<8x512xf32> to vector<8x512xbf16>
    %20 = vector.extract_strided_slice %11 {offsets = [0, 0], sizes = [8, 512], strides = [1, 1]} : vector<8x1024xbf16> to vector<8x512xbf16>
    %c0_11 = arith.constant 0 : index
    %c0_12 = arith.constant 0 : index
    %c0_13 = arith.constant 0 : index
    %21 = vector.load %arg5[%c0_11, %c0_12, %c0_13] : memref<3x512x384xbf16, #tpu.memory_space<vmem>>, vector<1x512x384xbf16>
    %22 = vector.shape_cast %21 : vector<1x512x384xbf16> to vector<512x384xbf16>
    %cst_14 = arith.constant dense<0.000000e+00> : vector<8x384xf32>
    %23 = tpu.matmul %20, %22, %cst_14 {dimension_numbers = #tpu.dot_dimension_numbers<[1], [0], [0], [1], [0, 0, 1, 1], [], []>} : vector<8x512xbf16>, vector<512x384xbf16>, vector<8x384xf32> -> vector<8x384xf32>
    %c0_15 = arith.constant 0 : index
    %c0_16 = arith.constant 0 : index
    %24 = vector.load %arg6[%c0_15, %c0_16] : memref<1x1152xf32, #tpu.memory_space<vmem>>, vector<1x384xf32>
    %25 = vector.broadcast %24 : vector<1x384xf32> to vector<8x384xf32>
    %26 = arith.addf %23, %25 : vector<8x384xf32>
    %cst_17 = arith.constant 0.000000e+00 : f32
    %27 = vector.broadcast %cst_17 : f32 to vector<8x384xf32>
    %28 = arith.maximumf %26, %27 : vector<8x384xf32>
    %29 = vector.extract_strided_slice %11 {offsets = [0, 512], sizes = [8, 512], strides = [1, 1]} : vector<8x1024xbf16> to vector<8x512xbf16>
    %c1 = arith.constant 1 : index
    %c0_18 = arith.constant 0 : index
    %c0_19 = arith.constant 0 : index
    %30 = vector.load %arg5[%c1, %c0_18, %c0_19] : memref<3x512x384xbf16, #tpu.memory_space<vmem>>, vector<1x512x384xbf16>
    %31 = vector.shape_cast %30 : vector<1x512x384xbf16> to vector<512x384xbf16>
    %cst_20 = arith.constant dense<0.000000e+00> : vector<8x384xf32>
    %32 = tpu.matmul %29, %31, %cst_20 {dimension_numbers = #tpu.dot_dimension_numbers<[1], [0], [0], [1], [0, 0, 1, 1], [], []>} : vector<8x512xbf16>, vector<512x384xbf16>, vector<8x384xf32> -> vector<8x384xf32>
    %c0_21 = arith.constant 0 : index
    %c384 = arith.constant 384 : index
    %33 = vector.load %arg6[%c0_21, %c384] : memref<1x1152xf32, #tpu.memory_space<vmem>>, vector<1x384xf32>
    %34 = vector.broadcast %33 : vector<1x384xf32> to vector<8x384xf32>
    %35 = arith.addf %32, %34 : vector<8x384xf32>
    %cst_22 = arith.constant 0.000000e+00 : f32
    %36 = vector.broadcast %cst_22 : f32 to vector<8x384xf32>
    %37 = arith.maximumf %35, %36 : vector<8x384xf32>
    %c2 = arith.constant 2 : index
    %c0_23 = arith.constant 0 : index
    %c0_24 = arith.constant 0 : index
    %38 = vector.load %arg5[%c2, %c0_23, %c0_24] : memref<3x512x384xbf16, #tpu.memory_space<vmem>>, vector<1x512x384xbf16>
    %39 = vector.shape_cast %38 : vector<1x512x384xbf16> to vector<512x384xbf16>
    %cst_25 = arith.constant dense<0.000000e+00> : vector<8x384xf32>
    %40 = tpu.matmul %19, %39, %cst_25 {dimension_numbers = #tpu.dot_dimension_numbers<[1], [0], [0], [1], [0, 0, 1, 1], [], []>} : vector<8x512xbf16>, vector<512x384xbf16>, vector<8x384xf32> -> vector<8x384xf32>
    %c0_26 = arith.constant 0 : index
    %c768 = arith.constant 768 : index
    %41 = vector.load %arg6[%c0_26, %c768] : memref<1x1152xf32, #tpu.memory_space<vmem>>, vector<1x384xf32>
    %42 = vector.broadcast %41 : vector<1x384xf32> to vector<8x384xf32>
    %43 = arith.addf %40, %42 : vector<8x384xf32>
    %cst_27 = arith.constant 0.000000e+00 : f32
    %44 = vector.broadcast %cst_27 : f32 to vector<8x384xf32>
    %45 = arith.maximumf %43, %44 : vector<8x384xf32>
    %46 = arith.truncf %45 : vector<8x384xf32> to vector<8x384xbf16>
    %c0_28 = arith.constant 0 : index
    %c0_29 = arith.constant 0 : index
    %47 = vector.load %arg7[%c0_28, %c0_29] : memref<2x384xf32, #tpu.memory_space<vmem>>, vector<2x384xf32>
    %48 = vector.extract_strided_slice %47 {offsets = [0, 0], sizes = [1, 384], strides = [1, 1]} : vector<2x384xf32> to vector<1x384xf32>
    %49 = vector.broadcast %48 : vector<1x384xf32> to vector<8x384xf32>
    %50 = arith.mulf %28, %49 : vector<8x384xf32>
    %cst_30 = arith.constant dense<0.000000e+00> : vector<8xf32>
    %51 = vector.multi_reduction <add>, %50, %cst_30 [1] : vector<8x384xf32> to vector<8xf32>
    %52 = vector.shape_cast %51 : vector<8xf32> to vector<8x1xf32>
    %53 = vector.extract_strided_slice %47 {offsets = [1, 0], sizes = [1, 384], strides = [1, 1]} : vector<2x384xf32> to vector<1x384xf32>
    %54 = vector.broadcast %53 : vector<1x384xf32> to vector<8x384xf32>
    %55 = arith.mulf %37, %54 : vector<8x384xf32>
    %cst_31 = arith.constant dense<0.000000e+00> : vector<8xf32>
    %56 = vector.multi_reduction <add>, %55, %cst_31 [1] : vector<8x384xf32> to vector<8xf32>
    %57 = vector.shape_cast %56 : vector<8xf32> to vector<8x1xf32>
    %c0_32 = arith.constant 0 : index
    %c0_33 = arith.constant 0 : index
    %58 = vector.load %arg8[%c0_32, %c0_33] : memref<384x128xbf16, #tpu.memory_space<vmem>>, vector<384x128xbf16>
    %cst_34 = arith.constant dense<0.000000e+00> : vector<8x128xf32>
    %59 = tpu.matmul %46, %58, %cst_34 {dimension_numbers = #tpu.dot_dimension_numbers<[1], [0], [0], [1], [0, 0, 1, 1], [], []>} : vector<8x384xbf16>, vector<384x128xbf16>, vector<8x128xf32> -> vector<8x128xf32>
    %60 = arith.mulf %59, %59 : vector<8x128xf32>
    %cst_35 = arith.constant dense<0.000000e+00> : vector<8xf32>
    %61 = vector.multi_reduction <add>, %60, %cst_35 [1] : vector<8x128xf32> to vector<8xf32>
    %62 = vector.shape_cast %61 : vector<8xf32> to vector<8x1xf32>
    %cst_36 = arith.constant 1.000000e-24 : f32
    %63 = vector.broadcast %cst_36 : f32 to vector<8x1xf32>
    %64 = arith.maximumf %62, %63 : vector<8x1xf32>
    %65 = math.rsqrt %64 : vector<8x1xf32>
    %66 = vector.broadcast %65 : vector<8x1xf32> to vector<8x128xf32>
    %67 = arith.mulf %59, %66 : vector<8x128xf32>
    %68 = tpu.iota {dimensions = array<i32: 1>} : vector<8x128xi32>
    %c0_i32 = arith.constant 0 : i32
    %69 = vector.broadcast %c0_i32 : i32 to vector<8x128xi32>
    %70 = arith.cmpi eq, %68, %69 : vector<8x128xi32>
    %71 = vector.shape_cast %52 : vector<8x1xf32> to vector<8x1xf32>
    %72 = vector.broadcast %71 : vector<8x1xf32> to vector<8x128xf32>
    %73 = arith.select %70, %72, %67 : vector<8x128xi1>, vector<8x128xf32>
    %c1_i32 = arith.constant 1 : i32
    %74 = vector.broadcast %c1_i32 : i32 to vector<8x128xi32>
    %75 = arith.cmpi eq, %68, %74 : vector<8x128xi32>
    %76 = vector.shape_cast %57 : vector<8x1xf32> to vector<8x1xf32>
    %77 = vector.broadcast %76 : vector<8x1xf32> to vector<8x128xf32>
    %78 = arith.select %75, %77, %73 : vector<8x128xi1>, vector<8x128xf32>
    %c0_37 = arith.constant 0 : index
    %c0_38 = arith.constant 0 : index
    %79 = vector.load %arg9[%c0_37, %c0_38] : memref<8x128xf32, #tpu.memory_space<vmem>>, vector<8x128xf32>
    tpu.vector_store %arg9[%c0_37, %c0_38], %78 {strides = array<i32>} : memref<8x128xf32, #tpu.memory_space<vmem>>, vector<8x128xf32>,
    return
  }
  func.func @transform_0(%arg0: i32) -> (i32, i32) {
    %c0_i32 = arith.constant 0 : i32
    %c0_i32_0 = arith.constant 0 : i32
    return %arg0, %c0_i32 : i32, i32
  }
  func.func @transform_1(%arg0: i32) -> (i32, i32) {
    %c0_i32 = arith.constant 0 : i32
    %c0_i32_0 = arith.constant 0 : i32
    %c0_i32_1 = arith.constant 0 : i32
    return %c0_i32, %c0_i32_0 : i32, i32
  }
  func.func @transform_2(%arg0: i32) -> (i32, i32) {
    %c0_i32 = arith.constant 0 : i32
    %c0_i32_0 = arith.constant 0 : i32
    %c0_i32_1 = arith.constant 0 : i32
    return %c0_i32, %c0_i32_0 : i32, i32
  }
  func.func @transform_3(%arg0: i32) -> (i32, i32) {
    %c0_i32 = arith.constant 0 : i32
    %c0_i32_0 = arith.constant 0 : i32
    %c0_i32_1 = arith.constant 0 : i32
    return %c0_i32, %c0_i32_0 : i32, i32
  }
  func.func @transform_4(%arg0: i32) -> (i32, i32, i32) {
    %c0_i32 = arith.constant 0 : i32
    %c0_i32_0 = arith.constant 0 : i32
    %c0_i32_1 = arith.constant 0 : i32
    %c0_i32_2 = arith.constant 0 : i32
    return %c0_i32, %c0_i32_0, %c0_i32_1 : i32, i32, i32
  }
  func.func @transform_5(%arg0: i32) -> (i32, i32) {
    %c0_i32 = arith.constant 0 : i32
    %c0_i32_0 = arith.constant 0 : i32
    %c0_i32_1 = arith.constant 0 : i32
    return %c0_i32, %c0_i32_0 : i32, i32
  }
  func.func @transform_6(%arg0: i32) -> (i32, i32) {
    %c0_i32 = arith.constant 0 : i32
    %c0_i32_0 = arith.constant 0 : i32
    %c0_i32_1 = arith.constant 0 : i32
    return %c0_i32, %c0_i32_0 : i32, i32
  }
  func.func @transform_7(%arg0: i32) -> (i32, i32) {
    %c0_i32 = arith.constant 0 : i32
    %c0_i32_0 = arith.constant 0 : i32
    %c0_i32_1 = arith.constant 0 : i32
    return %c0_i32, %c0_i32_0 : i32, i32
  }
  func.func @transform_8(%arg0: i32) -> (i32, i32) {
    %c0_i32 = arith.constant 0 : i32
    %c0_i32_0 = arith.constant 0 : i32
    return %arg0, %c0_i32 : i32, i32
  }
}

</mosaic_0001>

<llo_original>
// kernel: critic_down_action.1
$region0: #{critic_down_action.1}
  #allocation0 [shape = 'u32[]', space=smem, size = 0x4, offset = 0x4, fixed_abs, tag = 'smem constant byte address 0x4 - core index']
  #allocation1 [shape = 'u32[144,128]{1,0:T(1,128)}', space=vmem, size = 0x12000, scoped, tag = 'internal scratch']
  %s0 = inlined_call_operand.vmem [shape: bf16[8,128], index: 0, kind: input, shape index: {}]
  %s1 = inlined_call_operand.hbm [shape: bf16[128,1024], index: 1, kind: input, shape index: {}]
  %s2 = inlined_call_operand.hbm [shape: bf16[128,512], index: 2, kind: input, shape index: {}]
  %s3 = inlined_call_operand.hbm [shape: f32[1,1536], index: 3, kind: input, shape index: {}]
  %s4 = inlined_call_operand.hbm [shape: bf16[3,512,384], index: 4, kind: input, shape index: {}]
  %s5 = inlined_call_operand.hbm [shape: f32[1,1152], index: 5, kind: input, shape index: {}]
  %s6 = inlined_call_operand.hbm [shape: f32[2,384], index: 6, kind: input, shape index: {}]
  %s7 = inlined_call_operand.hbm [shape: bf16[384,128], index: 7, kind: input, shape index: {}]
  %s8 = inlined_call_operand.vmem [shape: f32[8,128], index: 8, kind: output, shape index: {}]
  %s9 = sld [smem:[#allocation0]]
  $region70: #{critic_down_action.1} parent=0
    _
  %s11 = ssub.s32 1, %s9
  %s12 = scalar_select 0, %s11, %s9
  $region1: #{critic_down_action.1} parent=0
    #allocation2 [shape = 'u8[262144]{0}', space=vmem, size = 0x40000, scoped, tag = 'input window, operand 1, single buffered']
    #allocation3 [shape = 's32[1]{0}', space=sflag, size = 0x4, scoped, tag = 'scoped memory for critic_down_action.1']
    #allocation4 [shape = 'u8[131072]{0}', space=vmem, size = 0x20000, scoped, tag = 'input window, operand 2, single buffered']
    #allocation5 [shape = 's32[1]{0}', space=sflag, size = 0x4, scoped, tag = 'scoped memory for critic_down_action.1']
    #allocation6 [shape = 'u8[6144]{0}', space=vmem, size = 0x1800, scoped, tag = 'input window, operand 3, single buffered']
    #allocation7 [shape = 'u8[1179648]{0}', space=vmem, size = 0x120000, scoped, tag = 'input window, operand 4, single buffered']
    #allocation8 [shape = 's32[1]{0}', space=sflag, size = 0x4, scoped, tag = 'scoped memory for critic_down_action.1']
    #allocation9 [shape = 'u8[4608]{0}', space=vmem, size = 0x1400, scoped, tag = 'input window, operand 5, single buffered']
    #allocation10 [shape = 'u8[3072]{0}', space=vmem, size = 0xc00, scoped, tag = 'input window, operand 6, single buffered']
    #allocation11 [shape = 's32[1]{0}', space=sflag, size = 0x4, scoped, tag = 'scoped memory for critic_down_action.1']
    #allocation12 [shape = 'u8[98304]{0}', space=vmem, size = 0x18000, scoped, tag = 'input window, operand 7, single buffered']
    %13 = vsyncpa [#allocation3], 0
    %14 = vsyncpa [#allocation5], 0
    %15 = vsyncpa [#allocation8], 0
    %16 = vsyncpa [#allocation11], 0
    // Predicated region
    $region2: #{critic_down_action.1} parent=1 // pred_check
      _
    $region3: #{critic_down_action.1} parent=1 // pred_check_branch
      %18 = sbr.rel (0) target = $region5
    $region4: #{critic_down_action.1} parent=1 // pred_region
      _
    $region5: #{critic_down_action.1} parent=1 // pred_fallthru
      _
    // Predicated region
    $region6: #{critic_down_action.1} parent=1 // pred_check
      _
    $region7: #{critic_down_action.1} parent=1 // pred_check_branch
      %20 = sbr.rel (0) target = $region9
    $region8: #{critic_down_action.1} parent=1 // pred_region
      %s22 = ssub.s32 8192, 8192
      %23 = vsyncadd [#allocation3], %s22
      %s24 = sshll.u32 [#allocation2], 4
      %s25 = int_to_ptr.vmem [resolvable:$true] %s24
      %30 = dma.hbm_to_vmem [thread:$0]  %s1, 8192, %s25, [#allocation3], 512, 512, 32
    $region9: #{critic_down_action.1} parent=1 // pred_fallthru
      _
    // Predicated region
    $region10: #{critic_down_action.1} parent=1 // pred_check
      _
    $region11: #{critic_down_action.1} parent=1 // pred_check_branch
      %32 = sbr.rel (0) target = $region13
    $region12: #{critic_down_action.1} parent=1 // pred_region
      %s34 = ssub.s32 4096, 4096
      %35 = vsyncadd [#allocation5], %s34
      %s36 = sshll.u32 [#allocation4], 4
      %s37 = int_to_ptr.vmem [resolvable:$true] %s36
      %42 = dma.hbm_to_vmem [thread:$0]  %s2, 4096, %s37, [#allocation5], 256, 256, 16
    $region13: #{critic_down_action.1} parent=1 // pred_fallthru
      _
    // Predicated region
    $region14: #{critic_down_action.1} parent=1 // pred_check
      _
    $region15: #{critic_down_action.1} parent=1 // pred_check_branch
      %44 = sbr.rel (0) target = $region17
    $region16: #{critic_down_action.1} parent=1 // pred_region
      %s46 = ssub.s32 192, 192
      %47 = vsyncadd [#allocation5], %s46
      %s49 = sshll.u32 [#allocation6], 4
      %s50 = int_to_ptr.vmem [resolvable:$true] %s49
      %52 = dma.hbm_to_vmem [thread:$0]  %s3, 192, %s50, [#allocation5]
    $region17: #{critic_down_action.1} parent=1 // pred_fallthru
      _
    // Predicated region
    $region18: #{critic_down_action.1} parent=1 // pred_check
      _
    $region19: #{critic_down_action.1} parent=1 // pred_check_branch
      %54 = sbr.rel (0) target = $region21
    $region20: #{critic_down_action.1} parent=1 // pred_region
      %s56 = ssub.s32 36864, 36864
      %57 = vsyncadd [#allocation8], %s56
      %s58 = sshll.u32 [#allocation7], 4
      %s59 = int_to_ptr.vmem [resolvable:$true] %s58
      %64 = dma.hbm_to_vmem [thread:$0]  %s4, 36864, %s59, [#allocation8], 192, 192, 12
    $region21: #{critic_down_action.1} parent=1 // pred_fallthru
      _
    // Predicated region
    $region22: #{critic_down_action.1} parent=1 // pred_check
      _
    $region23: #{critic_down_action.1} parent=1 // pred_check_branch
      %66 = sbr.rel (0) target = $region25
    $region24: #{critic_down_action.1} parent=1 // pred_region
      %s68 = ssub.s32 144, 144
      %69 = vsyncadd [#allocation8], %s68
      %s71 = sshll.u32 [#allocation9], 4
      %s72 = int_to_ptr.vmem [resolvable:$true] %s71
      %74 = dma.hbm_to_vmem [thread:$0]  %s5, 144, %s72, [#allocation8]
    $region25: #{critic_down_action.1} parent=1 // pred_fallthru
      _
    // Predicated region
    $region26: #{critic_down_action.1} parent=1 // pred_check
      _
    $region27: #{critic_down_action.1} parent=1 // pred_check_branch
      %76 = sbr.rel (0) target = $region29
    $region28: #{critic_down_action.1} parent=1 // pred_region
      %s78 = ssub.s32 96, 96
      %79 = vsyncadd [#allocation11], %s78
      %s81 = sshll.u32 [#allocation10], 4
      %s82 = int_to_ptr.vmem [resolvable:$true] %s81
      %84 = dma.hbm_to_vmem [thread:$0]  %s6, 96, %s82, [#allocation11]
    $region29: #{critic_down_action.1} parent=1 // pred_fallthru
      _
    // Predicated region
    $region30: #{critic_down_action.1} parent=1 // pred_check
      _
    $region31: #{critic_down_action.1} parent=1 // pred_check_branch
      %86 = sbr.rel (0) target = $region33
    $region32: #{critic_down_action.1} parent=1 // pred_region
      %s88 = ssub.s32 3072, 3072
      %89 = vsyncadd [#allocation11], %s88
      %s90 = sshll.u32 [#allocation12], 4
      %s91 = int_to_ptr.vmem [resolvable:$true] %s90
      %96 = dma.hbm_to_vmem [thread:$0]  %s7, 3072, %s91, [#allocation11], 64, 64, 4
    $region33: #{critic_down_action.1} parent=1 // pred_fallthru
      _
    // Predicated region
    $region34: #{critic_down_action.1} parent=1 // pred_check
      _
    $region35: #{critic_down_action.1} parent=1 // pred_check_branch
      %98 = sbr.rel (0) target = $region37
    $region36: #{critic_down_action.1} parent=1 // pred_region
      %99 = dma.done [#allocation3], 8192
    $region37: #{critic_down_action.1} parent=1 // pred_fallthru
      _
    // Predicated region
    $region38: #{critic_down_action.1} parent=1 // pred_check
      _
    $region39: #{critic_down_action.1} parent=1 // pred_check_branch
      %101 = sbr.rel (0) target = $region41
    $region40: #{critic_down_action.1} parent=1 // pred_region
      %102 = dma.done [#allocation5], 4096
    $region41: #{critic_down_action.1} parent=1 // pred_fallthru
      _
    // Predicated region
    $region42: #{critic_down_action.1} parent=1 // pred_check
      _
    $region43: #{critic_down_action.1} parent=1 // pred_check_branch
      %104 = sbr.rel (0) target = $region45
    $region44: #{critic_down_action.1} parent=1 // pred_region
      %105 = dma.done [#allocation5], 192
    $region45: #{critic_down_action.1} parent=1 // pred_fallthru
      _
    // Predicated region
    $region46: #{critic_down_action.1} parent=1 // pred_check
      _
    $region47: #{critic_down_action.1} parent=1 // pred_check_branch
      %107 = sbr.rel (0) target = $region49
    $region48: #{critic_down_action.1} parent=1 // pred_region
      %108 = dma.done [#allocation8], 36864
    $region49: #{critic_down_action.1} parent=1 // pred_fallthru
      _
    // Predicated region
    $region50: #{critic_down_action.1} parent=1 // pred_check
      _
    $region51: #{critic_down_action.1} parent=1 // pred_check_branch
      %110 = sbr.rel (0) target = $region53
    $region52: #{critic_down_action.1} parent=1 // pred_region
      %111 = dma.done [#allocation8], 144
    $region53: #{critic_down_action.1} parent=1 // pred_fallthru
      _
    // Predicated region
    $region54: #{critic_down_action.1} parent=1 // pred_check
      _
    $region55: #{critic_down_action.1} parent=1 // pred_check_branch
      %113 = sbr.rel (0) target = $region57
    $region56: #{critic_down_action.1} parent=1 // pred_region
      %114 = dma.done [#allocation11], 96
    $region57: #{critic_down_action.1} parent=1 // pred_fallthru
      _
    // Predicated region
    $region58: #{critic_down_action.1} parent=1 // pred_check
      _
    $region59: #{critic_down_action.1} parent=1 // pred_check_branch
      %116 = sbr.rel (0) target = $region61
    $region60: #{critic_down_action.1} parent=1 // pred_region
      %117 = dma.done [#allocation11], 3072
    $region61: #{critic_down_action.1} parent=1 // pred_fallthru
      _
    %v119 = vld [vmem:[%s0] sm:$0xf]
    %v120 = vunpack.c.l.bf16 %v119
    %v121 = vtanh.pop %v120
    %v122 = vpack.c.bf16 %v121, %v121
    %v123 = vld [vmem:[#allocation2] sm:$0xff]
    %v124 = vld [vmem:[#allocation2 + $0x8] sm:$0xff]
    %v125 = vld [vmem:[#allocation2 + $0x10] sm:$0xff]
    %v126 = vld [vmem:[#allocation2 + $0x18] sm:$0xff]
    %v127 = vld [vmem:[#allocation2 + $0x20] sm:$0xff]
    %v128 = vld [vmem:[#allocation2 + $0x28] sm:$0xff]
    %v129 = vld [vmem:[#allocation2 + $0x30] sm:$0xff]
    %v130 = vld [vmem:[#allocation2 + $0x38] sm:$0xff]
    %v131 = vld [vmem:[#allocation2 + $0x40] sm:$0xff]
    %v132 = vld [vmem:[#allocation2 + $0x48] sm:$0xff]
    %v133 = vld [vmem:[#allocation2 + $0x50] sm:$0xff]
    %v134 = vld [vmem:[#allocation2 + $0x58] sm:$0xff]
    %v135 = vld [vmem:[#allocation2 + $0x60] sm:$0xff]
    %v136 = vld [vmem:[#allocation2 + $0x68] sm:$0xff]
    %v137 = vld [vmem:[#allocation2 + $0x70] sm:$0xff]
    %v138 = vld [vmem:[#allocation2 + $0x78] sm:$0xff]
    %v139 = vld [vmem:[#allocation2 + $0x80] sm:$0xff]
    %v140 = vld [vmem:[#allocation2 + $0x88] sm:$0xff]
    %v141 = vld [vmem:[#allocation2 + $0x90] sm:$0xff]
    %v142 = vld [vmem:[#allocation2 + $0x98] sm:$0xff]
    %v143 = vld [vmem:[#allocation2 + $0xa0] sm:$0xff]
    %v144 = vld [vmem:[#allocation2 + $0xa8] sm:$0xff]
    %v145 = vld [vmem:[#allocation2 + $0xb0] sm:$0xff]
    %v146 = vld [vmem:[#allocation2 + $0xb8] sm:$0xff]
    %v147 = vld [vmem:[#allocation2 + $0xc0] sm:$0xff]
    %v148 = vld [vmem:[#allocation2 + $0xc8] sm:$0xff]
    %v149 = vld [vmem:[#allocation2 + $0xd0] sm:$0xff]
    %v150 = vld [vmem:[#allocation2 + $0xd8] sm:$0xff]
    %v151 = vld [vmem:[#allocation2 + $0xe0] sm:$0xff]
    %v152 = vld [vmem:[#allocation2 + $0xe8] sm:$0xff]
    %v153 = vld [vmem:[#allocation2 + $0xf0] sm:$0xff]
    %v154 = vld [vmem:[#allocation2 + $0xf8] sm:$0xff]
    %v155 = vld [vmem:[#allocation2 + $0x100] sm:$0xff]
    %v156 = vld [vmem:[#allocation2 + $0x108] sm:$0xff]
    %v157 = vld [vmem:[#allocation2 + $0x110] sm:$0xff]
    %v158 = vld [vmem:[#allocation2 + $0x118] sm:$0xff]
    %v159 = vld [vmem:[#allocation2 + $0x120] sm:$0xff]
    %v160 = vld [vmem:[#allocation2 + $0x128] sm:$0xff]
    %v161 = vld [vmem:[#allocation2 + $0x130] sm:$0xff]
    %v162 = vld [vmem:[#allocation2 + $0x138] sm:$0xff]
    %v163 = vld [vmem:[#allocation2 + $0x140] sm:$0xff]
    %v164 = vld [vmem:[#allocation2 + $0x148] sm:$0xff]
    %v165 = vld [vmem:[#allocation2 + $0x150] sm:$0xff]
    %v166 = vld [vmem:[#allocation2 + $0x158] sm:$0xff]
    %v167 = vld [vmem:[#allocation2 + $0x160] sm:$0xff]
    %v168 = vld [vmem:[#allocation2 + $0x168] sm:$0xff]
    %v169 = vld [vmem:[#allocation2 + $0x170] sm:$0xff]
    %v170 = vld [vmem:[#allocation2 + $0x178] sm:$0xff]
    %v171 = vld [vmem:[#allocation2 + $0x180] sm:$0xff]
    %v172 = vld [vmem:[#allocation2 + $0x188] sm:$0xff]
    %v173 = vld [vmem:[#allocation2 + $0x190] sm:$0xff]
    %v174 = vld [vmem:[#allocation2 + $0x198] sm:$0xff]
    %v175 = vld [vmem:[#allocation2 + $0x1a0] sm:$0xff]
    %v176 = vld [vmem:[#allocation2 + $0x1a8] sm:$0xff]
    %v177 = vld [vmem:[#allocation2 + $0x1b0] sm:$0xff]
    %v178 = vld [vmem:[#allocation2 + $0x1b8] sm:$0xff]
    %v179 = vld [vmem:[#allocation2 + $0x1c0] sm:$0xff]
    %v180 = vld [vmem:[#allocation2 + $0x1c8] sm:$0xff]
    %v181 = vld [vmem:[#allocation2 + $0x1d0] sm:$0xff]
    %v182 = vld [vmem:[#allocation2 + $0x1d8] sm:$0xff]
    %v183 = vld [vmem:[#allocation2 + $0x1e0] sm:$0xff]
    %v184 = vld [vmem:[#allocation2 + $0x1e8] sm:$0xff]
    %v185 = vld [vmem:[#allocation2 + $0x1f0] sm:$0xff]
    %v186 = vld [vmem:[#allocation2 + $0x1f8] sm:$0xff]
    %v187 = vld [vmem:[#allocation6] sm:$0xff]
    %v189 = vlaneseq
    %v190 = vshrl.u32 %v189, 7
    %v191 = vsub.s32 0, %v190
    %v192 = vrot.slane %v187, %v191
    %v193 = vlaneseq
    %v194 = vshrl.u32 %v193, 7
    %v195 = vsub.s32 1, %v194
    %v196 = vrot.slane %v187, %v195
    %v197 = vlaneseq
    %v198 = vshrl.u32 %v197, 7
    %v199 = vsub.s32 2, %v198
    %v200 = vrot.slane %v187, %v199
    %v201 = vlaneseq
    %v202 = vshrl.u32 %v201, 7
    %v203 = vsub.s32 3, %v202
    %v204 = vrot.slane %v187, %v203
    %v205 = vlaneseq
    %v206 = vshrl.u32 %v205, 7
    %v207 = vsub.s32 4, %v206
    %v208 = vrot.slane %v187, %v207
    %v209 = vlaneseq
    %v210 = vshrl.u32 %v209, 7
    %v211 = vsub.s32 5, %v210
    %v212 = vrot.slane %v187, %v211
    %v213 = vlaneseq
    %v214 = vshrl.u32 %v213, 7
    %v215 = vsub.s32 6, %v214
    %v216 = vrot.slane %v187, %v215
    %v217 = vlaneseq
    %v218 = vshrl.u32 %v217, 7
    %v219 = vsub.s32 7, %v218
    %v220 = vrot.slane %v187, %v219
    %v293 = vunpack.c.l.b16 %v123
    %v294 = vunpack.c.h.b16 %v123
    %v295 = vunpack.c.l.b16 %v124
    %v296 = vunpack.c.h.b16 %v124
    %v297 = vunpack.c.l.b16 %v125
    %v298 = vunpack.c.h.b16 %v125
    %v299 = vunpack.c.l.b16 %v126
    %v300 = vunpack.c.h.b16 %v126
    %v301 = vunpack.c.l.b16 %v127
    %v302 = vunpack.c.h.b16 %v127
    %v303 = vunpack.c.l.b16 %v128
    %v304 = vunpack.c.h.b16 %v128
    %v305 = vunpack.c.l.b16 %v129
    %v306 = vunpack.c.h.b16 %v129
    %v307 = vunpack.c.l.b16 %v130
    %v308 = vunpack.c.h.b16 %v130
    %v309 = vunpack.c.l.b16 %v131
    %v310 = vunpack.c.h.b16 %v131
    %v311 = vunpack.c.l.b16 %v132
    %v312 = vunpack.c.h.b16 %v132
    %v313 = vunpack.c.l.b16 %v133
    %v314 = vunpack.c.h.b16 %v133
    %v315 = vunpack.c.l.b16 %v134
    %v316 = vunpack.c.h.b16 %v134
    %v317 = vunpack.c.l.b16 %v135
    %v318 = vunpack.c.h.b16 %v135
    %v319 = vunpack.c.l.b16 %v136
    %v320 = vunpack.c.h.b16 %v136
    %v321 = vunpack.c.l.b16 %v137
    %v322 = vunpack.c.h.b16 %v137
    %v323 = vunpack.c.l.b16 %v138
    %v324 = vunpack.c.h.b16 %v138
    %v325 = vunpack.c.l.b16 %v139
    %v326 = vunpack.c.h.b16 %v139
    %v327 = vunpack.c.l.b16 %v140
    %v328 = vunpack.c.h.b16 %v140
    %v329 = vunpack.c.l.b16 %v141
    %v330 = vunpack.c.h.b16 %v141
    %v331 = vunpack.c.l.b16 %v142
    %v332 = vunpack.c.h.b16 %v142
    %v333 = vunpack.c.l.b16 %v143
    %v334 = vunpack.c.h.b16 %v143
    %v335 = vunpack.c.l.b16 %v144
    %v336 = vunpack.c.h.b16 %v144
    %v337 = vunpack.c.l.b16 %v145
    %v338 = vunpack.c.h.b16 %v145
    %v339 = vunpack.c.l.b16 %v146
    %v340 = vunpack.c.h.b16 %v146
    %v341 = vunpack.c.l.b16 %v147
    %v342 = vunpack.c.h.b16 %v147
    %v343 = vunpack.c.l.b16 %v148
    %v344 = vunpack.c.h.b16 %v148
    %v345 = vunpack.c.l.b16 %v149
    %v346 = vunpack.c.h.b16 %v149
    %v347 = vunpack.c.l.b16 %v150
    %v348 = vunpack.c.h.b16 %v150
    %v349 = vunpack.c.l.b16 %v151
    %v350 = vunpack.c.h.b16 %v151
    %v351 = vunpack.c.l.b16 %v152
    %v352 = vunpack.c.h.b16 %v152
    %v353 = vunpack.c.l.b16 %v153
    %v354 = vunpack.c.h.b16 %v153
    %v355 = vunpack.c.l.b16 %v154
    %v356 = vunpack.c.h.b16 %v154
    %v357 = vunpack.c.l.b16 %v155
    %v358 = vunpack.c.h.b16 %v155
    %v359 = vunpack.c.l.b16 %v156
    %v360 = vunpack.c.h.b16 %v156
    %v361 = vunpack.c.l.b16 %v157
    %v362 = vunpack.c.h.b16 %v157
    %v363 = vunpack.c.l.b16 %v158
    %v364 = vunpack.c.h.b16 %v158
    %v365 = vunpack.c.l.b16 %v159
    %v366 = vunpack.c.h.b16 %v159
    %v367 = vunpack.c.l.b16 %v160
    %v368 = vunpack.c.h.b16 %v160
    %v369 = vunpack.c.l.b16 %v161
    %v370 = vunpack.c.h.b16 %v161
    %v371 = vunpack.c.l.b16 %v162
    %v372 = vunpack.c.h.b16 %v162
    %v373 = vunpack.c.l.b16 %v163
    %v374 = vunpack.c.h.b16 %v163
    %v375 = vunpack.c.l.b16 %v164
    %v376 = vunpack.c.h.b16 %v164
    %v377 = vunpack.c.l.b16 %v165
    %v378 = vunpack.c.h.b16 %v165
    %v379 = vunpack.c.l.b16 %v166
    %v380 = vunpack.c.h.b16 %v166
    %v381 = vunpack.c.l.b16 %v167
    %v382 = vunpack.c.h.b16 %v167
    %v383 = vunpack.c.l.b16 %v168
    %v384 = vunpack.c.h.b16 %v168
    %v385 = vunpack.c.l.b16 %v169
    %v386 = vunpack.c.h.b16 %v169
    %v387 = vunpack.c.l.b16 %v170
    %v388 = vunpack.c.h.b16 %v170
    %v389 = vunpack.c.l.b16 %v171
    %v390 = vunpack.c.h.b16 %v171
    %v391 = vunpack.c.l.b16 %v172
    %v392 = vunpack.c.h.b16 %v172
    %v393 = vunpack.c.l.b16 %v173
    %v394 = vunpack.c.h.b16 %v173
    %v395 = vunpack.c.l.b16 %v174
    %v396 = vunpack.c.h.b16 %v174
    %v397 = vunpack.c.l.b16 %v175
    %v398 = vunpack.c.h.b16 %v175
    %v399 = vunpack.c.l.b16 %v176
    %v400 = vunpack.c.h.b16 %v176
    %v401 = vunpack.c.l.b16 %v177
    %v402 = vunpack.c.h.b16 %v177
    %v403 = vunpack.c.l.b16 %v178
    %v404 = vunpack.c.h.b16 %v178
    %v405 = vunpack.c.l.b16 %v179
    %v406 = vunpack.c.h.b16 %v179
    %v407 = vunpack.c.l.b16 %v180
    %v408 = vunpack.c.h.b16 %v180
    %v409 = vunpack.c.l.b16 %v181
    %v410 = vunpack.c.h.b16 %v181
    %v411 = vunpack.c.l.b16 %v182
    %v412 = vunpack.c.h.b16 %v182
    %v413 = vunpack.c.l.b16 %v183
    %v414 = vunpack.c.h.b16 %v183
    %v415 = vunpack.c.l.b16 %v184
    %v416 = vunpack.c.h.b16 %v184
    %v417 = vunpack.c.l.b16 %v185
    %v418 = vunpack.c.h.b16 %v185
    %v419 = vunpack.c.l.b16 %v186
    %v420 = vunpack.c.h.b16 %v186
    %v421 = vpack.c.b16 %v301, %v293
    %v422 = vpack.c.b16 %v302, %v294
    %v423 = vpack.c.b16 %v303, %v295
    %v424 = vpack.c.b16 %v304, %v296
    %v425 = vpack.c.b16 %v305, %v297
    %v426 = vpack.c.b16 %v306, %v298
    %v427 = vpack.c.b16 %v307, %v299
    %v428 = vpack.c.b16 %v308, %v300
    %v429 = vpack.c.b16 %v317, %v309
    %v430 = vpack.c.b16 %v318, %v310
    %v431 = vpack.c.b16 %v319, %v311
    %v432 = vpack.c.b16 %v320, %v312
    %v433 = vpack.c.b16 %v321, %v313
    %v434 = vpack.c.b16 %v322, %v314
    %v435 = vpack.c.b16 %v323, %v315
    %v436 = vpack.c.b16 %v324, %v316
    %v437 = vpack.c.b16 %v333, %v325
    %v438 = vpack.c.b16 %v334, %v326
    %v439 = vpack.c.b16 %v335, %v327
    %v440 = vpack.c.b16 %v336, %v328
    %v441 = vpack.c.b16 %v337, %v329
    %v442 = vpack.c.b16 %v338, %v330
    %v443 = vpack.c.b16 %v339, %v331
    %v444 = vpack.c.b16 %v340, %v332
    %v445 = vpack.c.b16 %v349, %v341
    %v446 = vpack.c.b16 %v350, %v342
    %v447 = vpack.c.b16 %v351, %v343
    %v448 = vpack.c.b16 %v352, %v344
    %v449 = vpack.c.b16 %v353, %v345
    %v450 = vpack.c.b16 %v354, %v346
    %v451 = vpack.c.b16 %v355, %v347
    %v452 = vpack.c.b16 %v356, %v348
    %v453 = vpack.c.b16 %v365, %v357
    %v454 = vpack.c.b16 %v366, %v358
    %v455 = vpack.c.b16 %v367, %v359
    %v456 = vpack.c.b16 %v368, %v360
    %v457 = vpack.c.b16 %v369, %v361
    %v458 = vpack.c.b16 %v370, %v362
    %v459 = vpack.c.b16 %v371, %v363
    %v460 = vpack.c.b16 %v372, %v364
    %v461 = vpack.c.b16 %v381, %v373
    %v462 = vpack.c.b16 %v382, %v374
    %v463 = vpack.c.b16 %v383, %v375
    %v464 = vpack.c.b16 %v384, %v376
    %v465 = vpack.c.b16 %v385, %v377
    %v466 = vpack.c.b16 %v386, %v378
    %v467 = vpack.c.b16 %v387, %v379
    %v468 = vpack.c.b16 %v388, %v380
    %v469 = vpack.c.b16 %v397, %v389
    %v470 = vpack.c.b16 %v398, %v390
    %v471 = vpack.c.b16 %v399, %v391
    %v472 = vpack.c.b16 %v400, %v392
    %v473 = vpack.c.b16 %v401, %v393
    %v474 = vpack.c.b16 %v402, %v394
    %v475 = vpack.c.b16 %v403, %v395
    %v476 = vpack.c.b16 %v404, %v396
    %v477 = vpack.c.b16 %v413, %v405
    %v478 = vpack.c.b16 %v414, %v406
    %v479 = vpack.c.b16 %v415, %v407
    %v480 = vpack.c.b16 %v416, %v408
    %v481 = vpack.c.b16 %v417, %v409
    %v482 = vpack.c.b16 %v418, %v410
    %v483 = vpack.c.b16 %v419, %v411
    %v484 = vpack.c.b16 %v420, %v412
    %549 = vmatprep.subr.bf16.mxu0 %v422
    %550 = vmatpush1.bf16.msra.mxu0 %v421
    %551 = vmatprep.subr.bf16.mxu0 %v430
    %552 = vmatpush1.bf16.msra.mxu0 %v429
    %553 = vmatprep.subr.bf16.mxu0 %v438
    %554 = vmatpush1.bf16.msra.mxu0 %v437
    %555 = vmatprep.subr.bf16.mxu0 %v446
    %556 = vmatpush1.bf16.msra.mxu0 %v445
    %557 = vmatprep.subr.bf16.mxu0 %v454
    %558 = vmatpush1.bf16.msra.mxu0 %v453
    %559 = vmatprep.subr.bf16.mxu0 %v462
    %560 = vmatpush1.bf16.msra.mxu0 %v461
    %561 = vmatprep.subr.bf16.mxu0 %v470
    %562 = vmatpush1.bf16.msra.mxu0 %v469
    %563 = vmatprep.subr.bf16.mxu0 %v478
    %564 = vmatpush1.bf16.msra.mxu0 %v477
    %565 = vmatprep.subr.bf16.mxu0 0
    %566 = vmatpush1.bf16.msra.mxu0 0
    %567 = vmatprep.subr.bf16.mxu0 0
    %568 = vmatpush1.bf16.msra.mxu0 0
    %569 = vmatprep.subr.bf16.mxu0 0
    %570 = vmatpush1.bf16.msra.mxu0 0
    %571 = vmatprep.subr.bf16.mxu0 0
    %572 = vmatpush1.bf16.msra.mxu0 0
    %573 = vmatprep.subr.bf16.mxu0 0
    %574 = vmatpush1.bf16.msra.mxu0 0
    %575 = vmatprep.subr.bf16.mxu0 0
    %576 = vmatpush1.bf16.msra.mxu0 0
    %577 = vmatprep.subr.bf16.mxu0 0
    %578 = vmatpush1.bf16.msra.mxu0 0
    %579 = vmatprep.subr.bf16.mxu0 0
    %580 = vmatpush1.bf16.msra.mxu0 0
    %581 = vmatprep.mubr.bf16.mxu0 0
    %582 = vmatmul.mubr.bf16.gmra.mrb[0].mxu0 %v119
    %v583 = vpop.f32.mrb[0].mxu0
    %v584 = vadd.f32 %v192, %v583
    %v585 = vpop.f32.mrb[0].mxu0
    %v586 = vadd.f32 %v196, %v585
    %v587 = vpop.f32.mrb[0].mxu0
    %v588 = vpop.f32.mrb[0].mxu0
    %589 = vdwg.mxu0
    %590 = vmatprep.subr.bf16.mxu0 %v424
    %591 = vmatpush1.bf16.msra.mxu0 %v423
    %592 = vmatprep.subr.bf16.mxu0 %v432
    %593 = vmatpush1.bf16.msra.mxu0 %v431
    %594 = vmatprep.subr.bf16.mxu0 %v440
    %595 = vmatpush1.bf16.msra.mxu0 %v439
    %596 = vmatprep.subr.bf16.mxu0 %v448
    %597 = vmatpush1.bf16.msra.mxu0 %v447
    %598 = vmatprep.subr.bf16.mxu0 %v456
    %599 = vmatpush1.bf16.msra.mxu0 %v455
    %600 = vmatprep.subr.bf16.mxu0 %v464
    %601 = vmatpush1.bf16.msra.mxu0 %v463
    %602 = vmatprep.subr.bf16.mxu0 %v472
    %603 = vmatpush1.bf16.msra.mxu0 %v471
    %604 = vmatprep.subr.bf16.mxu0 %v480
    %605 = vmatpush1.bf16.msra.mxu0 %v479
    %606 = vmatprep.subr.bf16.mxu0 0
    %607 = vmatpush1.bf16.msra.mxu0 0
    %608 = vmatprep.subr.bf16.mxu0 0
    %609 = vmatpush1.bf16.msra.mxu0 0
    %610 = vmatprep.subr.bf16.mxu0 0
    %611 = vmatpush1.bf16.msra.mxu0 0
    %612 = vmatprep.subr.bf16.mxu0 0
    %613 = vmatpush1.bf16.msra.mxu0 0
    %614 = vmatprep.subr.bf16.mxu0 0
    %615 = vmatpush1.bf16.msra.mxu0 0
    %616 = vmatprep.subr.bf16.mxu0 0
    %617 = vmatpush1.bf16.msra.mxu0 0
    %618 = vmatprep.subr.bf16.mxu0 0
    %619 = vmatpush1.bf16.msra.mxu0 0
    %620 = vmatprep.subr.bf16.mxu0 0
    %621 = vmatpush1.bf16.msra.mxu0 0
    %622 = vmatprep.mubr.bf16.mxu0 0
    %623 = vmatmul.mubr.bf16.gmra.mrb[0].mxu0 %v119
    %v624 = vpop.f32.mrb[0].mxu0
    %v625 = vadd.f32 %v200, %v624
    %v626 = vpop.f32.mrb[0].mxu0
    %v627 = vadd.f32 %v204, %v626
    %v628 = vpop.f32.mrb[0].mxu0
    %v629 = vpop.f32.mrb[0].mxu0
    %630 = vdwg.mxu0
    %631 = vmatprep.subr.bf16.mxu0 %v426
    %632 = vmatpush1.bf16.msra.mxu0 %v425
    %633 = vmatprep.subr.bf16.mxu0 %v434
    %634 = vmatpush1.bf16.msra.mxu0 %v433
    %635 = vmatprep.subr.bf16.mxu0 %v442
    %636 = vmatpush1.bf16.msra.mxu0 %v441
    %637 = vmatprep.subr.bf16.mxu0 %v450
    %638 = vmatpush1.bf16.msra.mxu0 %v449
    %639 = vmatprep.subr.bf16.mxu0 %v458
    %640 = vmatpush1.bf16.msra.mxu0 %v457
    %641 = vmatprep.subr.bf16.mxu0 %v466
    %642 = vmatpush1.bf16.msra.mxu0 %v465
    %643 = vmatprep.subr.bf16.mxu0 %v474
    %644 = vmatpush1.bf16.msra.mxu0 %v473
    %645 = vmatprep.subr.bf16.mxu0 %v482
    %646 = vmatpush1.bf16.msra.mxu0 %v481
    %647 = vmatprep.subr.bf16.mxu0 0
    %648 = vmatpush1.bf16.msra.mxu0 0
    %649 = vmatprep.subr.bf16.mxu0 0
    %650 = vmatpush1.bf16.msra.mxu0 0
    %651 = vmatprep.subr.bf16.mxu0 0
    %652 = vmatpush1.bf16.msra.mxu0 0
    %653 = vmatprep.subr.bf16.mxu0 0
    %654 = vmatpush1.bf16.msra.mxu0 0
    %655 = vmatprep.subr.bf16.mxu0 0
    %656 = vmatpush1.bf16.msra.mxu0 0
    %657 = vmatprep.subr.bf16.mxu0 0
    %658 = vmatpush1.bf16.msra.mxu0 0
    %659 = vmatprep.subr.bf16.mxu0 0
    %660 = vmatpush1.bf16.msra.mxu0 0
    %661 = vmatprep.subr.bf16.mxu0 0
    %662 = vmatpush1.bf16.msra.mxu0 0
    %663 = vmatprep.mubr.bf16.mxu0 0
    %664 = vmatmul.mubr.bf16.gmra.mrb[0].mxu0 %v119
    %v665 = vpop.f32.mrb[0].mxu0
    %v666 = vadd.f32 %v208, %v665
    %v667 = vpop.f32.mrb[0].mxu0
    %v668 = vadd.f32 %v212, %v667
    %v669 = vpop.f32.mrb[0].mxu0
    %v670 = vpop.f32.mrb[0].mxu0
    %671 = vdwg.mxu0
    %672 = vmatprep.subr.bf16.mxu0 %v428
    %673 = vmatpush1.bf16.msra.mxu0 %v427
    %674 = vmatprep.subr.bf16.mxu0 %v436
    %675 = vmatpush1.bf16.msra.mxu0 %v435
    %676 = vmatprep.subr.bf16.mxu0 %v444
    %677 = vmatpush1.bf16.msra.mxu0 %v443
    %678 = vmatprep.subr.bf16.mxu0 %v452
    %679 = vmatpush1.bf16.msra.mxu0 %v451
    %680 = vmatprep.subr.bf16.mxu0 %v460
    %681 = vmatpush1.bf16.msra.mxu0 %v459
    %682 = vmatprep.subr.bf16.mxu0 %v468
    %683 = vmatpush1.bf16.msra.mxu0 %v467
    %684 = vmatprep.subr.bf16.mxu0 %v476
    %685 = vmatpush1.bf16.msra.mxu0 %v475
    %686 = vmatprep.subr.bf16.mxu0 %v484
    %687 = vmatpush1.bf16.msra.mxu0 %v483
    %688 = vmatprep.subr.bf16.mxu0 0
    %689 = vmatpush1.bf16.msra.mxu0 0
    %690 = vmatprep.subr.bf16.mxu0 0
    %691 = vmatpush1.bf16.msra.mxu0 0
    %692 = vmatprep.subr.bf16.mxu0 0
    %693 = vmatpush1.bf16.msra.mxu0 0
    %694 = vmatprep.subr.bf16.mxu0 0
    %695 = vmatpush1.bf16.msra.mxu0 0
    %696 = vmatprep.subr.bf16.mxu0 0
    %697 = vmatpush1.bf16.msra.mxu0 0
    %698 = vmatprep.subr.bf16.mxu0 0
    %699 = vmatpush1.bf16.msra.mxu0 0
    %700 = vmatprep.subr.bf16.mxu0 0
    %701 = vmatpush1.bf16.msra.mxu0 0
    %702 = vmatprep.subr.bf16.mxu0 0
    %703 = vmatpush1.bf16.msra.mxu0 0
    %704 = vmatprep.mubr.bf16.mxu0 0
    %705 = vmatmul.mubr.bf16.gmra.mrb[0].mxu0 %v119
    %v706 = vpop.f32.mrb[0].mxu0
    %v707 = vadd.f32 %v216, %v706
    %v708 = vpop.f32.mrb[0].mxu0
    %v709 = vadd.f32 %v220, %v708
    %v710 = vpop.f32.mrb[0].mxu0
    %v711 = vpop.f32.mrb[0].mxu0
    %712 = vdwg.mxu0
    %v713 = vmax.f32 %v584, 0.0
    %v714 = vmax.f32 %v586, 0.0
    %v715 = vmax.f32 %v625, 0.0
    %v716 = vmax.f32 %v627, 0.0
    %v717 = vmax.f32 %v666, 0.0
    %v718 = vmax.f32 %v668, 0.0
    %v719 = vmax.f32 %v707, 0.0
    %v720 = vmax.f32 %v709, 0.0
    %v721 = vpack.c.bf16 %v713, %v713
    %v722 = vpack.c.bf16 %v714, %v714
    %v723 = vpack.c.bf16 %v715, %v715
    %v724 = vpack.c.bf16 %v716, %v716
    %v725 = vpack.c.bf16 %v717, %v717
    %v726 = vpack.c.bf16 %v718, %v718
    %v727 = vpack.c.bf16 %v719, %v719
    %v728 = vpack.c.bf16 %v720, %v720
    %v729 = vld [vmem:[#allocation4] sm:$0xff]
    %v730 = vld [vmem:[#allocation4 + $0x8] sm:$0xff]
    %v731 = vld [vmem:[#allocation4 + $0x10] sm:$0xff]
    %v732 = vld [vmem:[#allocation4 + $0x18] sm:$0xff]
    %v733 = vld [vmem:[#allocation4 + $0x20] sm:$0xff]
    %v734 = vld [vmem:[#allocation4 + $0x28] sm:$0xff]
    %v735 = vld [vmem:[#allocation4 + $0x30] sm:$0xff]
    %v736 = vld [vmem:[#allocation4 + $0x38] sm:$0xff]
    %v737 = vld [vmem:[#allocation4 + $0x40] sm:$0xff]
    %v738 = vld [vmem:[#allocation4 + $0x48] sm:$0xff]
    %v739 = vld [vmem:[#allocation4 + $0x50] sm:$0xff]
    %v740 = vld [vmem:[#allocation4 + $0x58] sm:$0xff]
    %v741 = vld [vmem:[#allocation4 + $0x60] sm:$0xff]
    %v742 = vld [vmem:[#allocation4 + $0x68] sm:$0xff]
    %v743 = vld [vmem:[#allocation4 + $0x70] sm:$0xff]
    %v744 = vld [vmem:[#allocation4 + $0x78] sm:$0xff]
    %v745 = vld [vmem:[#allocation4 + $0x80] sm:$0xff]
    %v746 = vld [vmem:[#allocation4 + $0x88] sm:$0xff]
    %v747 = vld [vmem:[#allocation4 + $0x90] sm:$0xff]
    %v748 = vld [vmem:[#allocation4 + $0x98] sm:$0xff]
    %v749 = vld [vmem:[#allocation4 + $0xa0] sm:$0xff]
    %v750 = vld [vmem:[#allocation4 + $0xa8] sm:$0xff]
    %v751 = vld [vmem:[#allocation4 + $0xb0] sm:$0xff]
    %v752 = vld [vmem:[#allocation4 + $0xb8] sm:$0xff]
    %v753 = vld [vmem:[#allocation4 + $0xc0] sm:$0xff]
    %v754 = vld [vmem:[#allocation4 + $0xc8] sm:$0xff]
    %v755 = vld [vmem:[#allocation4 + $0xd0] sm:$0xff]
    %v756 = vld [vmem:[#allocation4 + $0xd8] sm:$0xff]
    %v757 = vld [vmem:[#allocation4 + $0xe0] sm:$0xff]
    %v758 = vld [vmem:[#allocation4 + $0xe8] sm:$0xff]
    %v759 = vld [vmem:[#allocation4 + $0xf0] sm:$0xff]
    %v760 = vld [vmem:[#allocation4 + $0xf8] sm:$0xff]
    %v761 = vld [vmem:[#allocation6 + $0x8] sm:$0xf]
    %v763 = vlaneseq
    %v764 = vshrl.u32 %v763, 7
    %v765 = vsub.s32 0, %v764
    %v766 = vrot.slane %v761, %v765
    %v767 = vlaneseq
    %v768 = vshrl.u32 %v767, 7
    %v769 = vsub.s32 1, %v768
    %v770 = vrot.slane %v761, %v769
    %v771 = vlaneseq
    %v772 = vshrl.u32 %v771, 7
    %v773 = vsub.s32 2, %v772
    %v774 = vrot.slane %v761, %v773
    %v775 = vlaneseq
    %v776 = vshrl.u32 %v775, 7
    %v777 = vsub.s32 3, %v776
    %v778 = vrot.slane %v761, %v777
    %v815 = vunpack.c.l.b16 %v729
    %v816 = vunpack.c.h.b16 %v729
    %v817 = vunpack.c.l.b16 %v730
    %v818 = vunpack.c.h.b16 %v730
    %v819 = vunpack.c.l.b16 %v731
    %v820 = vunpack.c.h.b16 %v731
    %v821 = vunpack.c.l.b16 %v732
    %v822 = vunpack.c.h.b16 %v732
    %v823 = vunpack.c.l.b16 %v733
    %v824 = vunpack.c.h.b16 %v733
    %v825 = vunpack.c.l.b16 %v734
    %v826 = vunpack.c.h.b16 %v734
    %v827 = vunpack.c.l.b16 %v735
    %v828 = vunpack.c.h.b16 %v735
    %v829 = vunpack.c.l.b16 %v736
    %v830 = vunpack.c.h.b16 %v736
    %v831 = vunpack.c.l.b16 %v737
    %v832 = vunpack.c.h.b16 %v737
    %v833 = vunpack.c.l.b16 %v738
    %v834 = vunpack.c.h.b16 %v738
    %v835 = vunpack.c.l.b16 %v739
    %v836 = vunpack.c.h.b16 %v739
    %v837 = vunpack.c.l.b16 %v740
    %v838 = vunpack.c.h.b16 %v740
    %v839 = vunpack.c.l.b16 %v741
    %v840 = vunpack.c.h.b16 %v741
    %v841 = vunpack.c.l.b16 %v742
    %v842 = vunpack.c.h.b16 %v742
    %v843 = vunpack.c.l.b16 %v743
    %v844 = vunpack.c.h.b16 %v743
    %v845 = vunpack.c.l.b16 %v744
    %v846 = vunpack.c.h.b16 %v744
    %v847 = vunpack.c.l.b16 %v745
    %v848 = vunpack.c.h.b16 %v745
    %v849 = vunpack.c.l.b16 %v746
    %v850 = vunpack.c.h.b16 %v746
    %v851 = vunpack.c.l.b16 %v747
    %v852 = vunpack.c.h.b16 %v747
    %v853 = vunpack.c.l.b16 %v748
    %v854 = vunpack.c.h.b16 %v748
    %v855 = vunpack.c.l.b16 %v749
    %v856 = vunpack.c.h.b16 %v749
    %v857 = vunpack.c.l.b16 %v750
    %v858 = vunpack.c.h.b16 %v750
    %v859 = vunpack.c.l.b16 %v751
    %v860 = vunpack.c.h.b16 %v751
    %v861 = vunpack.c.l.b16 %v752
    %v862 = vunpack.c.h.b16 %v752
    %v863 = vunpack.c.l.b16 %v753
    %v864 = vunpack.c.h.b16 %v753
    %v865 = vunpack.c.l.b16 %v754
    %v866 = vunpack.c.h.b16 %v754
    %v867 = vunpack.c.l.b16 %v755
    %v868 = vunpack.c.h.b16 %v755
    %v869 = vunpack.c.l.b16 %v756
    %v870 = vunpack.c.h.b16 %v756
    %v871 = vunpack.c.l.b16 %v757
    %v872 = vunpack.c.h.b16 %v757
    %v873 = vunpack.c.l.b16 %v758
    %v874 = vunpack.c.h.b16 %v758
    %v875 = vunpack.c.l.b16 %v759
    %v876 = vunpack.c.h.b16 %v759
    %v877 = vunpack.c.l.b16 %v760
    %v878 = vunpack.c.h.b16 %v760
    %v879 = vpack.c.b16 %v819, %v815
    %v880 = vpack.c.b16 %v820, %v816
    %v881 = vpack.c.b16 %v821, %v817
    %v882 = vpack.c.b16 %v822, %v818
    %v883 = vpack.c.b16 %v827, %v823
    %v884 = vpack.c.b16 %v828, %v824
    %v885 = vpack.c.b16 %v829, %v825
    %v886 = vpack.c.b16 %v830, %v826
    %v887 = vpack.c.b16 %v835, %v831
    %v888 = vpack.c.b16 %v836, %v832
    %v889 = vpack.c.b16 %v837, %v833
    %v890 = vpack.c.b16 %v838, %v834
    %v891 = vpack.c.b16 %v843, %v839
    %v892 = vpack.c.b16 %v844, %v840
    %v893 = vpack.c.b16 %v845, %v841
    %v894 = vpack.c.b16 %v846, %v842
    %v895 = vpack.c.b16 %v851, %v847
    %v896 = vpack.c.b16 %v852, %v848
    %v897 = vpack.c.b16 %v853, %v849
    %v898 = vpack.c.b16 %v854, %v850
    %v899 = vpack.c.b16 %v859, %v855
    %v900 = vpack.c.b16 %v860, %v856
    %v901 = vpack.c.b16 %v861, %v857
    %v902 = vpack.c.b16 %v862, %v858
    %v903 = vpack.c.b16 %v867, %v863
    %v904 = vpack.c.b16 %v868, %v864
    %v905 = vpack.c.b16 %v869, %v865
    %v906 = vpack.c.b16 %v870, %v866
    %v907 = vpack.c.b16 %v875, %v871
    %v908 = vpack.c.b16 %v876, %v872
    %v909 = vpack.c.b16 %v877, %v873
    %v910 = vpack.c.b16 %v878, %v874
    %943 = vmatprep.subr.bf16.mxu0 %v880
    %944 = vmatpush1.bf16.msra.mxu0 %v879
    %945 = vmatprep.subr.bf16.mxu0 %v884
    %946 = vmatpush1.bf16.msra.mxu0 %v883
    %947 = vmatprep.subr.bf16.mxu0 %v888
    %948 = vmatpush1.bf16.msra.mxu0 %v887
    %949 = vmatprep.subr.bf16.mxu0 %v892
    %950 = vmatpush1.bf16.msra.mxu0 %v891
    %951 = vmatprep.subr.bf16.mxu0 %v896
    %952 = vmatpush1.bf16.msra.mxu0 %v895
    %953 = vmatprep.subr.bf16.mxu0 %v900
    %954 = vmatpush1.bf16.msra.mxu0 %v899
    %955 = vmatprep.subr.bf16.mxu0 %v904
    %956 = vmatpush1.bf16.msra.mxu0 %v903
    %957 = vmatprep.subr.bf16.mxu0 %v908
    %958 = vmatpush1.bf16.msra.mxu0 %v907
    %959 = vmatprep.subr.bf16.mxu0 0
    %960 = vmatpush1.bf16.msra.mxu0 0
    %961 = vmatprep.subr.bf16.mxu0 0
    %962 = vmatpush1.bf16.msra.mxu0 0
    %963 = vmatprep.subr.bf16.mxu0 0
    %964 = vmatpush1.bf16.msra.mxu0 0
    %965 = vmatprep.subr.bf16.mxu0 0
    %966 = vmatpush1.bf16.msra.mxu0 0
    %967 = vmatprep.subr.bf16.mxu0 0
    %968 = vmatpush1.bf16.msra.mxu0 0
    %969 = vmatprep.subr.bf16.mxu0 0
    %970 = vmatpush1.bf16.msra.mxu0 0
    %971 = vmatprep.subr.bf16.mxu0 0
    %972 = vmatpush1.bf16.msra.mxu0 0
    %973 = vmatprep.subr.bf16.mxu0 0
    %974 = vmatpush1.bf16.msra.mxu0 0
    %975 = vmatprep.mubr.bf16.mxu0 0
    %976 = vmatmul.mubr.bf16.gmra.mrb[0].mxu0 %v122
    %v977 = vpop.f32.mrb[0].mxu0
    %v978 = vadd.f32 %v766, %v977
    %v979 = vpop.f32.mrb[0].mxu0
    %v980 = vadd.f32 %v770, %v979
    %v981 = vpop.f32.mrb[0].mxu0
    %v982 = vpop.f32.mrb[0].mxu0
    %983 = vdwg.mxu0
    %984 = vmatprep.subr.bf16.mxu0 %v882
    %985 = vmatpush1.bf16.msra.mxu0 %v881
    %986 = vmatprep.subr.bf16.mxu0 %v886
    %987 = vmatpush1.bf16.msra.mxu0 %v885
    %988 = vmatprep.subr.bf16.mxu0 %v890
    %989 = vmatpush1.bf16.msra.mxu0 %v889
    %990 = vmatprep.subr.bf16.mxu0 %v894
    %991 = vmatpush1.bf16.msra.mxu0 %v893
    %992 = vmatprep.subr.bf16.mxu0 %v898
    %993 = vmatpush1.bf16.msra.mxu0 %v897
    %994 = vmatprep.subr.bf16.mxu0 %v902
    %995 = vmatpush1.bf16.msra.mxu0 %v901
    %996 = vmatprep.subr.bf16.mxu0 %v906
    %997 = vmatpush1.bf16.msra.mxu0 %v905
    %998 = vmatprep.subr.bf16.mxu0 %v910
    %999 = vmatpush1.bf16.msra.mxu0 %v909
    %1000 = vmatprep.subr.bf16.mxu0 0
    %1001 = vmatpush1.bf16.msra.mxu0 0
    %1002 = vmatprep.subr.bf16.mxu0 0
    %1003 = vmatpush1.bf16.msra.mxu0 0
    %1004 = vmatprep.subr.bf16.mxu0 0
    %1005 = vmatpush1.bf16.msra.mxu0 0
    %1006 = vmatprep.subr.bf16.mxu0 0
    %1007 = vmatpush1.bf16.msra.mxu0 0
    %1008 = vmatprep.subr.bf16.mxu0 0
    %1009 = vmatpush1.bf16.msra.mxu0 0
    %1010 = vmatprep.subr.bf16.mxu0 0
    %1011 = vmatpush1.bf16.msra.mxu0 0
    %1012 = vmatprep.subr.bf16.mxu0 0
    %1013 = vmatpush1.bf16.msra.mxu0 0
    %1014 = vmatprep.subr.bf16.mxu0 0
    %1015 = vmatpush1.bf16.msra.mxu0 0
    %1016 = vmatprep.mubr.bf16.mxu0 0
    %1017 = vmatmul.mubr.bf16.gmra.mrb[0].mxu0 %v122
    %v1018 = vpop.f32.mrb[0].mxu0
    %v1019 = vadd.f32 %v774, %v1018
    %v1020 = vpop.f32.mrb[0].mxu0
    %v1021 = vadd.f32 %v778, %v1020
    %v1022 = vpop.f32.mrb[0].mxu0
    %v1023 = vpop.f32.mrb[0].mxu0
    %1024 = vdwg.mxu0
    %v1025 = vmax.f32 %v978, 0.0
    %v1026 = vmax.f32 %v980, 0.0
    %v1027 = vmax.f32 %v1019, 0.0
    %v1028 = vmax.f32 %v1021, 0.0
    %v1029 = vpack.c.bf16 %v1025, %v1025
    %v1030 = vpack.c.bf16 %v1026, %v1026
    %v1031 = vpack.c.bf16 %v1027, %v1027
    %v1032 = vpack.c.bf16 %v1028, %v1028
    %v1033 = vld [vmem:[#allocation7] sm:$0xff]
    %v1034 = vld [vmem:[#allocation7 + $0x8] sm:$0xf]
    %v1035 = vld [vmem:[#allocation7 + $0xc] sm:$0xff]
    %v1036 = vld [vmem:[#allocation7 + $0x14] sm:$0xf]
    %v1037 = vld [vmem:[#allocation7 + $0x18] sm:$0xff]
    %v1038 = vld [vmem:[#allocation7 + $0x20] sm:$0xf]
    %v1039 = vld [vmem:[#allocation7 + $0x24] sm:$0xff]
    %v1040 = vld [vmem:[#allocation7 + $0x2c] sm:$0xf]
    %v1041 = vld [vmem:[#allocation7 + $0x30] sm:$0xff]
    %v1042 = vld [vmem:[#allocation7 + $0x38] sm:$0xf]
    %v1043 = vld [vmem:[#allocation7 + $0x3c] sm:$0xff]
    %v1044 = vld [vmem:[#allocation7 + $0x44] sm:$0xf]
    %v1045 = vld [vmem:[#allocation7 + $0x48] sm:$0xff]
    %v1046 = vld [vmem:[#allocation7 + $0x50] sm:$0xf]
    %v1047 = vld [vmem:[#allocation7 + $0x54] sm:$0xff]
    %v1048 = vld [vmem:[#allocation7 + $0x5c] sm:$0xf]
    %v1049 = vld [vmem:[#allocation7 + $0x60] sm:$0xff]
    %v1050 = vld [vmem:[#allocation7 + $0x68] sm:$0xf]
    %v1051 = vld [vmem:[#allocation7 + $0x6c] sm:$0xff]
    %v1052 = vld [vmem:[#allocation7 + $0x74] sm:$0xf]
    %v1053 = vld [vmem:[#allocation7 + $0x78] sm:$0xff]
    %v1054 = vld [vmem:[#allocation7 + $0x80] sm:$0xf]
    %v1055 = vld [vmem:[#allocation7 + $0x84] sm:$0xff]
    %v1056 = vld [vmem:[#allocation7 + $0x8c] sm:$0xf]
    %v1057 = vld [vmem:[#allocation7 + $0x90] sm:$0xff]
    %v1058 = vld [vmem:[#allocation7 + $0x98] sm:$0xf]
    %v1059 = vld [vmem:[#allocation7 + $0x9c] sm:$0xff]
    %v1060 = vld [vmem:[#allocation7 + $0xa4] sm:$0xf]
    %v1061 = vld [vmem:[#allocation7 + $0xa8] sm:$0xff]
    %v1062 = vld [vmem:[#allocation7 + $0xb0] sm:$0xf]
    %v1063 = vld [vmem:[#allocation7 + $0xb4] sm:$0xff]
    %v1064 = vld [vmem:[#allocation7 + $0xbc] sm:$0xf]
    %v1065 = vld [vmem:[#allocation7 + $0xc0] sm:$0xff]
    %v1066 = vld [vmem:[#allocation7 + $0xc8] sm:$0xf]
    %v1067 = vld [vmem:[#allocation7 + $0xcc] sm:$0xff]
    %v1068 = vld [vmem:[#allocation7 + $0xd4] sm:$0xf]
    %v1069 = vld [vmem:[#allocation7 + $0xd8] sm:$0xff]
    %v1070 = vld [vmem:[#allocation7 + $0xe0] sm:$0xf]
    %v1071 = vld [vmem:[#allocation7 + $0xe4] sm:$0xff]
    %v1072 = vld [vmem:[#allocation7 + $0xec] sm:$0xf]
    %v1073 = vld [vmem:[#allocation7 + $0xf0] sm:$0xff]
    %v1074 = vld [vmem:[#allocation7 + $0xf8] sm:$0xf]
    %v1075 = vld [vmem:[#allocation7 + $0xfc] sm:$0xff]
    %v1076 = vld [vmem:[#allocation7 + $0x104] sm:$0xf]
    %v1077 = vld [vmem:[#allocation7 + $0x108] sm:$0xff]
    %v1078 = vld [vmem:[#allocation7 + $0x110] sm:$0xf]
    %v1079 = vld [vmem:[#allocation7 + $0x114] sm:$0xff]
    %v1080 = vld [vmem:[#allocation7 + $0x11c] sm:$0xf]
    %v1081 = vld [vmem:[#allocation7 + $0x120] sm:$0xff]
    %v1082 = vld [vmem:[#allocation7 + $0x128] sm:$0xf]
    %v1083 = vld [vmem:[#allocation7 + $0x12c] sm:$0xff]
    %v1084 = vld [vmem:[#allocation7 + $0x134] sm:$0xf]
    %v1085 = vld [vmem:[#allocation7 + $0x138] sm:$0xff]
    %v1086 = vld [vmem:[#allocation7 + $0x140] sm:$0xf]
    %v1087 = vld [vmem:[#allocation7 + $0x144] sm:$0xff]
    %v1088 = vld [vmem:[#allocation7 + $0x14c] sm:$0xf]
    %v1089 = vld [vmem:[#allocation7 + $0x150] sm:$0xff]
    %v1090 = vld [vmem:[#allocation7 + $0x158] sm:$0xf]
    %v1091 = vld [vmem:[#allocation7 + $0x15c] sm:$0xff]
    %v1092 = vld [vmem:[#allocation7 + $0x164] sm:$0xf]
    %v1093 = vld [vmem:[#allocation7 + $0x168] sm:$0xff]
    %v1094 = vld [vmem:[#allocation7 + $0x170] sm:$0xf]
    %v1095 = vld [vmem:[#allocation7 + $0x174] sm:$0xff]
    %v1096 = vld [vmem:[#allocation7 + $0x17c] sm:$0xf]
    %v1097 = vld [vmem:[#allocation7 + $0x180] sm:$0xff]
    %v1098 = vld [vmem:[#allocation7 + $0x188] sm:$0xf]
    %v1099 = vld [vmem:[#allocation7 + $0x18c] sm:$0xff]
    %v1100 = vld [vmem:[#allocation7 + $0x194] sm:$0xf]
    %v1101 = vld [vmem:[#allocation7 + $0x198] sm:$0xff]
    %v1102 = vld [vmem:[#allocation7 + $0x1a0] sm:$0xf]
    %v1103 = vld [vmem:[#allocation7 + $0x1a4] sm:$0xff]
    %v1104 = vld [vmem:[#allocation7 + $0x1ac] sm:$0xf]
    %v1105 = vld [vmem:[#allocation7 + $0x1b0] sm:$0xff]
    %v1106 = vld [vmem:[#allocation7 + $0x1b8] sm:$0xf]
    %v1107 = vld [vmem:[#allocation7 + $0x1bc] sm:$0xff]
    %v1108 = vld [vmem:[#allocation7 + $0x1c4] sm:$0xf]
    %v1109 = vld [vmem:[#allocation7 + $0x1c8] sm:$0xff]
    %v1110 = vld [vmem:[#allocation7 + $0x1d0] sm:$0xf]
    %v1111 = vld [vmem:[#allocation7 + $0x1d4] sm:$0xff]
    %v1112 = vld [vmem:[#allocation7 + $0x1dc] sm:$0xf]
    %v1113 = vld [vmem:[#allocation7 + $0x1e0] sm:$0xff]
    %v1114 = vld [vmem:[#allocation7 + $0x1e8] sm:$0xf]
    %v1115 = vld [vmem:[#allocation7 + $0x1ec] sm:$0xff]
    %v1116 = vld [vmem:[#allocation7 + $0x1f4] sm:$0xf]
    %v1117 = vld [vmem:[#allocation7 + $0x1f8] sm:$0xff]
    %v1118 = vld [vmem:[#allocation7 + $0x200] sm:$0xf]
    %v1119 = vld [vmem:[#allocation7 + $0x204] sm:$0xff]
    %v1120 = vld [vmem:[#allocation7 + $0x20c] sm:$0xf]
    %v1121 = vld [vmem:[#allocation7 + $0x210] sm:$0xff]
    %v1122 = vld [vmem:[#allocation7 + $0x218] sm:$0xf]
    %v1123 = vld [vmem:[#allocation7 + $0x21c] sm:$0xff]
    %v1124 = vld [vmem:[#allocation7 + $0x224] sm:$0xf]
    %v1125 = vld [vmem:[#allocation7 + $0x228] sm:$0xff]
    %v1126 = vld [vmem:[#allocation7 + $0x230] sm:$0xf]
    %v1127 = vld [vmem:[#allocation7 + $0x234] sm:$0xff]
    %v1128 = vld [vmem:[#allocation7 + $0x23c] sm:$0xf]
    %v1129 = vld [vmem:[#allocation7 + $0x240] sm:$0xff]
    %v1130 = vld [vmem:[#allocation7 + $0x248] sm:$0xf]
    %v1131 = vld [vmem:[#allocation7 + $0x24c] sm:$0xff]
    %v1132 = vld [vmem:[#allocation7 + $0x254] sm:$0xf]
    %v1133 = vld [vmem:[#allocation7 + $0x258] sm:$0xff]
    %v1134 = vld [vmem:[#allocation7 + $0x260] sm:$0xf]
    %v1135 = vld [vmem:[#allocation7 + $0x264] sm:$0xff]
    %v1136 = vld [vmem:[#allocation7 + $0x26c] sm:$0xf]
    %v1137 = vld [vmem:[#allocation7 + $0x270] sm:$0xff]
    %v1138 = vld [vmem:[#allocation7 + $0x278] sm:$0xf]
    %v1139 = vld [vmem:[#allocation7 + $0x27c] sm:$0xff]
    %v1140 = vld [vmem:[#allocation7 + $0x284] sm:$0xf]
    %v1141 = vld [vmem:[#allocation7 + $0x288] sm:$0xff]
    %v1142 = vld [vmem:[#allocation7 + $0x290] sm:$0xf]
    %v1143 = vld [vmem:[#allocation7 + $0x294] sm:$0xff]
    %v1144 = vld [vmem:[#allocation7 + $0x29c] sm:$0xf]
    %v1145 = vld [vmem:[#allocation7 + $0x2a0] sm:$0xff]
    %v1146 = vld [vmem:[#allocation7 + $0x2a8] sm:$0xf]
    %v1147 = vld [vmem:[#allocation7 + $0x2ac] sm:$0xff]
    %v1148 = vld [vmem:[#allocation7 + $0x2b4] sm:$0xf]
    %v1149 = vld [vmem:[#allocation7 + $0x2b8] sm:$0xff]
    %v1150 = vld [vmem:[#allocation7 + $0x2c0] sm:$0xf]
    %v1151 = vld [vmem:[#allocation7 + $0x2c4] sm:$0xff]
    %v1152 = vld [vmem:[#allocation7 + $0x2cc] sm:$0xf]
    %v1153 = vld [vmem:[#allocation7 + $0x2d0] sm:$0xff]
    %v1154 = vld [vmem:[#allocation7 + $0x2d8] sm:$0xf]
    %v1155 = vld [vmem:[#allocation7 + $0x2dc] sm:$0xff]
    %v1156 = vld [vmem:[#allocation7 + $0x2e4] sm:$0xf]
    %v1157 = vld [vmem:[#allocation7 + $0x2e8] sm:$0xff]
    %v1158 = vld [vmem:[#allocation7 + $0x2f0] sm:$0xf]
    %v1159 = vld [vmem:[#allocation7 + $0x2f4] sm:$0xff]
    %v1160 = vld [vmem:[#allocation7 + $0x2fc] sm:$0xf]
    %v1161 = vld [vmem:[#allocation9] sm:$0x7]
    %v1163 = vlaneseq
    %v1164 = vshrl.u32 %v1163, 7
    %v1165 = vsub.s32 0, %v1164
    %v1166 = vrot.slane %v1161, %v1165
    %v1167 = vlaneseq
    %v1168 = vshrl.u32 %v1167, 7
    %v1169 = vsub.s32 1, %v1168
    %v1170 = vrot.slane %v1161, %v1169
    %v1171 = vlaneseq
    %v1172 = vshrl.u32 %v1171, 7
    %v1173 = vsub.s32 2, %v1172
    %v1174 = vrot.slane %v1161, %v1173
    %v1306 = vunpack.c.l.b16 %v1033
    %v1307 = vunpack.c.h.b16 %v1033
    %v1308 = vunpack.c.l.b16 %v1034
    %v1309 = vunpack.c.l.b16 %v1035
    %v1310 = vunpack.c.h.b16 %v1035
    %v1311 = vunpack.c.l.b16 %v1036
    %v1312 = vunpack.c.l.b16 %v1037
    %v1313 = vunpack.c.h.b16 %v1037
    %v1314 = vunpack.c.l.b16 %v1038
    %v1315 = vunpack.c.l.b16 %v1039
    %v1316 = vunpack.c.h.b16 %v1039
    %v1317 = vunpack.c.l.b16 %v1040
    %v1318 = vunpack.c.l.b16 %v1041
    %v1319 = vunpack.c.h.b16 %v1041
    %v1320 = vunpack.c.l.b16 %v1042
    %v1321 = vunpack.c.l.b16 %v1043
    %v1322 = vunpack.c.h.b16 %v1043
    %v1323 = vunpack.c.l.b16 %v1044
    %v1324 = vunpack.c.l.b16 %v1045
    %v1325 = vunpack.c.h.b16 %v1045
    %v1326 = vunpack.c.l.b16 %v1046
    %v1327 = vunpack.c.l.b16 %v1047
    %v1328 = vunpack.c.h.b16 %v1047
    %v1329 = vunpack.c.l.b16 %v1048
    %v1330 = vunpack.c.l.b16 %v1049
    %v1331 = vunpack.c.h.b16 %v1049
    %v1332 = vunpack.c.l.b16 %v1050
    %v1333 = vunpack.c.l.b16 %v1051
    %v1334 = vunpack.c.h.b16 %v1051
    %v1335 = vunpack.c.l.b16 %v1052
    %v1336 = vunpack.c.l.b16 %v1053
    %v1337 = vunpack.c.h.b16 %v1053
    %v1338 = vunpack.c.l.b16 %v1054
    %v1339 = vunpack.c.l.b16 %v1055
    %v1340 = vunpack.c.h.b16 %v1055
    %v1341 = vunpack.c.l.b16 %v1056
    %v1342 = vunpack.c.l.b16 %v1057
    %v1343 = vunpack.c.h.b16 %v1057
    %v1344 = vunpack.c.l.b16 %v1058
    %v1345 = vunpack.c.l.b16 %v1059
    %v1346 = vunpack.c.h.b16 %v1059
    %v1347 = vunpack.c.l.b16 %v1060
    %v1348 = vunpack.c.l.b16 %v1061
    %v1349 = vunpack.c.h.b16 %v1061
    %v1350 = vunpack.c.l.b16 %v1062
    %v1351 = vunpack.c.l.b16 %v1063
    %v1352 = vunpack.c.h.b16 %v1063
    %v1353 = vunpack.c.l.b16 %v1064
    %v1354 = vunpack.c.l.b16 %v1065
    %v1355 = vunpack.c.h.b16 %v1065
    %v1356 = vunpack.c.l.b16 %v1066
    %v1357 = vunpack.c.l.b16 %v1067
    %v1358 = vunpack.c.h.b16 %v1067
    %v1359 = vunpack.c.l.b16 %v1068
    %v1360 = vunpack.c.l.b16 %v1069
    %v1361 = vunpack.c.h.b16 %v1069
    %v1362 = vunpack.c.l.b16 %v1070
    %v1363 = vunpack.c.l.b16 %v1071
    %v1364 = vunpack.c.h.b16 %v1071
    %v1365 = vunpack.c.l.b16 %v1072
    %v1366 = vunpack.c.l.b16 %v1073
    %v1367 = vunpack.c.h.b16 %v1073
    %v1368 = vunpack.c.l.b16 %v1074
    %v1369 = vunpack.c.l.b16 %v1075
    %v1370 = vunpack.c.h.b16 %v1075
    %v1371 = vunpack.c.l.b16 %v1076
    %v1372 = vunpack.c.l.b16 %v1077
    %v1373 = vunpack.c.h.b16 %v1077
    %v1374 = vunpack.c.l.b16 %v1078
    %v1375 = vunpack.c.l.b16 %v1079
    %v1376 = vunpack.c.h.b16 %v1079
    %v1377 = vunpack.c.l.b16 %v1080
    %v1378 = vunpack.c.l.b16 %v1081
    %v1379 = vunpack.c.h.b16 %v1081
    %v1380 = vunpack.c.l.b16 %v1082
    %v1381 = vunpack.c.l.b16 %v1083
    %v1382 = vunpack.c.h.b16 %v1083
    %v1383 = vunpack.c.l.b16 %v1084
    %v1384 = vunpack.c.l.b16 %v1085
    %v1385 = vunpack.c.h.b16 %v1085
    %v1386 = vunpack.c.l.b16 %v1086
    %v1387 = vunpack.c.l.b16 %v1087
    %v1388 = vunpack.c.h.b16 %v1087
    %v1389 = vunpack.c.l.b16 %v1088
    %v1390 = vunpack.c.l.b16 %v1089
    %v1391 = vunpack.c.h.b16 %v1089
    %v1392 = vunpack.c.l.b16 %v1090
    %v1393 = vunpack.c.l.b16 %v1091
    %v1394 = vunpack.c.h.b16 %v1091
    %v1395 = vunpack.c.l.b16 %v1092
    %v1396 = vunpack.c.l.b16 %v1093
    %v1397 = vunpack.c.h.b16 %v1093
    %v1398 = vunpack.c.l.b16 %v1094
    %v1399 = vunpack.c.l.b16 %v1095
    %v1400 = vunpack.c.h.b16 %v1095
    %v1401 = vunpack.c.l.b16 %v1096
    %v1402 = vunpack.c.l.b16 %v1097
    %v1403 = vunpack.c.h.b16 %v1097
    %v1404 = vunpack.c.l.b16 %v1098
    %v1405 = vunpack.c.l.b16 %v1099
    %v1406 = vunpack.c.h.b16 %v1099
    %v1407 = vunpack.c.l.b16 %v1100
    %v1408 = vunpack.c.l.b16 %v1101
    %v1409 = vunpack.c.h.b16 %v1101
    %v1410 = vunpack.c.l.b16 %v1102
    %v1411 = vunpack.c.l.b16 %v1103
    %v1412 = vunpack.c.h.b16 %v1103
    %v1413 = vunpack.c.l.b16 %v1104
    %v1414 = vunpack.c.l.b16 %v1105
    %v1415 = vunpack.c.h.b16 %v1105
    %v1416 = vunpack.c.l.b16 %v1106
    %v1417 = vunpack.c.l.b16 %v1107
    %v1418 = vunpack.c.h.b16 %v1107
    %v1419 = vunpack.c.l.b16 %v1108
    %v1420 = vunpack.c.l.b16 %v1109
    %v1421 = vunpack.c.h.b16 %v1109
    %v1422 = vunpack.c.l.b16 %v1110
    %v1423 = vunpack.c.l.b16 %v1111
    %v1424 = vunpack.c.h.b16 %v1111
    %v1425 = vunpack.c.l.b16 %v1112
    %v1426 = vunpack.c.l.b16 %v1113
    %v1427 = vunpack.c.h.b16 %v1113
    %v1428 = vunpack.c.l.b16 %v1114
    %v1429 = vunpack.c.l.b16 %v1115
    %v1430 = vunpack.c.h.b16 %v1115
    %v1431 = vunpack.c.l.b16 %v1116
    %v1432 = vunpack.c.l.b16 %v1117
    %v1433 = vunpack.c.h.b16 %v1117
    %v1434 = vunpack.c.l.b16 %v1118
    %v1435 = vunpack.c.l.b16 %v1119
    %v1436 = vunpack.c.h.b16 %v1119
    %v1437 = vunpack.c.l.b16 %v1120
    %v1438 = vunpack.c.l.b16 %v1121
    %v1439 = vunpack.c.h.b16 %v1121
    %v1440 = vunpack.c.l.b16 %v1122
    %v1441 = vunpack.c.l.b16 %v1123
    %v1442 = vunpack.c.h.b16 %v1123
    %v1443 = vunpack.c.l.b16 %v1124
    %v1444 = vunpack.c.l.b16 %v1125
    %v1445 = vunpack.c.h.b16 %v1125
    %v1446 = vunpack.c.l.b16 %v1126
    %v1447 = vunpack.c.l.b16 %v1127
    %v1448 = vunpack.c.h.b16 %v1127
    %v1449 = vunpack.c.l.b16 %v1128
    %v1450 = vunpack.c.l.b16 %v1129
    %v1451 = vunpack.c.h.b16 %v1129
    %v1452 = vunpack.c.l.b16 %v1130
    %v1453 = vunpack.c.l.b16 %v1131
    %v1454 = vunpack.c.h.b16 %v1131
    %v1455 = vunpack.c.l.b16 %v1132
    %v1456 = vunpack.c.l.b16 %v1133
    %v1457 = vunpack.c.h.b16 %v1133
    %v1458 = vunpack.c.l.b16 %v1134
    %v1459 = vunpack.c.l.b16 %v1135
    %v1460 = vunpack.c.h.b16 %v1135
    %v1461 = vunpack.c.l.b16 %v1136
    %v1462 = vunpack.c.l.b16 %v1137
    %v1463 = vunpack.c.h.b16 %v1137
    %v1464 = vunpack.c.l.b16 %v1138
    %v1465 = vunpack.c.l.b16 %v1139
    %v1466 = vunpack.c.h.b16 %v1139
    %v1467 = vunpack.c.l.b16 %v1140
    %v1468 = vunpack.c.l.b16 %v1141
    %v1469 = vunpack.c.h.b16 %v1141
    %v1470 = vunpack.c.l.b16 %v1142
    %v1471 = vunpack.c.l.b16 %v1143
    %v1472 = vunpack.c.h.b16 %v1143
    %v1473 = vunpack.c.l.b16 %v1144
    %v1474 = vunpack.c.l.b16 %v1145
    %v1475 = vunpack.c.h.b16 %v1145
    %v1476 = vunpack.c.l.b16 %v1146
    %v1477 = vunpack.c.l.b16 %v1147
    %v1478 = vunpack.c.h.b16 %v1147
    %v1479 = vunpack.c.l.b16 %v1148
    %v1480 = vunpack.c.l.b16 %v1149
    %v1481 = vunpack.c.h.b16 %v1149
    %v1482 = vunpack.c.l.b16 %v1150
    %v1483 = vunpack.c.l.b16 %v1151
    %v1484 = vunpack.c.h.b16 %v1151
    %v1485 = vunpack.c.l.b16 %v1152
    %v1486 = vunpack.c.l.b16 %v1153
    %v1487 = vunpack.c.h.b16 %v1153
    %v1488 = vunpack.c.l.b16 %v1154
    %v1489 = vunpack.c.l.b16 %v1155
    %v1490 = vunpack.c.h.b16 %v1155
    %v1491 = vunpack.c.l.b16 %v1156
    %v1492 = vunpack.c.l.b16 %v1157
    %v1493 = vunpack.c.h.b16 %v1157
    %v1494 = vunpack.c.l.b16 %v1158
    %v1495 = vunpack.c.l.b16 %v1159
    %v1496 = vunpack.c.h.b16 %v1159
    %v1497 = vunpack.c.l.b16 %v1160
    %v1498 = vpack.c.b16 %v1309, %v1306
    %v1499 = vpack.c.b16 %v1310, %v1307
    %v1500 = vpack.c.b16 %v1311, %v1308
    %v1501 = vpack.c.b16 %v1315, %v1312
    %v1502 = vpack.c.b16 %v1316, %v1313
    %v1503 = vpack.c.b16 %v1317, %v1314
    %v1504 = vpack.c.b16 %v1321, %v1318
    %v1505 = vpack.c.b16 %v1322, %v1319
    %v1506 = vpack.c.b16 %v1323, %v1320
    %v1507 = vpack.c.b16 %v1327, %v1324
    %v1508 = vpack.c.b16 %v1328, %v1325
    %v1509 = vpack.c.b16 %v1329, %v1326
    %v1510 = vpack.c.b16 %v1333, %v1330
    %v1511 = vpack.c.b16 %v1334, %v1331
    %v1512 = vpack.c.b16 %v1335, %v1332
    %v1513 = vpack.c.b16 %v1339, %v1336
    %v1514 = vpack.c.b16 %v1340, %v1337
    %v1515 = vpack.c.b16 %v1341, %v1338
    %v1516 = vpack.c.b16 %v1345, %v1342
    %v1517 = vpack.c.b16 %v1346, %v1343
    %v1518 = vpack.c.b16 %v1347, %v1344
    %v1519 = vpack.c.b16 %v1351, %v1348
    %v1520 = vpack.c.b16 %v1352, %v1349
    %v1521 = vpack.c.b16 %v1353, %v1350
    %v1522 = vpack.c.b16 %v1357, %v1354
    %v1523 = vpack.c.b16 %v1358, %v1355
    %v1524 = vpack.c.b16 %v1359, %v1356
    %v1525 = vpack.c.b16 %v1363, %v1360
    %v1526 = vpack.c.b16 %v1364, %v1361
    %v1527 = vpack.c.b16 %v1365, %v1362
    %v1528 = vpack.c.b16 %v1369, %v1366
    %v1529 = vpack.c.b16 %v1370, %v1367
    %v1530 = vpack.c.b16 %v1371, %v1368
    %v1531 = vpack.c.b16 %v1375, %v1372
    %v1532 = vpack.c.b16 %v1376, %v1373
    %v1533 = vpack.c.b16 %v1377, %v1374
    %v1534 = vpack.c.b16 %v1381, %v1378
    %v1535 = vpack.c.b16 %v1382, %v1379
    %v1536 = vpack.c.b16 %v1383, %v1380
    %v1537 = vpack.c.b16 %v1387, %v1384
    %v1538 = vpack.c.b16 %v1388, %v1385
    %v1539 = vpack.c.b16 %v1389, %v1386
    %v1540 = vpack.c.b16 %v1393, %v1390
    %v1541 = vpack.c.b16 %v1394, %v1391
    %v1542 = vpack.c.b16 %v1395, %v1392
    %v1543 = vpack.c.b16 %v1399, %v1396
    %v1544 = vpack.c.b16 %v1400, %v1397
    %v1545 = vpack.c.b16 %v1401, %v1398
    %v1546 = vpack.c.b16 %v1405, %v1402
    %v1547 = vpack.c.b16 %v1406, %v1403
    %v1548 = vpack.c.b16 %v1407, %v1404
    %v1549 = vpack.c.b16 %v1411, %v1408
    %v1550 = vpack.c.b16 %v1412, %v1409
    %v1551 = vpack.c.b16 %v1413, %v1410
    %v1552 = vpack.c.b16 %v1417, %v1414
    %v1553 = vpack.c.b16 %v1418, %v1415
    %v1554 = vpack.c.b16 %v1419, %v1416
    %v1555 = vpack.c.b16 %v1423, %v1420
    %v1556 = vpack.c.b16 %v1424, %v1421
    %v1557 = vpack.c.b16 %v1425, %v1422
    %v1558 = vpack.c.b16 %v1429, %v1426
    %v1559 = vpack.c.b16 %v1430, %v1427
    %v1560 = vpack.c.b16 %v1431, %v1428
    %v1561 = vpack.c.b16 %v1435, %v1432
    %v1562 = vpack.c.b16 %v1436, %v1433
    %v1563 = vpack.c.b16 %v1437, %v1434
    %v1564 = vpack.c.b16 %v1441, %v1438
    %v1565 = vpack.c.b16 %v1442, %v1439
    %v1566 = vpack.c.b16 %v1443, %v1440
    %v1567 = vpack.c.b16 %v1447, %v1444
    %v1568 = vpack.c.b16 %v1448, %v1445
    %v1569 = vpack.c.b16 %v1449, %v1446
    %v1570 = vpack.c.b16 %v1453, %v1450
    %v1571 = vpack.c.b16 %v1454, %v1451
    %v1572 = vpack.c.b16 %v1455, %v1452
    %v1573 = vpack.c.b16 %v1459, %v1456
    %v1574 = vpack.c.b16 %v1460, %v1457
    %v1575 = vpack.c.b16 %v1461, %v1458
    %v1576 = vpack.c.b16 %v1465, %v1462
    %v1577 = vpack.c.b16 %v1466, %v1463
    %v1578 = vpack.c.b16 %v1467, %v1464
    %v1579 = vpack.c.b16 %v1471, %v1468
    %v1580 = vpack.c.b16 %v1472, %v1469
    %v1581 = vpack.c.b16 %v1473, %v1470
    %v1582 = vpack.c.b16 %v1477, %v1474
    %v1583 = vpack.c.b16 %v1478, %v1475
    %v1584 = vpack.c.b16 %v1479, %v1476
    %v1585 = vpack.c.b16 %v1483, %v1480
    %v1586 = vpack.c.b16 %v1484, %v1481
    %v1587 = vpack.c.b16 %v1485, %v1482
    %v1588 = vpack.c.b16 %v1489, %v1486
    %v1589 = vpack.c.b16 %v1490, %v1487
    %v1590 = vpack.c.b16 %v1491, %v1488
    %v1591 = vpack.c.b16 %v1495, %v1492
    %v1592 = vpack.c.b16 %v1496, %v1493
    %v1593 = vpack.c.b16 %v1497, %v1494
    %1690 = vmatprep.subr.bf16.mxu0 %v1499
    %1691 = vmatpush1.bf16.msra.mxu0 %v1498
    %1692 = vmatprep.subr.bf16.mxu0 %v1502
    %1693 = vmatpush1.bf16.msra.mxu0 %v1501
    %1694 = vmatprep.subr.bf16.mxu0 %v1505
    %1695 = vmatpush1.bf16.msra.mxu0 %v1504
    %1696 = vmatprep.subr.bf16.mxu0 %v1508
    %1697 = vmatpush1.bf16.msra.mxu0 %v1507
    %1698 = vmatprep.subr.bf16.mxu0 %v1511
    %1699 = vmatpush1.bf16.msra.mxu0 %v1510
    %1700 = vmatprep.subr.bf16.mxu0 %v1514
    %1701 = vmatpush1.bf16.msra.mxu0 %v1513
    %1702 = vmatprep.subr.bf16.mxu0 %v1517
    %1703 = vmatpush1.bf16.msra.mxu0 %v1516
    %1704 = vmatprep.subr.bf16.mxu0 %v1520
    %1705 = vmatpush1.bf16.msra.mxu0 %v1519
    %1706 = vmatprep.subr.bf16.mxu0 %v1523
    %1707 = vmatpush1.bf16.msra.mxu0 %v1522
    %1708 = vmatprep.subr.bf16.mxu0 %v1526
    %1709 = vmatpush1.bf16.msra.mxu0 %v1525
    %1710 = vmatprep.subr.bf16.mxu0 %v1529
    %1711 = vmatpush1.bf16.msra.mxu0 %v1528
    %1712 = vmatprep.subr.bf16.mxu0 %v1532
    %1713 = vmatpush1.bf16.msra.mxu0 %v1531
    %1714 = vmatprep.subr.bf16.mxu0 %v1535
    %1715 = vmatpush1.bf16.msra.mxu0 %v1534
    %1716 = vmatprep.subr.bf16.mxu0 %v1538
    %1717 = vmatpush1.bf16.msra.mxu0 %v1537
    %1718 = vmatprep.subr.bf16.mxu0 %v1541
    %1719 = vmatpush1.bf16.msra.mxu0 %v1540
    %1720 = vmatprep.subr.bf16.mxu0 %v1544
    %1721 = vmatpush1.bf16.msra.mxu0 %v1543
    %1722 = vmatprep.mubr.bf16.mxu0 %v722
    %1723 = vmatmul.mubr.bf16.gmra.mrb[0].mxu0 %v721
    %v1724 = vpop.f32.mrb[0].mxu0
    %v1725 = vadd.f32 %v1166, %v1724
    %v1726 = vpop.f32.mrb[0].mxu0
    %v1727 = vadd.f32 %v1170, %v1726
    %v1728 = vpop.f32.mrb[0].mxu0
    %v1729 = vpop.f32.mrb[0].mxu0
    %1730 = vdwg.mxu0
    %1731 = vmatprep.subr.bf16.mxu0 %v1547
    %1732 = vmatpush1.bf16.msra.mxu0 %v1546
    %1733 = vmatprep.subr.bf16.mxu0 %v1550
    %1734 = vmatpush1.bf16.msra.mxu0 %v1549
    %1735 = vmatprep.subr.bf16.mxu0 %v1553
    %1736 = vmatpush1.bf16.msra.mxu0 %v1552
    %1737 = vmatprep.subr.bf16.mxu0 %v1556
    %1738 = vmatpush1.bf16.msra.mxu0 %v1555
    %1739 = vmatprep.subr.bf16.mxu0 %v1559
    %1740 = vmatpush1.bf16.msra.mxu0 %v1558
    %1741 = vmatprep.subr.bf16.mxu0 %v1562
    %1742 = vmatpush1.bf16.msra.mxu0 %v1561
    %1743 = vmatprep.subr.bf16.mxu0 %v1565
    %1744 = vmatpush1.bf16.msra.mxu0 %v1564
    %1745 = vmatprep.subr.bf16.mxu0 %v1568
    %1746 = vmatpush1.bf16.msra.mxu0 %v1567
    %1747 = vmatprep.subr.bf16.mxu0 %v1571
    %1748 = vmatpush1.bf16.msra.mxu0 %v1570
    %1749 = vmatprep.subr.bf16.mxu0 %v1574
    %1750 = vmatpush1.bf16.msra.mxu0 %v1573
    %1751 = vmatprep.subr.bf16.mxu0 %v1577
    %1752 = vmatpush1.bf16.msra.mxu0 %v1576
    %1753 = vmatprep.subr.bf16.mxu0 %v1580
    %1754 = vmatpush1.bf16.msra.mxu0 %v1579
    %1755 = vmatprep.subr.bf16.mxu0 %v1583
    %1756 = vmatpush1.bf16.msra.mxu0 %v1582
    %1757 = vmatprep.subr.bf16.mxu0 %v1586
    %1758 = vmatpush1.bf16.msra.mxu0 %v1585
    %1759 = vmatprep.subr.bf16.mxu0 %v1589
    %1760 = vmatpush1.bf16.msra.mxu0 %v1588
    %1761 = vmatprep.subr.bf16.mxu0 %v1592
    %1762 = vmatpush1.bf16.msra.mxu0 %v1591
    %1763 = vmatprep.mubr.bf16.mxu0 %v724
    %1764 = vmatmul.mubr.bf16.gmra.mrb[0].mxu0 %v723
    %v1765 = vpop.f32.mrb[0].mxu0
    %v1766 = vadd.f32 %v1725, %v1765
    %v1767 = vpop.f32.mrb[0].mxu0
    %v1768 = vadd.f32 %v1727, %v1767
    %v1769 = vpop.f32.mrb[0].mxu0
    %v1770 = vpop.f32.mrb[0].mxu0
    %1771 = vdwg.mxu0
    %1772 = vmatprep.subr.bf16.mxu0 0
    %1773 = vmatpush1.bf16.msra.mxu0 %v1500
    %1774 = vmatprep.subr.bf16.mxu0 0
    %1775 = vmatpush1.bf16.msra.mxu0 %v1503
    %1776 = vmatprep.subr.bf16.mxu0 0
    %1777 = vmatpush1.bf16.msra.mxu0 %v1506
    %1778 = vmatprep.subr.bf16.mxu0 0
    %1779 = vmatpush1.bf16.msra.mxu0 %v1509
    %1780 = vmatprep.subr.bf16.mxu0 0
    %1781 = vmatpush1.bf16.msra.mxu0 %v1512
    %1782 = vmatprep.subr.bf16.mxu0 0
    %1783 = vmatpush1.bf16.msra.mxu0 %v1515
    %1784 = vmatprep.subr.bf16.mxu0 0
    %1785 = vmatpush1.bf16.msra.mxu0 %v1518
    %1786 = vmatprep.subr.bf16.mxu0 0
    %1787 = vmatpush1.bf16.msra.mxu0 %v1521
    %1788 = vmatprep.subr.bf16.mxu0 0
    %1789 = vmatpush1.bf16.msra.mxu0 %v1524
    %1790 = vmatprep.subr.bf16.mxu0 0
    %1791 = vmatpush1.bf16.msra.mxu0 %v1527
    %1792 = vmatprep.subr.bf16.mxu0 0
    %1793 = vmatpush1.bf16.msra.mxu0 %v1530
    %1794 = vmatprep.subr.bf16.mxu0 0
    %1795 = vmatpush1.bf16.msra.mxu0 %v1533
    %1796 = vmatprep.subr.bf16.mxu0 0
    %1797 = vmatpush1.bf16.msra.mxu0 %v1536
    %1798 = vmatprep.subr.bf16.mxu0 0
    %1799 = vmatpush1.bf16.msra.mxu0 %v1539
    %1800 = vmatprep.subr.bf16.mxu0 0
    %1801 = vmatpush1.bf16.msra.mxu0 %v1542
    %1802 = vmatprep.subr.bf16.mxu0 0
    %1803 = vmatpush1.bf16.msra.mxu0 %v1545
    %1804 = vmatprep.mubr.bf16.mxu0 %v722
    %1805 = vmatmul.mubr.bf16.gmra.mrb[0].mxu0 %v721
    %v1806 = vpop.f32.mrb[0].mxu0
    %v1807 = vadd.f32 %v1174, %v1806
    %v1808 = vpop.f32.mrb[0].mxu0
    %v1809 = vpop.f32.mrb[0].mxu0
    %v1810 = vpop.f32.mrb[0].mxu0
    %1811 = vdwg.mxu0
    %1812 = vmatprep.subr.bf16.mxu0 0
    %1813 = vmatpush1.bf16.msra.mxu0 %v1548
    %1814 = vmatprep.subr.bf16.mxu0 0
    %1815 = vmatpush1.bf16.msra.mxu0 %v1551
    %1816 = vmatprep.subr.bf16.mxu0 0
    %1817 = vmatpush1.bf16.msra.mxu0 %v1554
    %1818 = vmatprep.subr.bf16.mxu0 0
    %1819 = vmatpush1.bf16.msra.mxu0 %v1557
    %1820 = vmatprep.subr.bf16.mxu0 0
    %1821 = vmatpush1.bf16.msra.mxu0 %v1560
    %1822 = vmatprep.subr.bf16.mxu0 0
    %1823 = vmatpush1.bf16.msra.mxu0 %v1563
    %1824 = vmatprep.subr.bf16.mxu0 0
    %1825 = vmatpush1.bf16.msra.mxu0 %v1566
    %1826 = vmatprep.subr.bf16.mxu0 0
    %1827 = vmatpush1.bf16.msra.mxu0 %v1569
    %1828 = vmatprep.subr.bf16.mxu0 0
    %1829 = vmatpush1.bf16.msra.mxu0 %v1572
    %1830 = vmatprep.subr.bf16.mxu0 0
    %1831 = vmatpush1.bf16.msra.mxu0 %v1575
    %1832 = vmatprep.subr.bf16.mxu0 0
    %1833 = vmatpush1.bf16.msra.mxu0 %v1578
    %1834 = vmatprep.subr.bf16.mxu0 0
    %1835 = vmatpush1.bf16.msra.mxu0 %v1581
    %1836 = vmatprep.subr.bf16.mxu0 0
    %1837 = vmatpush1.bf16.msra.mxu0 %v1584
    %1838 = vmatprep.subr.bf16.mxu0 0
    %1839 = vmatpush1.bf16.msra.mxu0 %v1587
    %1840 = vmatprep.subr.bf16.mxu0 0
    %1841 = vmatpush1.bf16.msra.mxu0 %v1590
    %1842 = vmatprep.subr.bf16.mxu0 0
    %1843 = vmatpush1.bf16.msra.mxu0 %v1593
    %1844 = vmatprep.mubr.bf16.mxu0 %v724
    %1845 = vmatmul.mubr.bf16.gmra.mrb[0].mxu0 %v723
    %v1846 = vpop.f32.mrb[0].mxu0
    %v1847 = vadd.f32 %v1807, %v1846
    %v1848 = vpop.f32.mrb[0].mxu0
    %v1849 = vpop.f32.mrb[0].mxu0
    %v1850 = vpop.f32.mrb[0].mxu0
    %1851 = vdwg.mxu0
    %v1852 = vmax.f32 %v1766, 0.0
    %v1853 = vmax.f32 %v1768, 0.0
    %v1854 = vmax.f32 %v1847, 0.0
    %s1855 = scalar_lea.vmem [#allocation7], 768
    %v1856 = vld [vmem:[%s1855] sm:$0xff]
    %v1857 = vld [vmem:[%s1855 + $0x8] sm:$0xf]
    %v1858 = vld [vmem:[%s1855 + $0xc] sm:$0xff]
    %v1859 = vld [vmem:[%s1855 + $0x14] sm:$0xf]
    %v1860 = vld [vmem:[%s1855 + $0x18] sm:$0xff]
    %v1861 = vld [vmem:[%s1855 + $0x20] sm:$0xf]
    %v1862 = vld [vmem:[%s1855 + $0x24] sm:$0xff]
    %v1863 = vld [vmem:[%s1855 + $0x2c] sm:$0xf]
    %v1864 = vld [vmem:[%s1855 + $0x30] sm:$0xff]
    %v1865 = vld [vmem:[%s1855 + $0x38] sm:$0xf]
    %v1866 = vld [vmem:[%s1855 + $0x3c] sm:$0xff]
    %v1867 = vld [vmem:[%s1855 + $0x44] sm:$0xf]
    %v1868 = vld [vmem:[%s1855 + $0x48] sm:$0xff]
    %v1869 = vld [vmem:[%s1855 + $0x50] sm:$0xf]
    %v1870 = vld [vmem:[%s1855 + $0x54] sm:$0xff]
    %v1871 = vld [vmem:[%s1855 + $0x5c] sm:$0xf]
    %v1872 = vld [vmem:[%s1855 + $0x60] sm:$0xff]
    %v1873 = vld [vmem:[%s1855 + $0x68] sm:$0xf]
    %v1874 = vld [vmem:[%s1855 + $0x6c] sm:$0xff]
    %v1875 = vld [vmem:[%s1855 + $0x74] sm:$0xf]
    %v1876 = vld [vmem:[%s1855 + $0x78] sm:$0xff]
    %v1877 = vld [vmem:[%s1855 + $0x80] sm:$0xf]
    %v1878 = vld [vmem:[%s1855 + $0x84] sm:$0xff]
    %v1879 = vld [vmem:[%s1855 + $0x8c] sm:$0xf]
    %v1880 = vld [vmem:[%s1855 + $0x90] sm:$0xff]
    %v1881 = vld [vmem:[%s1855 + $0x98] sm:$0xf]
    %v1882 = vld [vmem:[%s1855 + $0x9c] sm:$0xff]
    %v1883 = vld [vmem:[%s1855 + $0xa4] sm:$0xf]
    %v1884 = vld [vmem:[%s1855 + $0xa8] sm:$0xff]
    %v1885 = vld [vmem:[%s1855 + $0xb0] sm:$0xf]
    %v1886 = vld [vmem:[%s1855 + $0xb4] sm:$0xff]
    %v1887 = vld [vmem:[%s1855 + $0xbc] sm:$0xf]
    %v1888 = vld [vmem:[%s1855 + $0xc0] sm:$0xff]
    %v1889 = vld [vmem:[%s1855 + $0xc8] sm:$0xf]
    %v1890 = vld [vmem:[%s1855 + $0xcc] sm:$0xff]
    %v1891 = vld [vmem:[%s1855 + $0xd4] sm:$0xf]
    %v1892 = vld [vmem:[%s1855 + $0xd8] sm:$0xff]
    %v1893 = vld [vmem:[%s1855 + $0xe0] sm:$0xf]
    %v1894 = vld [vmem:[%s1855 + $0xe4] sm:$0xff]
    %v1895 = vld [vmem:[%s1855 + $0xec] sm:$0xf]
    %v1896 = vld [vmem:[%s1855 + $0xf0] sm:$0xff]
    %v1897 = vld [vmem:[%s1855 + $0xf8] sm:$0xf]
    %v1898 = vld [vmem:[%s1855 + $0xfc] sm:$0xff]
    %v1899 = vld [vmem:[%s1855 + $0x104] sm:$0xf]
    %v1900 = vld [vmem:[%s1855 + $0x108] sm:$0xff]
    %v1901 = vld [vmem:[%s1855 + $0x110] sm:$0xf]
    %v1902 = vld [vmem:[%s1855 + $0x114] sm:$0xff]
    %v1903 = vld [vmem:[%s1855 + $0x11c] sm:$0xf]
    %v1904 = vld [vmem:[%s1855 + $0x120] sm:$0xff]
    %v1905 = vld [vmem:[%s1855 + $0x128] sm:$0xf]
    %v1906 = vld [vmem:[%s1855 + $0x12c] sm:$0xff]
    %v1907 = vld [vmem:[%s1855 + $0x134] sm:$0xf]
    %v1908 = vld [vmem:[%s1855 + $0x138] sm:$0xff]
    %v1909 = vld [vmem:[%s1855 + $0x140] sm:$0xf]
    %v1910 = vld [vmem:[%s1855 + $0x144] sm:$0xff]
    %v1911 = vld [vmem:[%s1855 + $0x14c] sm:$0xf]
    %v1912 = vld [vmem:[%s1855 + $0x150] sm:$0xff]
    %v1913 = vld [vmem:[%s1855 + $0x158] sm:$0xf]
    %v1914 = vld [vmem:[%s1855 + $0x15c] sm:$0xff]
    %v1915 = vld [vmem:[%s1855 + $0x164] sm:$0xf]
    %v1916 = vld [vmem:[%s1855 + $0x168] sm:$0xff]
    %v1917 = vld [vmem:[%s1855 + $0x170] sm:$0xf]
    %v1918 = vld [vmem:[%s1855 + $0x174] sm:$0xff]
    %v1919 = vld [vmem:[%s1855 + $0x17c] sm:$0xf]
    %v1920 = vld [vmem:[%s1855 + $0x180] sm:$0xff]
    %v1921 = vld [vmem:[%s1855 + $0x188] sm:$0xf]
    %v1922 = vld [vmem:[%s1855 + $0x18c] sm:$0xff]
    %v1923 = vld [vmem:[%s1855 + $0x194] sm:$0xf]
    %v1924 = vld [vmem:[%s1855 + $0x198] sm:$0xff]
    %v1925 = vld [vmem:[%s1855 + $0x1a0] sm:$0xf]
    %v1926 = vld [vmem:[%s1855 + $0x1a4] sm:$0xff]
    %v1927 = vld [vmem:[%s1855 + $0x1ac] sm:$0xf]
    %v1928 = vld [vmem:[%s1855 + $0x1b0] sm:$0xff]
    %v1929 = vld [vmem:[%s1855 + $0x1b8] sm:$0xf]
    %v1930 = vld [vmem:[%s1855 + $0x1bc] sm:$0xff]
    %v1931 = vld [vmem:[%s1855 + $0x1c4] sm:$0xf]
    %v1932 = vld [vmem:[%s1855 + $0x1c8] sm:$0xff]
    %v1933 = vld [vmem:[%s1855 + $0x1d0] sm:$0xf]
    %v1934 = vld [vmem:[%s1855 + $0x1d4] sm:$0xff]
    %v1935 = vld [vmem:[%s1855 + $0x1dc] sm:$0xf]
    %v1936 = vld [vmem:[%s1855 + $0x1e0] sm:$0xff]
    %v1937 = vld [vmem:[%s1855 + $0x1e8] sm:$0xf]
    %v1938 = vld [vmem:[%s1855 + $0x1ec] sm:$0xff]
    %v1939 = vld [vmem:[%s1855 + $0x1f4] sm:$0xf]
    %v1940 = vld [vmem:[%s1855 + $0x1f8] sm:$0xff]
    %v1941 = vld [vmem:[%s1855 + $0x200] sm:$0xf]
    %v1942 = vld [vmem:[%s1855 + $0x204] sm:$0xff]
    %v1943 = vld [vmem:[%s1855 + $0x20c] sm:$0xf]
    %v1944 = vld [vmem:[%s1855 + $0x210] sm:$0xff]
    %v1945 = vld [vmem:[%s1855 + $0x218] sm:$0xf]
    %v1946 = vld [vmem:[%s1855 + $0x21c] sm:$0xff]
    %v1947 = vld [vmem:[%s1855 + $0x224] sm:$0xf]
    %v1948 = vld [vmem:[%s1855 + $0x228] sm:$0xff]
    %v1949 = vld [vmem:[%s1855 + $0x230] sm:$0xf]
    %v1950 = vld [vmem:[%s1855 + $0x234] sm:$0xff]
    %v1951 = vld [vmem:[%s1855 + $0x23c] sm:$0xf]
    %v1952 = vld [vmem:[%s1855 + $0x240] sm:$0xff]
    %v1953 = vld [vmem:[%s1855 + $0x248] sm:$0xf]
    %v1954 = vld [vmem:[%s1855 + $0x24c] sm:$0xff]
    %v1955 = vld [vmem:[%s1855 + $0x254] sm:$0xf]
    %v1956 = vld [vmem:[%s1855 + $0x258] sm:$0xff]
    %v1957 = vld [vmem:[%s1855 + $0x260] sm:$0xf]
    %v1958 = vld [vmem:[%s1855 + $0x264] sm:$0xff]
    %v1959 = vld [vmem:[%s1855 + $0x26c] sm:$0xf]
    %v1960 = vld [vmem:[%s1855 + $0x270] sm:$0xff]
    %v1961 = vld [vmem:[%s1855 + $0x278] sm:$0xf]
    %v1962 = vld [vmem:[%s1855 + $0x27c] sm:$0xff]
    %v1963 = vld [vmem:[%s1855 + $0x284] sm:$0xf]
    %v1964 = vld [vmem:[%s1855 + $0x288] sm:$0xff]
    %v1965 = vld [vmem:[%s1855 + $0x290] sm:$0xf]
    %v1966 = vld [vmem:[%s1855 + $0x294] sm:$0xff]
    %v1967 = vld [vmem:[%s1855 + $0x29c] sm:$0xf]
    %v1968 = vld [vmem:[%s1855 + $0x2a0] sm:$0xff]
    %v1969 = vld [vmem:[%s1855 + $0x2a8] sm:$0xf]
    %v1970 = vld [vmem:[%s1855 + $0x2ac] sm:$0xff]
    %v1971 = vld [vmem:[%s1855 + $0x2b4] sm:$0xf]
    %v1972 = vld [vmem:[%s1855 + $0x2b8] sm:$0xff]
    %v1973 = vld [vmem:[%s1855 + $0x2c0] sm:$0xf]
    %v1974 = vld [vmem:[%s1855 + $0x2c4] sm:$0xff]
    %v1975 = vld [vmem:[%s1855 + $0x2cc] sm:$0xf]
    %v1976 = vld [vmem:[%s1855 + $0x2d0] sm:$0xff]
    %v1977 = vld [vmem:[%s1855 + $0x2d8] sm:$0xf]
    %v1978 = vld [vmem:[%s1855 + $0x2dc] sm:$0xff]
    %v1979 = vld [vmem:[%s1855 + $0x2e4] sm:$0xf]
    %v1980 = vld [vmem:[%s1855 + $0x2e8] sm:$0xff]
    %v1981 = vld [vmem:[%s1855 + $0x2f0] sm:$0xf]
    %v1982 = vld [vmem:[%s1855 + $0x2f4] sm:$0xff]
    %v1983 = vld [vmem:[%s1855 + $0x2fc] sm:$0xf]
    %v1984 = vld [vmem:[#allocation9 + $0x3] sm:$0x7]
    %v1986 = vlaneseq
    %v1987 = vshrl.u32 %v1986, 7
    %v1988 = vsub.s32 0, %v1987
    %v1989 = vrot.slane %v1984, %v1988
    %v1990 = vlaneseq
    %v1991 = vshrl.u32 %v1990, 7
    %v1992 = vsub.s32 1, %v1991
    %v1993 = vrot.slane %v1984, %v1992
    %v1994 = vlaneseq
    %v1995 = vshrl.u32 %v1994, 7
    %v1996 = vsub.s32 2, %v1995
    %v1997 = vrot.slane %v1984, %v1996
    %v2129 = vunpack.c.l.b16 %v1856
    %v2130 = vunpack.c.h.b16 %v1856
    %v2131 = vunpack.c.l.b16 %v1857
    %v2132 = vunpack.c.l.b16 %v1858
    %v2133 = vunpack.c.h.b16 %v1858
    %v2134 = vunpack.c.l.b16 %v1859
    %v2135 = vunpack.c.l.b16 %v1860
    %v2136 = vunpack.c.h.b16 %v1860
    %v2137 = vunpack.c.l.b16 %v1861
    %v2138 = vunpack.c.l.b16 %v1862
    %v2139 = vunpack.c.h.b16 %v1862
    %v2140 = vunpack.c.l.b16 %v1863
    %v2141 = vunpack.c.l.b16 %v1864
    %v2142 = vunpack.c.h.b16 %v1864
    %v2143 = vunpack.c.l.b16 %v1865
    %v2144 = vunpack.c.l.b16 %v1866
    %v2145 = vunpack.c.h.b16 %v1866
    %v2146 = vunpack.c.l.b16 %v1867
    %v2147 = vunpack.c.l.b16 %v1868
    %v2148 = vunpack.c.h.b16 %v1868
    %v2149 = vunpack.c.l.b16 %v1869
    %v2150 = vunpack.c.l.b16 %v1870
    %v2151 = vunpack.c.h.b16 %v1870
    %v2152 = vunpack.c.l.b16 %v1871
    %v2153 = vunpack.c.l.b16 %v1872
    %v2154 = vunpack.c.h.b16 %v1872
    %v2155 = vunpack.c.l.b16 %v1873
    %v2156 = vunpack.c.l.b16 %v1874
    %v2157 = vunpack.c.h.b16 %v1874
    %v2158 = vunpack.c.l.b16 %v1875
    %v2159 = vunpack.c.l.b16 %v1876
    %v2160 = vunpack.c.h.b16 %v1876
    %v2161 = vunpack.c.l.b16 %v1877
    %v2162 = vunpack.c.l.b16 %v1878
    %v2163 = vunpack.c.h.b16 %v1878
    %v2164 = vunpack.c.l.b16 %v1879
    %v2165 = vunpack.c.l.b16 %v1880
    %v2166 = vunpack.c.h.b16 %v1880
    %v2167 = vunpack.c.l.b16 %v1881
    %v2168 = vunpack.c.l.b16 %v1882
    %v2169 = vunpack.c.h.b16 %v1882
    %v2170 = vunpack.c.l.b16 %v1883
    %v2171 = vunpack.c.l.b16 %v1884
    %v2172 = vunpack.c.h.b16 %v1884
    %v2173 = vunpack.c.l.b16 %v1885
    %v2174 = vunpack.c.l.b16 %v1886
    %v2175 = vunpack.c.h.b16 %v1886
    %v2176 = vunpack.c.l.b16 %v1887
    %v2177 = vunpack.c.l.b16 %v1888
    %v2178 = vunpack.c.h.b16 %v1888
    %v2179 = vunpack.c.l.b16 %v1889
    %v2180 = vunpack.c.l.b16 %v1890
    %v2181 = vunpack.c.h.b16 %v1890
    %v2182 = vunpack.c.l.b16 %v1891
    %v2183 = vunpack.c.l.b16 %v1892
    %v2184 = vunpack.c.h.b16 %v1892
    %v2185 = vunpack.c.l.b16 %v1893
    %v2186 = vunpack.c.l.b16 %v1894
    %v2187 = vunpack.c.h.b16 %v1894
    %v2188 = vunpack.c.l.b16 %v1895
    %v2189 = vunpack.c.l.b16 %v1896
    %v2190 = vunpack.c.h.b16 %v1896
    %v2191 = vunpack.c.l.b16 %v1897
    %v2192 = vunpack.c.l.b16 %v1898
    %v2193 = vunpack.c.h.b16 %v1898
    %v2194 = vunpack.c.l.b16 %v1899
    %v2195 = vunpack.c.l.b16 %v1900
    %v2196 = vunpack.c.h.b16 %v1900
    %v2197 = vunpack.c.l.b16 %v1901
    %v2198 = vunpack.c.l.b16 %v1902
    %v2199 = vunpack.c.h.b16 %v1902
    %v2200 = vunpack.c.l.b16 %v1903
    %v2201 = vunpack.c.l.b16 %v1904
    %v2202 = vunpack.c.h.b16 %v1904
    %v2203 = vunpack.c.l.b16 %v1905
    %v2204 = vunpack.c.l.b16 %v1906
    %v2205 = vunpack.c.h.b16 %v1906
    %v2206 = vunpack.c.l.b16 %v1907
    %v2207 = vunpack.c.l.b16 %v1908
    %v2208 = vunpack.c.h.b16 %v1908
    %v2209 = vunpack.c.l.b16 %v1909
    %v2210 = vunpack.c.l.b16 %v1910
    %v2211 = vunpack.c.h.b16 %v1910
    %v2212 = vunpack.c.l.b16 %v1911
    %v2213 = vunpack.c.l.b16 %v1912
    %v2214 = vunpack.c.h.b16 %v1912
    %v2215 = vunpack.c.l.b16 %v1913
    %v2216 = vunpack.c.l.b16 %v1914
    %v2217 = vunpack.c.h.b16 %v1914
    %v2218 = vunpack.c.l.b16 %v1915
    %v2219 = vunpack.c.l.b16 %v1916
    %v2220 = vunpack.c.h.b16 %v1916
    %v2221 = vunpack.c.l.b16 %v1917
    %v2222 = vunpack.c.l.b16 %v1918
    %v2223 = vunpack.c.h.b16 %v1918
    %v2224 = vunpack.c.l.b16 %v1919
    %v2225 = vunpack.c.l.b16 %v1920
    %v2226 = vunpack.c.h.b16 %v1920
    %v2227 = vunpack.c.l.b16 %v1921
    %v2228 = vunpack.c.l.b16 %v1922
    %v2229 = vunpack.c.h.b16 %v1922
    %v2230 = vunpack.c.l.b16 %v1923
    %v2231 = vunpack.c.l.b16 %v1924
    %v2232 = vunpack.c.h.b16 %v1924
    %v2233 = vunpack.c.l.b16 %v1925
    %v2234 = vunpack.c.l.b16 %v1926
    %v2235 = vunpack.c.h.b16 %v1926
    %v2236 = vunpack.c.l.b16 %v1927
    %v2237 = vunpack.c.l.b16 %v1928
    %v2238 = vunpack.c.h.b16 %v1928
    %v2239 = vunpack.c.l.b16 %v1929
    %v2240 = vunpack.c.l.b16 %v1930
    %v2241 = vunpack.c.h.b16 %v1930
    %v2242 = vunpack.c.l.b16 %v1931
    %v2243 = vunpack.c.l.b16 %v1932
    %v2244 = vunpack.c.h.b16 %v1932
    %v2245 = vunpack.c.l.b16 %v1933
    %v2246 = vunpack.c.l.b16 %v1934
    %v2247 = vunpack.c.h.b16 %v1934
    %v2248 = vunpack.c.l.b16 %v1935
    %v2249 = vunpack.c.l.b16 %v1936
    %v2250 = vunpack.c.h.b16 %v1936
    %v2251 = vunpack.c.l.b16 %v1937
    %v2252 = vunpack.c.l.b16 %v1938
    %v2253 = vunpack.c.h.b16 %v1938
    %v2254 = vunpack.c.l.b16 %v1939
    %v2255 = vunpack.c.l.b16 %v1940
    %v2256 = vunpack.c.h.b16 %v1940
    %v2257 = vunpack.c.l.b16 %v1941
    %v2258 = vunpack.c.l.b16 %v1942
    %v2259 = vunpack.c.h.b16 %v1942
    %v2260 = vunpack.c.l.b16 %v1943
    %v2261 = vunpack.c.l.b16 %v1944
    %v2262 = vunpack.c.h.b16 %v1944
    %v2263 = vunpack.c.l.b16 %v1945
    %v2264 = vunpack.c.l.b16 %v1946
    %v2265 = vunpack.c.h.b16 %v1946
    %v2266 = vunpack.c.l.b16 %v1947
    %v2267 = vunpack.c.l.b16 %v1948
    %v2268 = vunpack.c.h.b16 %v1948
    %v2269 = vunpack.c.l.b16 %v1949
    %v2270 = vunpack.c.l.b16 %v1950
    %v2271 = vunpack.c.h.b16 %v1950
    %v2272 = vunpack.c.l.b16 %v1951
    %v2273 = vunpack.c.l.b16 %v1952
    %v2274 = vunpack.c.h.b16 %v1952
    %v2275 = vunpack.c.l.b16 %v1953
    %v2276 = vunpack.c.l.b16 %v1954
    %v2277 = vunpack.c.h.b16 %v1954
    %v2278 = vunpack.c.l.b16 %v1955
    %v2279 = vunpack.c.l.b16 %v1956
    %v2280 = vunpack.c.h.b16 %v1956
    %v2281 = vunpack.c.l.b16 %v1957
    %v2282 = vunpack.c.l.b16 %v1958
    %v2283 = vunpack.c.h.b16 %v1958
    %v2284 = vunpack.c.l.b16 %v1959
    %v2285 = vunpack.c.l.b16 %v1960
    %v2286 = vunpack.c.h.b16 %v1960
    %v2287 = vunpack.c.l.b16 %v1961
    %v2288 = vunpack.c.l.b16 %v1962
    %v2289 = vunpack.c.h.b16 %v1962
    %v2290 = vunpack.c.l.b16 %v1963
    %v2291 = vunpack.c.l.b16 %v1964
    %v2292 = vunpack.c.h.b16 %v1964
    %v2293 = vunpack.c.l.b16 %v1965
    %v2294 = vunpack.c.l.b16 %v1966
    %v2295 = vunpack.c.h.b16 %v1966
    %v2296 = vunpack.c.l.b16 %v1967
    %v2297 = vunpack.c.l.b16 %v1968
    %v2298 = vunpack.c.h.b16 %v1968
    %v2299 = vunpack.c.l.b16 %v1969
    %v2300 = vunpack.c.l.b16 %v1970
    %v2301 = vunpack.c.h.b16 %v1970
    %v2302 = vunpack.c.l.b16 %v1971
    %v2303 = vunpack.c.l.b16 %v1972
    %v2304 = vunpack.c.h.b16 %v1972
    %v2305 = vunpack.c.l.b16 %v1973
    %v2306 = vunpack.c.l.b16 %v1974
    %v2307 = vunpack.c.h.b16 %v1974
    %v2308 = vunpack.c.l.b16 %v1975
    %v2309 = vunpack.c.l.b16 %v1976
    %v2310 = vunpack.c.h.b16 %v1976
    %v2311 = vunpack.c.l.b16 %v1977
    %v2312 = vunpack.c.l.b16 %v1978
    %v2313 = vunpack.c.h.b16 %v1978
    %v2314 = vunpack.c.l.b16 %v1979
    %v2315 = vunpack.c.l.b16 %v1980
    %v2316 = vunpack.c.h.b16 %v1980
    %v2317 = vunpack.c.l.b16 %v1981
    %v2318 = vunpack.c.l.b16 %v1982
    %v2319 = vunpack.c.h.b16 %v1982
    %v2320 = vunpack.c.l.b16 %v1983
    %v2321 = vpack.c.b16 %v2132, %v2129
    %v2322 = vpack.c.b16 %v2133, %v2130
    %v2323 = vpack.c.b16 %v2134, %v2131
    %v2324 = vpack.c.b16 %v2138, %v2135
    %v2325 = vpack.c.b16 %v2139, %v2136
    %v2326 = vpack.c.b16 %v2140, %v2137
    %v2327 = vpack.c.b16 %v2144, %v2141
    %v2328 = vpack.c.b16 %v2145, %v2142
    %v2329 = vpack.c.b16 %v2146, %v2143
    %v2330 = vpack.c.b16 %v2150, %v2147
    %v2331 = vpack.c.b16 %v2151, %v2148
    %v2332 = vpack.c.b16 %v2152, %v2149
    %v2333 = vpack.c.b16 %v2156, %v2153
    %v2334 = vpack.c.b16 %v2157, %v2154
    %v2335 = vpack.c.b16 %v2158, %v2155
    %v2336 = vpack.c.b16 %v2162, %v2159
    %v2337 = vpack.c.b16 %v2163, %v2160
    %v2338 = vpack.c.b16 %v2164, %v2161
    %v2339 = vpack.c.b16 %v2168, %v2165
    %v2340 = vpack.c.b16 %v2169, %v2166
    %v2341 = vpack.c.b16 %v2170, %v2167
    %v2342 = vpack.c.b16 %v2174, %v2171
    %v2343 = vpack.c.b16 %v2175, %v2172
    %v2344 = vpack.c.b16 %v2176, %v2173
    %v2345 = vpack.c.b16 %v2180, %v2177
    %v2346 = vpack.c.b16 %v2181, %v2178
    %v2347 = vpack.c.b16 %v2182, %v2179
    %v2348 = vpack.c.b16 %v2186, %v2183
    %v2349 = vpack.c.b16 %v2187, %v2184
    %v2350 = vpack.c.b16 %v2188, %v2185
    %v2351 = vpack.c.b16 %v2192, %v2189
    %v2352 = vpack.c.b16 %v2193, %v2190
    %v2353 = vpack.c.b16 %v2194, %v2191
    %v2354 = vpack.c.b16 %v2198, %v2195
    %v2355 = vpack.c.b16 %v2199, %v2196
    %v2356 = vpack.c.b16 %v2200, %v2197
    %v2357 = vpack.c.b16 %v2204, %v2201
    %v2358 = vpack.c.b16 %v2205, %v2202
    %v2359 = vpack.c.b16 %v2206, %v2203
    %v2360 = vpack.c.b16 %v2210, %v2207
    %v2361 = vpack.c.b16 %v2211, %v2208
    %v2362 = vpack.c.b16 %v2212, %v2209
    %v2363 = vpack.c.b16 %v2216, %v2213
    %v2364 = vpack.c.b16 %v2217, %v2214
    %v2365 = vpack.c.b16 %v2218, %v2215
    %v2366 = vpack.c.b16 %v2222, %v2219
    %v2367 = vpack.c.b16 %v2223, %v2220
    %v2368 = vpack.c.b16 %v2224, %v2221
    %v2369 = vpack.c.b16 %v2228, %v2225
    %v2370 = vpack.c.b16 %v2229, %v2226
    %v2371 = vpack.c.b16 %v2230, %v2227
    %v2372 = vpack.c.b16 %v2234, %v2231
    %v2373 = vpack.c.b16 %v2235, %v2232
    %v2374 = vpack.c.b16 %v2236, %v2233
    %v2375 = vpack.c.b16 %v2240, %v2237
    %v2376 = vpack.c.b16 %v2241, %v2238
    %v2377 = vpack.c.b16 %v2242, %v2239
    %v2378 = vpack.c.b16 %v2246, %v2243
    %v2379 = vpack.c.b16 %v2247, %v2244
    %v2380 = vpack.c.b16 %v2248, %v2245
    %v2381 = vpack.c.b16 %v2252, %v2249
    %v2382 = vpack.c.b16 %v2253, %v2250
    %v2383 = vpack.c.b16 %v2254, %v2251
    %v2384 = vpack.c.b16 %v2258, %v2255
    %v2385 = vpack.c.b16 %v2259, %v2256
    %v2386 = vpack.c.b16 %v2260, %v2257
    %v2387 = vpack.c.b16 %v2264, %v2261
    %v2388 = vpack.c.b16 %v2265, %v2262
    %v2389 = vpack.c.b16 %v2266, %v2263
    %v2390 = vpack.c.b16 %v2270, %v2267
    %v2391 = vpack.c.b16 %v2271, %v2268
    %v2392 = vpack.c.b16 %v2272, %v2269
    %v2393 = vpack.c.b16 %v2276, %v2273
    %v2394 = vpack.c.b16 %v2277, %v2274
    %v2395 = vpack.c.b16 %v2278, %v2275
    %v2396 = vpack.c.b16 %v2282, %v2279
    %v2397 = vpack.c.b16 %v2283, %v2280
    %v2398 = vpack.c.b16 %v2284, %v2281
    %v2399 = vpack.c.b16 %v2288, %v2285
    %v2400 = vpack.c.b16 %v2289, %v2286
    %v2401 = vpack.c.b16 %v2290, %v2287
    %v2402 = vpack.c.b16 %v2294, %v2291
    %v2403 = vpack.c.b16 %v2295, %v2292
    %v2404 = vpack.c.b16 %v2296, %v2293
    %v2405 = vpack.c.b16 %v2300, %v2297
    %v2406 = vpack.c.b16 %v2301, %v2298
    %v2407 = vpack.c.b16 %v2302, %v2299
    %v2408 = vpack.c.b16 %v2306, %v2303
    %v2409 = vpack.c.b16 %v2307, %v2304
    %v2410 = vpack.c.b16 %v2308, %v2305
    %v2411 = vpack.c.b16 %v2312, %v2309
    %v2412 = vpack.c.b16 %v2313, %v2310
    %v2413 = vpack.c.b16 %v2314, %v2311
    %v2414 = vpack.c.b16 %v2318, %v2315
    %v2415 = vpack.c.b16 %v2319, %v2316
    %v2416 = vpack.c.b16 %v2320, %v2317
    %2513 = vmatprep.subr.bf16.mxu0 %v2322
    %2514 = vmatpush1.bf16.msra.mxu0 %v2321
    %2515 = vmatprep.subr.bf16.mxu0 %v2325
    %2516 = vmatpush1.bf16.msra.mxu0 %v2324
    %2517 = vmatprep.subr.bf16.mxu0 %v2328
    %2518 = vmatpush1.bf16.msra.mxu0 %v2327
    %2519 = vmatprep.subr.bf16.mxu0 %v2331
    %2520 = vmatpush1.bf16.msra.mxu0 %v2330
    %2521 = vmatprep.subr.bf16.mxu0 %v2334
    %2522 = vmatpush1.bf16.msra.mxu0 %v2333
    %2523 = vmatprep.subr.bf16.mxu0 %v2337
    %2524 = vmatpush1.bf16.msra.mxu0 %v2336
    %2525 = vmatprep.subr.bf16.mxu0 %v2340
    %2526 = vmatpush1.bf16.msra.mxu0 %v2339
    %2527 = vmatprep.subr.bf16.mxu0 %v2343
    %2528 = vmatpush1.bf16.msra.mxu0 %v2342
    %2529 = vmatprep.subr.bf16.mxu0 %v2346
    %2530 = vmatpush1.bf16.msra.mxu0 %v2345
    %2531 = vmatprep.subr.bf16.mxu0 %v2349
    %2532 = vmatpush1.bf16.msra.mxu0 %v2348
    %2533 = vmatprep.subr.bf16.mxu0 %v2352
    %2534 = vmatpush1.bf16.msra.mxu0 %v2351
    %2535 = vmatprep.subr.bf16.mxu0 %v2355
    %2536 = vmatpush1.bf16.msra.mxu0 %v2354
    %2537 = vmatprep.subr.bf16.mxu0 %v2358
    %2538 = vmatpush1.bf16.msra.mxu0 %v2357
    %2539 = vmatprep.subr.bf16.mxu0 %v2361
    %2540 = vmatpush1.bf16.msra.mxu0 %v2360
    %2541 = vmatprep.subr.bf16.mxu0 %v2364
    %2542 = vmatpush1.bf16.msra.mxu0 %v2363
    %2543 = vmatprep.subr.bf16.mxu0 %v2367
    %2544 = vmatpush1.bf16.msra.mxu0 %v2366
    %2545 = vmatprep.mubr.bf16.mxu0 %v726
    %2546 = vmatmul.mubr.bf16.gmra.mrb[0].mxu0 %v725
    %v2547 = vpop.f32.mrb[0].mxu0
    %v2548 = vadd.f32 %v1989, %v2547
    %v2549 = vpop.f32.mrb[0].mxu0
    %v2550 = vadd.f32 %v1993, %v2549
    %v2551 = vpop.f32.mrb[0].mxu0
    %v2552 = vpop.f32.mrb[0].mxu0
    %2553 = vdwg.mxu0
    %2554 = vmatprep.subr.bf16.mxu0 %v2370
    %2555 = vmatpush1.bf16.msra.mxu0 %v2369
    %2556 = vmatprep.subr.bf16.mxu0 %v2373
    %2557 = vmatpush1.bf16.msra.mxu0 %v2372
    %2558 = vmatprep.subr.bf16.mxu0 %v2376
    %2559 = vmatpush1.bf16.msra.mxu0 %v2375
    %2560 = vmatprep.subr.bf16.mxu0 %v2379
    %2561 = vmatpush1.bf16.msra.mxu0 %v2378
    %2562 = vmatprep.subr.bf16.mxu0 %v2382
    %2563 = vmatpush1.bf16.msra.mxu0 %v2381
    %2564 = vmatprep.subr.bf16.mxu0 %v2385
    %2565 = vmatpush1.bf16.msra.mxu0 %v2384
    %2566 = vmatprep.subr.bf16.mxu0 %v2388
    %2567 = vmatpush1.bf16.msra.mxu0 %v2387
    %2568 = vmatprep.subr.bf16.mxu0 %v2391
    %2569 = vmatpush1.bf16.msra.mxu0 %v2390
    %2570 = vmatprep.subr.bf16.mxu0 %v2394
    %2571 = vmatpush1.bf16.msra.mxu0 %v2393
    %2572 = vmatprep.subr.bf16.mxu0 %v2397
    %2573 = vmatpush1.bf16.msra.mxu0 %v2396
    %2574 = vmatprep.subr.bf16.mxu0 %v2400
    %2575 = vmatpush1.bf16.msra.mxu0 %v2399
    %2576 = vmatprep.subr.bf16.mxu0 %v2403
    %2577 = vmatpush1.bf16.msra.mxu0 %v2402
    %2578 = vmatprep.subr.bf16.mxu0 %v2406
    %2579 = vmatpush1.bf16.msra.mxu0 %v2405
    %2580 = vmatprep.subr.bf16.mxu0 %v2409
    %2581 = vmatpush1.bf16.msra.mxu0 %v2408
    %2582 = vmatprep.subr.bf16.mxu0 %v2412
    %2583 = vmatpush1.bf16.msra.mxu0 %v2411
    %2584 = vmatprep.subr.bf16.mxu0 %v2415
    %2585 = vmatpush1.bf16.msra.mxu0 %v2414
    %2586 = vmatprep.mubr.bf16.mxu0 %v728
    %2587 = vmatmul.mubr.bf16.gmra.mrb[0].mxu0 %v727
    %v2588 = vpop.f32.mrb[0].mxu0
    %v2589 = vadd.f32 %v2548, %v2588
    %v2590 = vpop.f32.mrb[0].mxu0
    %v2591 = vadd.f32 %v2550, %v2590
    %v2592 = vpop.f32.mrb[0].mxu0
    %v2593 = vpop.f32.mrb[0].mxu0
    %2594 = vdwg.mxu0
    %2595 = vmatprep.subr.bf16.mxu0 0
    %2596 = vmatpush1.bf16.msra.mxu0 %v2323
    %2597 = vmatprep.subr.bf16.mxu0 0
    %2598 = vmatpush1.bf16.msra.mxu0 %v2326
    %2599 = vmatprep.subr.bf16.mxu0 0
    %2600 = vmatpush1.bf16.msra.mxu0 %v2329
    %2601 = vmatprep.subr.bf16.mxu0 0
    %2602 = vmatpush1.bf16.msra.mxu0 %v2332
    %2603 = vmatprep.subr.bf16.mxu0 0
    %2604 = vmatpush1.bf16.msra.mxu0 %v2335
    %2605 = vmatprep.subr.bf16.mxu0 0
    %2606 = vmatpush1.bf16.msra.mxu0 %v2338
    %2607 = vmatprep.subr.bf16.mxu0 0
    %2608 = vmatpush1.bf16.msra.mxu0 %v2341
    %2609 = vmatprep.subr.bf16.mxu0 0
    %2610 = vmatpush1.bf16.msra.mxu0 %v2344
    %2611 = vmatprep.subr.bf16.mxu0 0
    %2612 = vmatpush1.bf16.msra.mxu0 %v2347
    %2613 = vmatprep.subr.bf16.mxu0 0
    %2614 = vmatpush1.bf16.msra.mxu0 %v2350
    %2615 = vmatprep.subr.bf16.mxu0 0
    %2616 = vmatpush1.bf16.msra.mxu0 %v2353
    %2617 = vmatprep.subr.bf16.mxu0 0
    %2618 = vmatpush1.bf16.msra.mxu0 %v2356
    %2619 = vmatprep.subr.bf16.mxu0 0
    %2620 = vmatpush1.bf16.msra.mxu0 %v2359
    %2621 = vmatprep.subr.bf16.mxu0 0
    %2622 = vmatpush1.bf16.msra.mxu0 %v2362
    %2623 = vmatprep.subr.bf16.mxu0 0
    %2624 = vmatpush1.bf16.msra.mxu0 %v2365
    %2625 = vmatprep.subr.bf16.mxu0 0
    %2626 = vmatpush1.bf16.msra.mxu0 %v2368
    %2627 = vmatprep.mubr.bf16.mxu0 %v726
    %2628 = vmatmul.mubr.bf16.gmra.mrb[0].mxu0 %v725
    %v2629 = vpop.f32.mrb[0].mxu0
    %v2630 = vadd.f32 %v1997, %v2629
    %v2631 = vpop.f32.mrb[0].mxu0
    %v2632 = vpop.f32.mrb[0].mxu0
    %v2633 = vpop.f32.mrb[0].mxu0
    %2634 = vdwg.mxu0
    %2635 = vmatprep.subr.bf16.mxu0 0
    %2636 = vmatpush1.bf16.msra.mxu0 %v2371
    %2637 = vmatprep.subr.bf16.mxu0 0
    %2638 = vmatpush1.bf16.msra.mxu0 %v2374
    %2639 = vmatprep.subr.bf16.mxu0 0
    %2640 = vmatpush1.bf16.msra.mxu0 %v2377
    %2641 = vmatprep.subr.bf16.mxu0 0
    %2642 = vmatpush1.bf16.msra.mxu0 %v2380
    %2643 = vmatprep.subr.bf16.mxu0 0
    %2644 = vmatpush1.bf16.msra.mxu0 %v2383
    %2645 = vmatprep.subr.bf16.mxu0 0
    %2646 = vmatpush1.bf16.msra.mxu0 %v2386
    %2647 = vmatprep.subr.bf16.mxu0 0
    %2648 = vmatpush1.bf16.msra.mxu0 %v2389
    %2649 = vmatprep.subr.bf16.mxu0 0
    %2650 = vmatpush1.bf16.msra.mxu0 %v2392
    %2651 = vmatprep.subr.bf16.mxu0 0
    %2652 = vmatpush1.bf16.msra.mxu0 %v2395
    %2653 = vmatprep.subr.bf16.mxu0 0
    %2654 = vmatpush1.bf16.msra.mxu0 %v2398
    %2655 = vmatprep.subr.bf16.mxu0 0
    %2656 = vmatpush1.bf16.msra.mxu0 %v2401
    %2657 = vmatprep.subr.bf16.mxu0 0
    %2658 = vmatpush1.bf16.msra.mxu0 %v2404
    %2659 = vmatprep.subr.bf16.mxu0 0
    %2660 = vmatpush1.bf16.msra.mxu0 %v2407
    %2661 = vmatprep.subr.bf16.mxu0 0
    %2662 = vmatpush1.bf16.msra.mxu0 %v2410
    %2663 = vmatprep.subr.bf16.mxu0 0
    %2664 = vmatpush1.bf16.msra.mxu0 %v2413
    %2665 = vmatprep.subr.bf16.mxu0 0
    %2666 = vmatpush1.bf16.msra.mxu0 %v2416
    %2667 = vmatprep.mubr.bf16.mxu0 %v728
    %2668 = vmatmul.mubr.bf16.gmra.mrb[0].mxu0 %v727
    %v2669 = vpop.f32.mrb[0].mxu0
    %v2670 = vadd.f32 %v2630, %v2669
    %v2671 = vpop.f32.mrb[0].mxu0
    %v2672 = vpop.f32.mrb[0].mxu0
    %v2673 = vpop.f32.mrb[0].mxu0
    %2674 = vdwg.mxu0
    %v2675 = vmax.f32 %v2589, 0.0
    %v2676 = vmax.f32 %v2591, 0.0
    %v2677 = vmax.f32 %v2670, 0.0
    %s2678 = scalar_lea.vmem [#allocation7], 1536
    %v2679 = vld [vmem:[%s2678] sm:$0xff]
    %v2680 = vld [vmem:[%s2678 + $0x8] sm:$0xf]
    %v2681 = vld [vmem:[%s2678 + $0xc] sm:$0xff]
    %v2682 = vld [vmem:[%s2678 + $0x14] sm:$0xf]
    %v2683 = vld [vmem:[%s2678 + $0x18] sm:$0xff]
    %v2684 = vld [vmem:[%s2678 + $0x20] sm:$0xf]
    %v2685 = vld [vmem:[%s2678 + $0x24] sm:$0xff]
    %v2686 = vld [vmem:[%s2678 + $0x2c] sm:$0xf]
    %v2687 = vld [vmem:[%s2678 + $0x30] sm:$0xff]
    %v2688 = vld [vmem:[%s2678 + $0x38] sm:$0xf]
    %v2689 = vld [vmem:[%s2678 + $0x3c] sm:$0xff]
    %v2690 = vld [vmem:[%s2678 + $0x44] sm:$0xf]
    %v2691 = vld [vmem:[%s2678 + $0x48] sm:$0xff]
    %v2692 = vld [vmem:[%s2678 + $0x50] sm:$0xf]
    %v2693 = vld [vmem:[%s2678 + $0x54] sm:$0xff]
    %v2694 = vld [vmem:[%s2678 + $0x5c] sm:$0xf]
    %v2695 = vld [vmem:[%s2678 + $0x60] sm:$0xff]
    %v2696 = vld [vmem:[%s2678 + $0x68] sm:$0xf]
    %v2697 = vld [vmem:[%s2678 + $0x6c] sm:$0xff]
    %v2698 = vld [vmem:[%s2678 + $0x74] sm:$0xf]
    %v2699 = vld [vmem:[%s2678 + $0x78] sm:$0xff]
    %v2700 = vld [vmem:[%s2678 + $0x80] sm:$0xf]
    %v2701 = vld [vmem:[%s2678 + $0x84] sm:$0xff]
    %v2702 = vld [vmem:[%s2678 + $0x8c] sm:$0xf]
    %v2703 = vld [vmem:[%s2678 + $0x90] sm:$0xff]
    %v2704 = vld [vmem:[%s2678 + $0x98] sm:$0xf]
    %v2705 = vld [vmem:[%s2678 + $0x9c] sm:$0xff]
    %v2706 = vld [vmem:[%s2678 + $0xa4] sm:$0xf]
    %v2707 = vld [vmem:[%s2678 + $0xa8] sm:$0xff]
    %v2708 = vld [vmem:[%s2678 + $0xb0] sm:$0xf]
    %v2709 = vld [vmem:[%s2678 + $0xb4] sm:$0xff]
    %v2710 = vld [vmem:[%s2678 + $0xbc] sm:$0xf]
    %v2711 = vld [vmem:[%s2678 + $0xc0] sm:$0xff]
    %v2712 = vld [vmem:[%s2678 + $0xc8] sm:$0xf]
    %v2713 = vld [vmem:[%s2678 + $0xcc] sm:$0xff]
    %v2714 = vld [vmem:[%s2678 + $0xd4] sm:$0xf]
    %v2715 = vld [vmem:[%s2678 + $0xd8] sm:$0xff]
    %v2716 = vld [vmem:[%s2678 + $0xe0] sm:$0xf]
    %v2717 = vld [vmem:[%s2678 + $0xe4] sm:$0xff]
    %v2718 = vld [vmem:[%s2678 + $0xec] sm:$0xf]
    %v2719 = vld [vmem:[%s2678 + $0xf0] sm:$0xff]
    %v2720 = vld [vmem:[%s2678 + $0xf8] sm:$0xf]
    %v2721 = vld [vmem:[%s2678 + $0xfc] sm:$0xff]
    %v2722 = vld [vmem:[%s2678 + $0x104] sm:$0xf]
    %v2723 = vld [vmem:[%s2678 + $0x108] sm:$0xff]
    %v2724 = vld [vmem:[%s2678 + $0x110] sm:$0xf]
    %v2725 = vld [vmem:[%s2678 + $0x114] sm:$0xff]
    %v2726 = vld [vmem:[%s2678 + $0x11c] sm:$0xf]
    %v2727 = vld [vmem:[%s2678 + $0x120] sm:$0xff]
    %v2728 = vld [vmem:[%s2678 + $0x128] sm:$0xf]
    %v2729 = vld [vmem:[%s2678 + $0x12c] sm:$0xff]
    %v2730 = vld [vmem:[%s2678 + $0x134] sm:$0xf]
    %v2731 = vld [vmem:[%s2678 + $0x138] sm:$0xff]
    %v2732 = vld [vmem:[%s2678 + $0x140] sm:$0xf]
    %v2733 = vld [vmem:[%s2678 + $0x144] sm:$0xff]
    %v2734 = vld [vmem:[%s2678 + $0x14c] sm:$0xf]
    %v2735 = vld [vmem:[%s2678 + $0x150] sm:$0xff]
    %v2736 = vld [vmem:[%s2678 + $0x158] sm:$0xf]
    %v2737 = vld [vmem:[%s2678 + $0x15c] sm:$0xff]
    %v2738 = vld [vmem:[%s2678 + $0x164] sm:$0xf]
    %v2739 = vld [vmem:[%s2678 + $0x168] sm:$0xff]
    %v2740 = vld [vmem:[%s2678 + $0x170] sm:$0xf]
    %v2741 = vld [vmem:[%s2678 + $0x174] sm:$0xff]
    %v2742 = vld [vmem:[%s2678 + $0x17c] sm:$0xf]
    %v2743 = vld [vmem:[%s2678 + $0x180] sm:$0xff]
    %v2744 = vld [vmem:[%s2678 + $0x188] sm:$0xf]
    %v2745 = vld [vmem:[%s2678 + $0x18c] sm:$0xff]
    %v2746 = vld [vmem:[%s2678 + $0x194] sm:$0xf]
    %v2747 = vld [vmem:[%s2678 + $0x198] sm:$0xff]
    %v2748 = vld [vmem:[%s2678 + $0x1a0] sm:$0xf]
    %v2749 = vld [vmem:[%s2678 + $0x1a4] sm:$0xff]
    %v2750 = vld [vmem:[%s2678 + $0x1ac] sm:$0xf]
    %v2751 = vld [vmem:[%s2678 + $0x1b0] sm:$0xff]
    %v2752 = vld [vmem:[%s2678 + $0x1b8] sm:$0xf]
    %v2753 = vld [vmem:[%s2678 + $0x1bc] sm:$0xff]
    %v2754 = vld [vmem:[%s2678 + $0x1c4] sm:$0xf]
    %v2755 = vld [vmem:[%s2678 + $0x1c8] sm:$0xff]
    %v2756 = vld [vmem:[%s2678 + $0x1d0] sm:$0xf]
    %v2757 = vld [vmem:[%s2678 + $0x1d4] sm:$0xff]
    %v2758 = vld [vmem:[%s2678 + $0x1dc] sm:$0xf]
    %v2759 = vld [vmem:[%s2678 + $0x1e0] sm:$0xff]
    %v2760 = vld [vmem:[%s2678 + $0x1e8] sm:$0xf]
    %v2761 = vld [vmem:[%s2678 + $0x1ec] sm:$0xff]
    %v2762 = vld [vmem:[%s2678 + $0x1f4] sm:$0xf]
    %v2763 = vld [vmem:[%s2678 + $0x1f8] sm:$0xff]
    %v2764 = vld [vmem:[%s2678 + $0x200] sm:$0xf]
    %v2765 = vld [vmem:[%s2678 + $0x204] sm:$0xff]
    %v2766 = vld [vmem:[%s2678 + $0x20c] sm:$0xf]
    %v2767 = vld [vmem:[%s2678 + $0x210] sm:$0xff]
    %v2768 = vld [vmem:[%s2678 + $0x218] sm:$0xf]
    %v2769 = vld [vmem:[%s2678 + $0x21c] sm:$0xff]
    %v2770 = vld [vmem:[%s2678 + $0x224] sm:$0xf]
    %v2771 = vld [vmem:[%s2678 + $0x228] sm:$0xff]
    %v2772 = vld [vmem:[%s2678 + $0x230] sm:$0xf]
    %v2773 = vld [vmem:[%s2678 + $0x234] sm:$0xff]
    %v2774 = vld [vmem:[%s2678 + $0x23c] sm:$0xf]
    %v2775 = vld [vmem:[%s2678 + $0x240] sm:$0xff]
    %v2776 = vld [vmem:[%s2678 + $0x248] sm:$0xf]
    %v2777 = vld [vmem:[%s2678 + $0x24c] sm:$0xff]
    %v2778 = vld [vmem:[%s2678 + $0x254] sm:$0xf]
    %v2779 = vld [vmem:[%s2678 + $0x258] sm:$0xff]
    %v2780 = vld [vmem:[%s2678 + $0x260] sm:$0xf]
    %v2781 = vld [vmem:[%s2678 + $0x264] sm:$0xff]
    %v2782 = vld [vmem:[%s2678 + $0x26c] sm:$0xf]
    %v2783 = vld [vmem:[%s2678 + $0x270] sm:$0xff]
    %v2784 = vld [vmem:[%s2678 + $0x278] sm:$0xf]
    %v2785 = vld [vmem:[%s2678 + $0x27c] sm:$0xff]
    %v2786 = vld [vmem:[%s2678 + $0x284] sm:$0xf]
    %v2787 = vld [vmem:[%s2678 + $0x288] sm:$0xff]
    %v2788 = vld [vmem:[%s2678 + $0x290] sm:$0xf]
    %v2789 = vld [vmem:[%s2678 + $0x294] sm:$0xff]
    %v2790 = vld [vmem:[%s2678 + $0x29c] sm:$0xf]
    %v2791 = vld [vmem:[%s2678 + $0x2a0] sm:$0xff]
    %v2792 = vld [vmem:[%s2678 + $0x2a8] sm:$0xf]
    %v2793 = vld [vmem:[%s2678 + $0x2ac] sm:$0xff]
    %v2794 = vld [vmem:[%s2678 + $0x2b4] sm:$0xf]
    %v2795 = vld [vmem:[%s2678 + $0x2b8] sm:$0xff]
    %v2796 = vld [vmem:[%s2678 + $0x2c0] sm:$0xf]
    %v2797 = vld [vmem:[%s2678 + $0x2c4] sm:$0xff]
    %v2798 = vld [vmem:[%s2678 + $0x2cc] sm:$0xf]
    %v2799 = vld [vmem:[%s2678 + $0x2d0] sm:$0xff]
    %v2800 = vld [vmem:[%s2678 + $0x2d8] sm:$0xf]
    %v2801 = vld [vmem:[%s2678 + $0x2dc] sm:$0xff]
    %v2802 = vld [vmem:[%s2678 + $0x2e4] sm:$0xf]
    %v2803 = vld [vmem:[%s2678 + $0x2e8] sm:$0xff]
    %v2804 = vld [vmem:[%s2678 + $0x2f0] sm:$0xf]
    %v2805 = vld [vmem:[%s2678 + $0x2f4] sm:$0xff]
    %v2806 = vld [vmem:[%s2678 + $0x2fc] sm:$0xf]
    %v2807 = vld [vmem:[#allocation9 + $0x6] sm:$0x7]
    %v2809 = vlaneseq
    %v2810 = vshrl.u32 %v2809, 7
    %v2811 = vsub.s32 0, %v2810
    %v2812 = vrot.slane %v2807, %v2811
    %v2813 = vlaneseq
    %v2814 = vshrl.u32 %v2813, 7
    %v2815 = vsub.s32 1, %v2814
    %v2816 = vrot.slane %v2807, %v2815
    %v2817 = vlaneseq
    %v2818 = vshrl.u32 %v2817, 7
    %v2819 = vsub.s32 2, %v2818
    %v2820 = vrot.slane %v2807, %v2819
    %v2952 = vunpack.c.l.b16 %v2679
    %v2953 = vunpack.c.h.b16 %v2679
    %v2954 = vunpack.c.l.b16 %v2680
    %v2955 = vunpack.c.l.b16 %v2681
    %v2956 = vunpack.c.h.b16 %v2681
    %v2957 = vunpack.c.l.b16 %v2682
    %v2958 = vunpack.c.l.b16 %v2683
    %v2959 = vunpack.c.h.b16 %v2683
    %v2960 = vunpack.c.l.b16 %v2684
    %v2961 = vunpack.c.l.b16 %v2685
    %v2962 = vunpack.c.h.b16 %v2685
    %v2963 = vunpack.c.l.b16 %v2686
    %v2964 = vunpack.c.l.b16 %v2687
    %v2965 = vunpack.c.h.b16 %v2687
    %v2966 = vunpack.c.l.b16 %v2688
    %v2967 = vunpack.c.l.b16 %v2689
    %v2968 = vunpack.c.h.b16 %v2689
    %v2969 = vunpack.c.l.b16 %v2690
    %v2970 = vunpack.c.l.b16 %v2691
    %v2971 = vunpack.c.h.b16 %v2691
    %v2972 = vunpack.c.l.b16 %v2692
    %v2973 = vunpack.c.l.b16 %v2693
    %v2974 = vunpack.c.h.b16 %v2693
    %v2975 = vunpack.c.l.b16 %v2694
    %v2976 = vunpack.c.l.b16 %v2695
    %v2977 = vunpack.c.h.b16 %v2695
    %v2978 = vunpack.c.l.b16 %v2696
    %v2979 = vunpack.c.l.b16 %v2697
    %v2980 = vunpack.c.h.b16 %v2697
    %v2981 = vunpack.c.l.b16 %v2698
    %v2982 = vunpack.c.l.b16 %v2699
    %v2983 = vunpack.c.h.b16 %v2699
    %v2984 = vunpack.c.l.b16 %v2700
    %v2985 = vunpack.c.l.b16 %v2701
    %v2986 = vunpack.c.h.b16 %v2701
    %v2987 = vunpack.c.l.b16 %v2702
    %v2988 = vunpack.c.l.b16 %v2703
    %v2989 = vunpack.c.h.b16 %v2703
    %v2990 = vunpack.c.l.b16 %v2704
    %v2991 = vunpack.c.l.b16 %v2705
    %v2992 = vunpack.c.h.b16 %v2705
    %v2993 = vunpack.c.l.b16 %v2706
    %v2994 = vunpack.c.l.b16 %v2707
    %v2995 = vunpack.c.h.b16 %v2707
    %v2996 = vunpack.c.l.b16 %v2708
    %v2997 = vunpack.c.l.b16 %v2709
    %v2998 = vunpack.c.h.b16 %v2709
    %v2999 = vunpack.c.l.b16 %v2710
    %v3000 = vunpack.c.l.b16 %v2711
    %v3001 = vunpack.c.h.b16 %v2711
    %v3002 = vunpack.c.l.b16 %v2712
    %v3003 = vunpack.c.l.b16 %v2713
    %v3004 = vunpack.c.h.b16 %v2713
    %v3005 = vunpack.c.l.b16 %v2714
    %v3006 = vunpack.c.l.b16 %v2715
    %v3007 = vunpack.c.h.b16 %v2715
    %v3008 = vunpack.c.l.b16 %v2716
    %v3009 = vunpack.c.l.b16 %v2717
    %v3010 = vunpack.c.h.b16 %v2717
    %v3011 = vunpack.c.l.b16 %v2718
    %v3012 = vunpack.c.l.b16 %v2719
    %v3013 = vunpack.c.h.b16 %v2719
    %v3014 = vunpack.c.l.b16 %v2720
    %v3015 = vunpack.c.l.b16 %v2721
    %v3016 = vunpack.c.h.b16 %v2721
    %v3017 = vunpack.c.l.b16 %v2722
    %v3018 = vunpack.c.l.b16 %v2723
    %v3019 = vunpack.c.h.b16 %v2723
    %v3020 = vunpack.c.l.b16 %v2724
    %v3021 = vunpack.c.l.b16 %v2725
    %v3022 = vunpack.c.h.b16 %v2725
    %v3023 = vunpack.c.l.b16 %v2726
    %v3024 = vunpack.c.l.b16 %v2727
    %v3025 = vunpack.c.h.b16 %v2727
    %v3026 = vunpack.c.l.b16 %v2728
    %v3027 = vunpack.c.l.b16 %v2729
    %v3028 = vunpack.c.h.b16 %v2729
    %v3029 = vunpack.c.l.b16 %v2730
    %v3030 = vunpack.c.l.b16 %v2731
    %v3031 = vunpack.c.h.b16 %v2731
    %v3032 = vunpack.c.l.b16 %v2732
    %v3033 = vunpack.c.l.b16 %v2733
    %v3034 = vunpack.c.h.b16 %v2733
    %v3035 = vunpack.c.l.b16 %v2734
    %v3036 = vunpack.c.l.b16 %v2735
    %v3037 = vunpack.c.h.b16 %v2735
    %v3038 = vunpack.c.l.b16 %v2736
    %v3039 = vunpack.c.l.b16 %v2737
    %v3040 = vunpack.c.h.b16 %v2737
    %v3041 = vunpack.c.l.b16 %v2738
    %v3042 = vunpack.c.l.b16 %v2739
    %v3043 = vunpack.c.h.b16 %v2739
    %v3044 = vunpack.c.l.b16 %v2740
    %v3045 = vunpack.c.l.b16 %v2741
    %v3046 = vunpack.c.h.b16 %v2741
    %v3047 = vunpack.c.l.b16 %v2742
    %v3048 = vunpack.c.l.b16 %v2743
    %v3049 = vunpack.c.h.b16 %v2743
    %v3050 = vunpack.c.l.b16 %v2744
    %v3051 = vunpack.c.l.b16 %v2745
    %v3052 = vunpack.c.h.b16 %v2745
    %v3053 = vunpack.c.l.b16 %v2746
    %v3054 = vunpack.c.l.b16 %v2747
    %v3055 = vunpack.c.h.b16 %v2747
    %v3056 = vunpack.c.l.b16 %v2748
    %v3057 = vunpack.c.l.b16 %v2749
    %v3058 = vunpack.c.h.b16 %v2749
    %v3059 = vunpack.c.l.b16 %v2750
    %v3060 = vunpack.c.l.b16 %v2751
    %v3061 = vunpack.c.h.b16 %v2751
    %v3062 = vunpack.c.l.b16 %v2752
    %v3063 = vunpack.c.l.b16 %v2753
    %v3064 = vunpack.c.h.b16 %v2753
    %v3065 = vunpack.c.l.b16 %v2754
    %v3066 = vunpack.c.l.b16 %v2755
    %v3067 = vunpack.c.h.b16 %v2755
    %v3068 = vunpack.c.l.b16 %v2756
    %v3069 = vunpack.c.l.b16 %v2757
    %v3070 = vunpack.c.h.b16 %v2757
    %v3071 = vunpack.c.l.b16 %v2758
    %v3072 = vunpack.c.l.b16 %v2759
    %v3073 = vunpack.c.h.b16 %v2759
    %v3074 = vunpack.c.l.b16 %v2760
    %v3075 = vunpack.c.l.b16 %v2761
    %v3076 = vunpack.c.h.b16 %v2761
    %v3077 = vunpack.c.l.b16 %v2762
    %v3078 = vunpack.c.l.b16 %v2763
    %v3079 = vunpack.c.h.b16 %v2763
    %v3080 = vunpack.c.l.b16 %v2764
    %v3081 = vunpack.c.l.b16 %v2765
    %v3082 = vunpack.c.h.b16 %v2765
    %v3083 = vunpack.c.l.b16 %v2766
    %v3084 = vunpack.c.l.b16 %v2767
    %v3085 = vunpack.c.h.b16 %v2767
    %v3086 = vunpack.c.l.b16 %v2768
    %v3087 = vunpack.c.l.b16 %v2769
    %v3088 = vunpack.c.h.b16 %v2769
    %v3089 = vunpack.c.l.b16 %v2770
    %v3090 = vunpack.c.l.b16 %v2771
    %v3091 = vunpack.c.h.b16 %v2771
    %v3092 = vunpack.c.l.b16 %v2772
    %v3093 = vunpack.c.l.b16 %v2773
    %v3094 = vunpack.c.h.b16 %v2773
    %v3095 = vunpack.c.l.b16 %v2774
    %v3096 = vunpack.c.l.b16 %v2775
    %v3097 = vunpack.c.h.b16 %v2775
    %v3098 = vunpack.c.l.b16 %v2776
    %v3099 = vunpack.c.l.b16 %v2777
    %v3100 = vunpack.c.h.b16 %v2777
    %v3101 = vunpack.c.l.b16 %v2778
    %v3102 = vunpack.c.l.b16 %v2779
    %v3103 = vunpack.c.h.b16 %v2779
    %v3104 = vunpack.c.l.b16 %v2780
    %v3105 = vunpack.c.l.b16 %v2781
    %v3106 = vunpack.c.h.b16 %v2781
    %v3107 = vunpack.c.l.b16 %v2782
    %v3108 = vunpack.c.l.b16 %v2783
    %v3109 = vunpack.c.h.b16 %v2783
    %v3110 = vunpack.c.l.b16 %v2784
    %v3111 = vunpack.c.l.b16 %v2785
    %v3112 = vunpack.c.h.b16 %v2785
    %v3113 = vunpack.c.l.b16 %v2786
    %v3114 = vunpack.c.l.b16 %v2787
    %v3115 = vunpack.c.h.b16 %v2787
    %v3116 = vunpack.c.l.b16 %v2788
    %v3117 = vunpack.c.l.b16 %v2789
    %v3118 = vunpack.c.h.b16 %v2789
    %v3119 = vunpack.c.l.b16 %v2790
    %v3120 = vunpack.c.l.b16 %v2791
    %v3121 = vunpack.c.h.b16 %v2791
    %v3122 = vunpack.c.l.b16 %v2792
    %v3123 = vunpack.c.l.b16 %v2793
    %v3124 = vunpack.c.h.b16 %v2793
    %v3125 = vunpack.c.l.b16 %v2794
    %v3126 = vunpack.c.l.b16 %v2795
    %v3127 = vunpack.c.h.b16 %v2795
    %v3128 = vunpack.c.l.b16 %v2796
    %v3129 = vunpack.c.l.b16 %v2797
    %v3130 = vunpack.c.h.b16 %v2797
    %v3131 = vunpack.c.l.b16 %v2798
    %v3132 = vunpack.c.l.b16 %v2799
    %v3133 = vunpack.c.h.b16 %v2799
    %v3134 = vunpack.c.l.b16 %v2800
    %v3135 = vunpack.c.l.b16 %v2801
    %v3136 = vunpack.c.h.b16 %v2801
    %v3137 = vunpack.c.l.b16 %v2802
    %v3138 = vunpack.c.l.b16 %v2803
    %v3139 = vunpack.c.h.b16 %v2803
    %v3140 = vunpack.c.l.b16 %v2804
    %v3141 = vunpack.c.l.b16 %v2805
    %v3142 = vunpack.c.h.b16 %v2805
    %v3143 = vunpack.c.l.b16 %v2806
    %v3144 = vpack.c.b16 %v2955, %v2952
    %v3145 = vpack.c.b16 %v2956, %v2953
    %v3146 = vpack.c.b16 %v2957, %v2954
    %v3147 = vpack.c.b16 %v2961, %v2958
    %v3148 = vpack.c.b16 %v2962, %v2959
    %v3149 = vpack.c.b16 %v2963, %v2960
    %v3150 = vpack.c.b16 %v2967, %v2964
    %v3151 = vpack.c.b16 %v2968, %v2965
    %v3152 = vpack.c.b16 %v2969, %v2966
    %v3153 = vpack.c.b16 %v2973, %v2970
    %v3154 = vpack.c.b16 %v2974, %v2971
    %v3155 = vpack.c.b16 %v2975, %v2972
    %v3156 = vpack.c.b16 %v2979, %v2976
    %v3157 = vpack.c.b16 %v2980, %v2977
    %v3158 = vpack.c.b16 %v2981, %v2978
    %v3159 = vpack.c.b16 %v2985, %v2982
    %v3160 = vpack.c.b16 %v2986, %v2983
    %v3161 = vpack.c.b16 %v2987, %v2984
    %v3162 = vpack.c.b16 %v2991, %v2988
    %v3163 = vpack.c.b16 %v2992, %v2989
    %v3164 = vpack.c.b16 %v2993, %v2990
    %v3165 = vpack.c.b16 %v2997, %v2994
    %v3166 = vpack.c.b16 %v2998, %v2995
    %v3167 = vpack.c.b16 %v2999, %v2996
    %v3168 = vpack.c.b16 %v3003, %v3000
    %v3169 = vpack.c.b16 %v3004, %v3001
    %v3170 = vpack.c.b16 %v3005, %v3002
    %v3171 = vpack.c.b16 %v3009, %v3006
    %v3172 = vpack.c.b16 %v3010, %v3007
    %v3173 = vpack.c.b16 %v3011, %v3008
    %v3174 = vpack.c.b16 %v3015, %v3012
    %v3175 = vpack.c.b16 %v3016, %v3013
    %v3176 = vpack.c.b16 %v3017, %v3014
    %v3177 = vpack.c.b16 %v3021, %v3018
    %v3178 = vpack.c.b16 %v3022, %v3019
    %v3179 = vpack.c.b16 %v3023, %v3020
    %v3180 = vpack.c.b16 %v3027, %v3024
    %v3181 = vpack.c.b16 %v3028, %v3025
    %v3182 = vpack.c.b16 %v3029, %v3026
    %v3183 = vpack.c.b16 %v3033, %v3030
    %v3184 = vpack.c.b16 %v3034, %v3031
    %v3185 = vpack.c.b16 %v3035, %v3032
    %v3186 = vpack.c.b16 %v3039, %v3036
    %v3187 = vpack.c.b16 %v3040, %v3037
    %v3188 = vpack.c.b16 %v3041, %v3038
    %v3189 = vpack.c.b16 %v3045, %v3042
    %v3190 = vpack.c.b16 %v3046, %v3043
    %v3191 = vpack.c.b16 %v3047, %v3044
    %v3192 = vpack.c.b16 %v3051, %v3048
    %v3193 = vpack.c.b16 %v3052, %v3049
    %v3194 = vpack.c.b16 %v3053, %v3050
    %v3195 = vpack.c.b16 %v3057, %v3054
    %v3196 = vpack.c.b16 %v3058, %v3055
    %v3197 = vpack.c.b16 %v3059, %v3056
    %v3198 = vpack.c.b16 %v3063, %v3060
    %v3199 = vpack.c.b16 %v3064, %v3061
    %v3200 = vpack.c.b16 %v3065, %v3062
    %v3201 = vpack.c.b16 %v3069, %v3066
    %v3202 = vpack.c.b16 %v3070, %v3067
    %v3203 = vpack.c.b16 %v3071, %v3068
    %v3204 = vpack.c.b16 %v3075, %v3072
    %v3205 = vpack.c.b16 %v3076, %v3073
    %v3206 = vpack.c.b16 %v3077, %v3074
    %v3207 = vpack.c.b16 %v3081, %v3078
    %v3208 = vpack.c.b16 %v3082, %v3079
    %v3209 = vpack.c.b16 %v3083, %v3080
    %v3210 = vpack.c.b16 %v3087, %v3084
    %v3211 = vpack.c.b16 %v3088, %v3085
    %v3212 = vpack.c.b16 %v3089, %v3086
    %v3213 = vpack.c.b16 %v3093, %v3090
    %v3214 = vpack.c.b16 %v3094, %v3091
    %v3215 = vpack.c.b16 %v3095, %v3092
    %v3216 = vpack.c.b16 %v3099, %v3096
    %v3217 = vpack.c.b16 %v3100, %v3097
    %v3218 = vpack.c.b16 %v3101, %v3098
    %v3219 = vpack.c.b16 %v3105, %v3102
    %v3220 = vpack.c.b16 %v3106, %v3103
    %v3221 = vpack.c.b16 %v3107, %v3104
    %v3222 = vpack.c.b16 %v3111, %v3108
    %v3223 = vpack.c.b16 %v3112, %v3109
    %v3224 = vpack.c.b16 %v3113, %v3110
    %v3225 = vpack.c.b16 %v3117, %v3114
    %v3226 = vpack.c.b16 %v3118, %v3115
    %v3227 = vpack.c.b16 %v3119, %v3116
    %v3228 = vpack.c.b16 %v3123, %v3120
    %v3229 = vpack.c.b16 %v3124, %v3121
    %v3230 = vpack.c.b16 %v3125, %v3122
    %v3231 = vpack.c.b16 %v3129, %v3126
    %v3232 = vpack.c.b16 %v3130, %v3127
    %v3233 = vpack.c.b16 %v3131, %v3128
    %v3234 = vpack.c.b16 %v3135, %v3132
    %v3235 = vpack.c.b16 %v3136, %v3133
    %v3236 = vpack.c.b16 %v3137, %v3134
    %v3237 = vpack.c.b16 %v3141, %v3138
    %v3238 = vpack.c.b16 %v3142, %v3139
    %v3239 = vpack.c.b16 %v3143, %v3140
    %3336 = vmatprep.subr.bf16.mxu0 %v3145
    %3337 = vmatpush1.bf16.msra.mxu0 %v3144
    %3338 = vmatprep.subr.bf16.mxu0 %v3148
    %3339 = vmatpush1.bf16.msra.mxu0 %v3147
    %3340 = vmatprep.subr.bf16.mxu0 %v3151
    %3341 = vmatpush1.bf16.msra.mxu0 %v3150
    %3342 = vmatprep.subr.bf16.mxu0 %v3154
    %3343 = vmatpush1.bf16.msra.mxu0 %v3153
    %3344 = vmatprep.subr.bf16.mxu0 %v3157
    %3345 = vmatpush1.bf16.msra.mxu0 %v3156
    %3346 = vmatprep.subr.bf16.mxu0 %v3160
    %3347 = vmatpush1.bf16.msra.mxu0 %v3159
    %3348 = vmatprep.subr.bf16.mxu0 %v3163
    %3349 = vmatpush1.bf16.msra.mxu0 %v3162
    %3350 = vmatprep.subr.bf16.mxu0 %v3166
    %3351 = vmatpush1.bf16.msra.mxu0 %v3165
    %3352 = vmatprep.subr.bf16.mxu0 %v3169
    %3353 = vmatpush1.bf16.msra.mxu0 %v3168
    %3354 = vmatprep.subr.bf16.mxu0 %v3172
    %3355 = vmatpush1.bf16.msra.mxu0 %v3171
    %3356 = vmatprep.subr.bf16.mxu0 %v3175
    %3357 = vmatpush1.bf16.msra.mxu0 %v3174
    %3358 = vmatprep.subr.bf16.mxu0 %v3178
    %3359 = vmatpush1.bf16.msra.mxu0 %v3177
    %3360 = vmatprep.subr.bf16.mxu0 %v3181
    %3361 = vmatpush1.bf16.msra.mxu0 %v3180
    %3362 = vmatprep.subr.bf16.mxu0 %v3184
    %3363 = vmatpush1.bf16.msra.mxu0 %v3183
    %3364 = vmatprep.subr.bf16.mxu0 %v3187
    %3365 = vmatpush1.bf16.msra.mxu0 %v3186
    %3366 = vmatprep.subr.bf16.mxu0 %v3190
    %3367 = vmatpush1.bf16.msra.mxu0 %v3189
    %3368 = vmatprep.mubr.bf16.mxu0 %v1030
    %3369 = vmatmul.mubr.bf16.gmra.mrb[0].mxu0 %v1029
    %v3370 = vpop.f32.mrb[0].mxu0
    %v3371 = vadd.f32 %v2812, %v3370
    %v3372 = vpop.f32.mrb[0].mxu0
    %v3373 = vadd.f32 %v2816, %v3372
    %v3374 = vpop.f32.mrb[0].mxu0
    %v3375 = vpop.f32.mrb[0].mxu0
    %3376 = vdwg.mxu0
    %3377 = vmatprep.subr.bf16.mxu0 %v3193
    %3378 = vmatpush1.bf16.msra.mxu0 %v3192
    %3379 = vmatprep.subr.bf16.mxu0 %v3196
    %3380 = vmatpush1.bf16.msra.mxu0 %v3195
    %3381 = vmatprep.subr.bf16.mxu0 %v3199
    %3382 = vmatpush1.bf16.msra.mxu0 %v3198
    %3383 = vmatprep.subr.bf16.mxu0 %v3202
    %3384 = vmatpush1.bf16.msra.mxu0 %v3201
    %3385 = vmatprep.subr.bf16.mxu0 %v3205
    %3386 = vmatpush1.bf16.msra.mxu0 %v3204
    %3387 = vmatprep.subr.bf16.mxu0 %v3208
    %3388 = vmatpush1.bf16.msra.mxu0 %v3207
    %3389 = vmatprep.subr.bf16.mxu0 %v3211
    %3390 = vmatpush1.bf16.msra.mxu0 %v3210
    %3391 = vmatprep.subr.bf16.mxu0 %v3214
    %3392 = vmatpush1.bf16.msra.mxu0 %v3213
    %3393 = vmatprep.subr.bf16.mxu0 %v3217
    %3394 = vmatpush1.bf16.msra.mxu0 %v3216
    %3395 = vmatprep.subr.bf16.mxu0 %v3220
    %3396 = vmatpush1.bf16.msra.mxu0 %v3219
    %3397 = vmatprep.subr.bf16.mxu0 %v3223
    %3398 = vmatpush1.bf16.msra.mxu0 %v3222
    %3399 = vmatprep.subr.bf16.mxu0 %v3226
    %3400 = vmatpush1.bf16.msra.mxu0 %v3225
    %3401 = vmatprep.subr.bf16.mxu0 %v3229
    %3402 = vmatpush1.bf16.msra.mxu0 %v3228
    %3403 = vmatprep.subr.bf16.mxu0 %v3232
    %3404 = vmatpush1.bf16.msra.mxu0 %v3231
    %3405 = vmatprep.subr.bf16.mxu0 %v3235
    %3406 = vmatpush1.bf16.msra.mxu0 %v3234
    %3407 = vmatprep.subr.bf16.mxu0 %v3238
    %3408 = vmatpush1.bf16.msra.mxu0 %v3237
    %3409 = vmatprep.mubr.bf16.mxu0 %v1032
    %3410 = vmatmul.mubr.bf16.gmra.mrb[0].mxu0 %v1031
    %v3411 = vpop.f32.mrb[0].mxu0
    %v3412 = vadd.f32 %v3371, %v3411
    %v3413 = vpop.f32.mrb[0].mxu0
    %v3414 = vadd.f32 %v3373, %v3413
    %v3415 = vpop.f32.mrb[0].mxu0
    %v3416 = vpop.f32.mrb[0].mxu0
    %3417 = vdwg.mxu0
    %3418 = vmatprep.subr.bf16.mxu0 0
    %3419 = vmatpush1.bf16.msra.mxu0 %v3146
    %3420 = vmatprep.subr.bf16.mxu0 0
    %3421 = vmatpush1.bf16.msra.mxu0 %v3149
    %3422 = vmatprep.subr.bf16.mxu0 0
    %3423 = vmatpush1.bf16.msra.mxu0 %v3152
    %3424 = vmatprep.subr.bf16.mxu0 0
    %3425 = vmatpush1.bf16.msra.mxu0 %v3155
    %3426 = vmatprep.subr.bf16.mxu0 0
    %3427 = vmatpush1.bf16.msra.mxu0 %v3158
    %3428 = vmatprep.subr.bf16.mxu0 0
    %3429 = vmatpush1.bf16.msra.mxu0 %v3161
    %3430 = vmatprep.subr.bf16.mxu0 0
    %3431 = vmatpush1.bf16.msra.mxu0 %v3164
    %3432 = vmatprep.subr.bf16.mxu0 0
    %3433 = vmatpush1.bf16.msra.mxu0 %v3167
    %3434 = vmatprep.subr.bf16.mxu0 0
    %3435 = vmatpush1.bf16.msra.mxu0 %v3170
    %3436 = vmatprep.subr.bf16.mxu0 0
    %3437 = vmatpush1.bf16.msra.mxu0 %v3173
    %3438 = vmatprep.subr.bf16.mxu0 0
    %3439 = vmatpush1.bf16.msra.mxu0 %v3176
    %3440 = vmatprep.subr.bf16.mxu0 0
    %3441 = vmatpush1.bf16.msra.mxu0 %v3179
    %3442 = vmatprep.subr.bf16.mxu0 0
    %3443 = vmatpush1.bf16.msra.mxu0 %v3182
    %3444 = vmatprep.subr.bf16.mxu0 0
    %3445 = vmatpush1.bf16.msra.mxu0 %v3185
    %3446 = vmatprep.subr.bf16.mxu0 0
    %3447 = vmatpush1.bf16.msra.mxu0 %v3188
    %3448 = vmatprep.subr.bf16.mxu0 0
    %3449 = vmatpush1.bf16.msra.mxu0 %v3191
    %3450 = vmatprep.mubr.bf16.mxu0 %v1030
    %3451 = vmatmul.mubr.bf16.gmra.mrb[0].mxu0 %v1029
    %v3452 = vpop.f32.mrb[0].mxu0
    %v3453 = vadd.f32 %v2820, %v3452
    %v3454 = vpop.f32.mrb[0].mxu0
    %v3455 = vpop.f32.mrb[0].mxu0
    %v3456 = vpop.f32.mrb[0].mxu0
    %3457 = vdwg.mxu0
    %3458 = vmatprep.subr.bf16.mxu0 0
    %3459 = vmatpush1.bf16.msra.mxu0 %v3194
    %3460 = vmatprep.subr.bf16.mxu0 0
    %3461 = vmatpush1.bf16.msra.mxu0 %v3197
    %3462 = vmatprep.subr.bf16.mxu0 0
    %3463 = vmatpush1.bf16.msra.mxu0 %v3200
    %3464 = vmatprep.subr.bf16.mxu0 0
    %3465 = vmatpush1.bf16.msra.mxu0 %v3203
    %3466 = vmatprep.subr.bf16.mxu0 0
    %3467 = vmatpush1.bf16.msra.mxu0 %v3206
    %3468 = vmatprep.subr.bf16.mxu0 0
    %3469 = vmatpush1.bf16.msra.mxu0 %v3209
    %3470 = vmatprep.subr.bf16.mxu0 0
    %3471 = vmatpush1.bf16.msra.mxu0 %v3212
    %3472 = vmatprep.subr.bf16.mxu0 0
    %3473 = vmatpush1.bf16.msra.mxu0 %v3215
    %3474 = vmatprep.subr.bf16.mxu0 0
    %3475 = vmatpush1.bf16.msra.mxu0 %v3218
    %3476 = vmatprep.subr.bf16.mxu0 0
    %3477 = vmatpush1.bf16.msra.mxu0 %v3221
    %3478 = vmatprep.subr.bf16.mxu0 0
    %3479 = vmatpush1.bf16.msra.mxu0 %v3224
    %3480 = vmatprep.subr.bf16.mxu0 0
    %3481 = vmatpush1.bf16.msra.mxu0 %v3227
    %3482 = vmatprep.subr.bf16.mxu0 0
    %3483 = vmatpush1.bf16.msra.mxu0 %v3230
    %3484 = vmatprep.subr.bf16.mxu0 0
    %3485 = vmatpush1.bf16.msra.mxu0 %v3233
    %3486 = vmatprep.subr.bf16.mxu0 0
    %3487 = vmatpush1.bf16.msra.mxu0 %v3236
    %3488 = vmatprep.subr.bf16.mxu0 0
    %3489 = vmatpush1.bf16.msra.mxu0 %v3239
    %3490 = vmatprep.mubr.bf16.mxu0 %v1032
    %3491 = vmatmul.mubr.bf16.gmra.mrb[0].mxu0 %v1031
    %v3492 = vpop.f32.mrb[0].mxu0
    %v3493 = vadd.f32 %v3453, %v3492
    %v3494 = vpop.f32.mrb[0].mxu0
    %v3495 = vpop.f32.mrb[0].mxu0
    %v3496 = vpop.f32.mrb[0].mxu0
    %3497 = vdwg.mxu0
    %v3498 = vmax.f32 %v3412, 0.0
    %v3499 = vmax.f32 %v3414, 0.0
    %v3500 = vmax.f32 %v3493, 0.0
    %v3501 = vpack.c.bf16 %v3498, %v3498
    %v3502 = vpack.c.bf16 %v3499, %v3499
    %v3503 = vpack.c.bf16 %v3500, %v3500
    %v3504 = vld [vmem:[#allocation10] sm:$0x3f]
    %v3506 = vlaneseq
    %v3507 = vshrl.u32 %v3506, 7
    %v3508 = vsub.s32 0, %v3507
    %v3509 = vrot.slane %v3504, %v3508
    %v3510 = vlaneseq
    %v3511 = vshrl.u32 %v3510, 7
    %v3512 = vsub.s32 2, %v3511
    %v3513 = vrot.slane %v3504, %v3512
    %v3514 = vlaneseq
    %v3515 = vshrl.u32 %v3514, 7
    %v3516 = vsub.s32 4, %v3515
    %v3517 = vrot.slane %v3504, %v3516
    %v3521 = vlaneseq
    %v3522 = vshrl.u32 %v3521, 7
    %v3523 = vsub.s32 0, %v3522
    %v3524 = vrot.slane %v3509, %v3523
    %v3525 = vlaneseq
    %v3526 = vshrl.u32 %v3525, 7
    %v3527 = vsub.s32 0, %v3526
    %v3528 = vrot.slane %v3513, %v3527
    %v3529 = vlaneseq
    %v3530 = vshrl.u32 %v3529, 7
    %v3531 = vsub.s32 0, %v3530
    %v3532 = vrot.slane %v3517, %v3531
    %v3533 = vmul.f32 %v1852, %v3524
    %v3534 = vmul.f32 %v1853, %v3528
    %v3535 = vmul.f32 %v1854, %v3532
    %v3536 = vadd.f32 %v3533, %v3534
    %v3537 = vadd.f32 %v3536, %v3535
    %3538 = vadd.xlane.f32.xlu0 %v3537
    %v3539 = vpop.xlane.xlu0 %3538
    %v3540 = vlaneseq
    %v3541 = vshrl.u32 %v3540, 7
    %v3542 = vsub.s32 1, %v3541
    %v3543 = vrot.slane %v3504, %v3542
    %v3544 = vlaneseq
    %v3545 = vshrl.u32 %v3544, 7
    %v3546 = vsub.s32 3, %v3545
    %v3547 = vrot.slane %v3504, %v3546
    %v3548 = vlaneseq
    %v3549 = vshrl.u32 %v3548, 7
    %v3550 = vsub.s32 5, %v3549
    %v3551 = vrot.slane %v3504, %v3550
    %v3555 = vlaneseq
    %v3556 = vshrl.u32 %v3555, 7
    %v3557 = vsub.s32 1, %v3556
    %v3558 = vrot.slane %v3543, %v3557
    %v3559 = vlaneseq
    %v3560 = vshrl.u32 %v3559, 7
    %v3561 = vsub.s32 1, %v3560
    %v3562 = vrot.slane %v3547, %v3561
    %v3563 = vlaneseq
    %v3564 = vshrl.u32 %v3563, 7
    %v3565 = vsub.s32 1, %v3564
    %v3566 = vrot.slane %v3551, %v3565
    %v3567 = vmul.f32 %v2675, %v3558
    %v3568 = vmul.f32 %v2676, %v3562
    %v3569 = vmul.f32 %v2677, %v3566
    %v3570 = vadd.f32 %v3567, %v3568
    %v3571 = vadd.f32 %v3570, %v3569
    %3572 = vadd.xlane.f32.xlu0 %v3571
    %v3573 = vpop.xlane.xlu0 %3572
    %v3574 = vld [vmem:[#allocation12] sm:$0xf]
    %v3575 = vld [vmem:[#allocation12 + $0x4] sm:$0xf]
    %v3576 = vld [vmem:[#allocation12 + $0x8] sm:$0xf]
    %v3577 = vld [vmem:[#allocation12 + $0xc] sm:$0xf]
    %v3578 = vld [vmem:[#allocation12 + $0x10] sm:$0xf]
    %v3579 = vld [vmem:[#allocation12 + $0x14] sm:$0xf]
    %v3580 = vld [vmem:[#allocation12 + $0x18] sm:$0xf]
    %v3581 = vld [vmem:[#allocation12 + $0x1c] sm:$0xf]
    %v3582 = vld [vmem:[#allocation12 + $0x20] sm:$0xf]
    %v3583 = vld [vmem:[#allocation12 + $0x24] sm:$0xf]
    %v3584 = vld [vmem:[#allocation12 + $0x28] sm:$0xf]
    %v3585 = vld [vmem:[#allocation12 + $0x2c] sm:$0xf]
    %v3586 = vld [vmem:[#allocation12 + $0x30] sm:$0xf]
    %v3587 = vld [vmem:[#allocation12 + $0x34] sm:$0xf]
    %v3588 = vld [vmem:[#allocation12 + $0x38] sm:$0xf]
    %v3589 = vld [vmem:[#allocation12 + $0x3c] sm:$0xf]
    %v3590 = vld [vmem:[#allocation12 + $0x40] sm:$0xf]
    %v3591 = vld [vmem:[#allocation12 + $0x44] sm:$0xf]
    %v3592 = vld [vmem:[#allocation12 + $0x48] sm:$0xf]
    %v3593 = vld [vmem:[#allocation12 + $0x4c] sm:$0xf]
    %v3594 = vld [vmem:[#allocation12 + $0x50] sm:$0xf]
    %v3595 = vld [vmem:[#allocation12 + $0x54] sm:$0xf]
    %v3596 = vld [vmem:[#allocation12 + $0x58] sm:$0xf]
    %v3597 = vld [vmem:[#allocation12 + $0x5c] sm:$0xf]
    %v3598 = vld [vmem:[#allocation12 + $0x60] sm:$0xf]
    %v3599 = vld [vmem:[#allocation12 + $0x64] sm:$0xf]
    %v3600 = vld [vmem:[#allocation12 + $0x68] sm:$0xf]
    %v3601 = vld [vmem:[#allocation12 + $0x6c] sm:$0xf]
    %v3602 = vld [vmem:[#allocation12 + $0x70] sm:$0xf]
    %v3603 = vld [vmem:[#allocation12 + $0x74] sm:$0xf]
    %v3604 = vld [vmem:[#allocation12 + $0x78] sm:$0xf]
    %v3605 = vld [vmem:[#allocation12 + $0x7c] sm:$0xf]
    %v3606 = vld [vmem:[#allocation12 + $0x80] sm:$0xf]
    %v3607 = vld [vmem:[#allocation12 + $0x84] sm:$0xf]
    %v3608 = vld [vmem:[#allocation12 + $0x88] sm:$0xf]
    %v3609 = vld [vmem:[#allocation12 + $0x8c] sm:$0xf]
    %v3610 = vld [vmem:[#allocation12 + $0x90] sm:$0xf]
    %v3611 = vld [vmem:[#allocation12 + $0x94] sm:$0xf]
    %v3612 = vld [vmem:[#allocation12 + $0x98] sm:$0xf]
    %v3613 = vld [vmem:[#allocation12 + $0x9c] sm:$0xf]
    %v3614 = vld [vmem:[#allocation12 + $0xa0] sm:$0xf]
    %v3615 = vld [vmem:[#allocation12 + $0xa4] sm:$0xf]
    %v3616 = vld [vmem:[#allocation12 + $0xa8] sm:$0xf]
    %v3617 = vld [vmem:[#allocation12 + $0xac] sm:$0xf]
    %v3618 = vld [vmem:[#allocation12 + $0xb0] sm:$0xf]
    %v3619 = vld [vmem:[#allocation12 + $0xb4] sm:$0xf]
    %v3620 = vld [vmem:[#allocation12 + $0xb8] sm:$0xf]
    %v3621 = vld [vmem:[#allocation12 + $0xbc] sm:$0xf]
    %v3670 = vunpack.c.l.b16 %v3574
    %v3671 = vunpack.c.l.b16 %v3575
    %v3672 = vunpack.c.l.b16 %v3576
    %v3673 = vunpack.c.l.b16 %v3577
    %v3674 = vunpack.c.l.b16 %v3578
    %v3675 = vunpack.c.l.b16 %v3579
    %v3676 = vunpack.c.l.b16 %v3580
    %v3677 = vunpack.c.l.b16 %v3581
    %v3678 = vunpack.c.l.b16 %v3582
    %v3679 = vunpack.c.l.b16 %v3583
    %v3680 = vunpack.c.l.b16 %v3584
    %v3681 = vunpack.c.l.b16 %v3585
    %v3682 = vunpack.c.l.b16 %v3586
    %v3683 = vunpack.c.l.b16 %v3587
    %v3684 = vunpack.c.l.b16 %v3588
    %v3685 = vunpack.c.l.b16 %v3589
    %v3686 = vunpack.c.l.b16 %v3590
    %v3687 = vunpack.c.l.b16 %v3591
    %v3688 = vunpack.c.l.b16 %v3592
    %v3689 = vunpack.c.l.b16 %v3593
    %v3690 = vunpack.c.l.b16 %v3594
    %v3691 = vunpack.c.l.b16 %v3595
    %v3692 = vunpack.c.l.b16 %v3596
    %v3693 = vunpack.c.l.b16 %v3597
    %v3694 = vunpack.c.l.b16 %v3598
    %v3695 = vunpack.c.l.b16 %v3599
    %v3696 = vunpack.c.l.b16 %v3600
    %v3697 = vunpack.c.l.b16 %v3601
    %v3698 = vunpack.c.l.b16 %v3602
    %v3699 = vunpack.c.l.b16 %v3603
    %v3700 = vunpack.c.l.b16 %v3604
    %v3701 = vunpack.c.l.b16 %v3605
    %v3702 = vunpack.c.l.b16 %v3606
    %v3703 = vunpack.c.l.b16 %v3607
    %v3704 = vunpack.c.l.b16 %v3608
    %v3705 = vunpack.c.l.b16 %v3609
    %v3706 = vunpack.c.l.b16 %v3610
    %v3707 = vunpack.c.l.b16 %v3611
    %v3708 = vunpack.c.l.b16 %v3612
    %v3709 = vunpack.c.l.b16 %v3613
    %v3710 = vunpack.c.l.b16 %v3614
    %v3711 = vunpack.c.l.b16 %v3615
    %v3712 = vunpack.c.l.b16 %v3616
    %v3713 = vunpack.c.l.b16 %v3617
    %v3714 = vunpack.c.l.b16 %v3618
    %v3715 = vunpack.c.l.b16 %v3619
    %v3716 = vunpack.c.l.b16 %v3620
    %v3717 = vunpack.c.l.b16 %v3621
    %v3718 = vpack.c.b16 %v3671, %v3670
    %v3719 = vpack.c.b16 %v3673, %v3672
    %v3720 = vpack.c.b16 %v3675, %v3674
    %v3721 = vpack.c.b16 %v3677, %v3676
    %v3722 = vpack.c.b16 %v3679, %v3678
    %v3723 = vpack.c.b16 %v3681, %v3680
    %v3724 = vpack.c.b16 %v3683, %v3682
    %v3725 = vpack.c.b16 %v3685, %v3684
    %v3726 = vpack.c.b16 %v3687, %v3686
    %v3727 = vpack.c.b16 %v3689, %v3688
    %v3728 = vpack.c.b16 %v3691, %v3690
    %v3729 = vpack.c.b16 %v3693, %v3692
    %v3730 = vpack.c.b16 %v3695, %v3694
    %v3731 = vpack.c.b16 %v3697, %v3696
    %v3732 = vpack.c.b16 %v3699, %v3698
    %v3733 = vpack.c.b16 %v3701, %v3700
    %v3734 = vpack.c.b16 %v3703, %v3702
    %v3735 = vpack.c.b16 %v3705, %v3704
    %v3736 = vpack.c.b16 %v3707, %v3706
    %v3737 = vpack.c.b16 %v3709, %v3708
    %v3738 = vpack.c.b16 %v3711, %v3710
    %v3739 = vpack.c.b16 %v3713, %v3712
    %v3740 = vpack.c.b16 %v3715, %v3714
    %v3741 = vpack.c.b16 %v3717, %v3716
    %3766 = vmatprep.subr.bf16.mxu0 0
    %3767 = vmatpush1.bf16.msra.mxu0 %v3718
    %3768 = vmatprep.subr.bf16.mxu0 0
    %3769 = vmatpush1.bf16.msra.mxu0 %v3719
    %3770 = vmatprep.subr.bf16.mxu0 0
    %3771 = vmatpush1.bf16.msra.mxu0 %v3720
    %3772 = vmatprep.subr.bf16.mxu0 0
    %3773 = vmatpush1.bf16.msra.mxu0 %v3721
    %3774 = vmatprep.subr.bf16.mxu0 0
    %3775 = vmatpush1.bf16.msra.mxu0 %v3722
    %3776 = vmatprep.subr.bf16.mxu0 0
    %3777 = vmatpush1.bf16.msra.mxu0 %v3723
    %3778 = vmatprep.subr.bf16.mxu0 0
    %3779 = vmatpush1.bf16.msra.mxu0 %v3724
    %3780 = vmatprep.subr.bf16.mxu0 0
    %3781 = vmatpush1.bf16.msra.mxu0 %v3725
    %3782 = vmatprep.subr.bf16.mxu0 0
    %3783 = vmatpush1.bf16.msra.mxu0 %v3726
    %3784 = vmatprep.subr.bf16.mxu0 0
    %3785 = vmatpush1.bf16.msra.mxu0 %v3727
    %3786 = vmatprep.subr.bf16.mxu0 0
    %3787 = vmatpush1.bf16.msra.mxu0 %v3728
    %3788 = vmatprep.subr.bf16.mxu0 0
    %3789 = vmatpush1.bf16.msra.mxu0 %v3729
    %3790 = vmatprep.subr.bf16.mxu0 0
    %3791 = vmatpush1.bf16.msra.mxu0 %v3730
    %3792 = vmatprep.subr.bf16.mxu0 0
    %3793 = vmatpush1.bf16.msra.mxu0 %v3731
    %3794 = vmatprep.subr.bf16.mxu0 0
    %3795 = vmatpush1.bf16.msra.mxu0 %v3732
    %3796 = vmatprep.subr.bf16.mxu0 0
    %3797 = vmatpush1.bf16.msra.mxu0 %v3733
    %3798 = vmatprep.mubr.bf16.mxu0 %v3502
    %3799 = vmatmul.mubr.bf16.gmra.mrb[0].mxu0 %v3501
    %v3800 = vpop.f32.mrb[0].mxu0
    %v3801 = vadd.f32 0.0, %v3800
    %v3802 = vpop.f32.mrb[0].mxu0
    %v3803 = vpop.f32.mrb[0].mxu0
    %v3804 = vpop.f32.mrb[0].mxu0
    %3805 = vdwg.mxu0
    %3806 = vmatprep.subr.bf16.mxu0 0
    %3807 = vmatpush1.bf16.msra.mxu0 %v3734
    %3808 = vmatprep.subr.bf16.mxu0 0
    %3809 = vmatpush1.bf16.msra.mxu0 %v3735
    %3810 = vmatprep.subr.bf16.mxu0 0
    %3811 = vmatpush1.bf16.msra.mxu0 %v3736
    %3812 = vmatprep.subr.bf16.mxu0 0
    %3813 = vmatpush1.bf16.msra.mxu0 %v3737
    %3814 = vmatprep.subr.bf16.mxu0 0
    %3815 = vmatpush1.bf16.msra.mxu0 %v3738
    %3816 = vmatprep.subr.bf16.mxu0 0
    %3817 = vmatpush1.bf16.msra.mxu0 %v3739
    %3818 = vmatprep.subr.bf16.mxu0 0
    %3819 = vmatpush1.bf16.msra.mxu0 %v3740
    %3820 = vmatprep.subr.bf16.mxu0 0
    %3821 = vmatpush1.bf16.msra.mxu0 %v3741
    %3822 = vmatprep.subr.bf16.mxu0 0
    %3823 = vmatpush1.bf16.msra.mxu0 0
    %3824 = vmatprep.subr.bf16.mxu0 0
    %3825 = vmatpush1.bf16.msra.mxu0 0
    %3826 = vmatprep.subr.bf16.mxu0 0
    %3827 = vmatpush1.bf16.msra.mxu0 0
    %3828 = vmatprep.subr.bf16.mxu0 0
    %3829 = vmatpush1.bf16.msra.mxu0 0
    %3830 = vmatprep.subr.bf16.mxu0 0
    %3831 = vmatpush1.bf16.msra.mxu0 0
    %3832 = vmatprep.subr.bf16.mxu0 0
    %3833 = vmatpush1.bf16.msra.mxu0 0
    %3834 = vmatprep.subr.bf16.mxu0 0
    %3835 = vmatpush1.bf16.msra.mxu0 0
    %3836 = vmatprep.subr.bf16.mxu0 0
    %3837 = vmatpush1.bf16.msra.mxu0 0
    %3838 = vmatprep.mubr.bf16.mxu0 0
    %3839 = vmatmul.mubr.bf16.gmra.mrb[0].mxu0 %v3503
    %v3840 = vpop.f32.mrb[0].mxu0
    %v3841 = vadd.f32 %v3801, %v3840
    %v3842 = vpop.f32.mrb[0].mxu0
    %v3843 = vpop.f32.mrb[0].mxu0
    %v3844 = vpop.f32.mrb[0].mxu0
    %3845 = vdwg.mxu0
    %v3846 = vmul.f32 %v3841, %v3841
    %3847 = vadd.xlane.f32.xlu0 %v3846
    %v3848 = vpop.xlane.xlu0 %3847
    %v3849 = vmax.f32 %v3848, 1e-24
    %v3850 = vrsqrt.pop %v3849
    %v3851 = vmul.f32 %v3841, %v3850
    %v3852 = vlaneseq
    %v3853 = vand.u32 %v3852, 127
    %vm3854 = vcmp.eq.s32.totalorder %v3853, 0
    %v3855 = vsel %vm3854, %v3539, %v3851
    %vm3856 = vcmp.eq.s32.totalorder %v3853, 1
    %v3857 = vsel %vm3856, %v3573, %v3855
    %3858 = vst [vmem:[%s8] sm:$0xff] %v3857
    // Predicated region
    $region62: #{critic_down_action.1} parent=1 // pred_check
      _
    $region63: #{critic_down_action.1} parent=1 // pred_check_branch
      %3860 = sbr.rel (0) target = $region65
    $region64: #{critic_down_action.1} parent=1 // pred_region
      _
    $region65: #{critic_down_action.1} parent=1 // pred_fallthru
      _
    // Predicated region
    $region66: #{critic_down_action.1} parent=1 // pred_check
      _
    $region67: #{critic_down_action.1} parent=1 // pred_check_branch
      %3862 = sbr.rel (0) target = $region69
    $region68: #{critic_down_action.1} parent=1 // pred_region
      _
    $region69: #{critic_down_action.1} parent=1 // pred_fallthru
      _
    %3863 = vsyncpa [#allocation3], 1
    %3864 = vsyncpa [#allocation5], 1
    %3865 = vsyncpa [#allocation8], 1
    %3866 = vsyncpa [#allocation11], 1

</llo_original>
